<compile_context>
chip_gen: v7x
topology: tpu7x:2x2x1
jax: 0.10.0
libtpu: 0.0.40
codegen_flags: <defaults>
</compile_context>

<pallas_src>
import functools
import math

import jax
import jax.numpy as jnp
import numpy as np
from jax.experimental import pallas as pl
from jax.experimental.pallas import tpu as pltpu

EPS = 1e-5  # nn.TransformerEncoderLayer layer_norm_eps default

# rows of the packed constants array
_G1, _BE1, _G2, _BE2, _BO, _B2 = 0, 1, 2, 3, 4, 5


# ----------------------------------------------------------------------------
# Pallas kernel: one TransformerEncoderLayer, grid = (batch, ff_chunks)
# ----------------------------------------------------------------------------
def encoder_layer_kernel(num_heads,
                         x_ref,
                         wqkv_ref, bqkv_ref, wo_ref, consts_ref,
                         w1_ref, b1_ref, w2_ref,
                         o_ref,
                         x1_scratch, ffn_acc):
    f = pl.program_id(1)
    n_ff = pl.num_programs(1)

    # --- attention + residual + LayerNorm1: only on the first FF chunk ------
    @pl.when(f == 0)
    def _attn_and_ln1():
        x_f32 = x_ref[0]                                   # (S, E) f32
        S, E = x_f32.shape
        H = num_heads
        x_bf = x_f32.astype(jnp.bfloat16)

        H3, _, Dp = wqkv_ref.shape                         # (3H, E, Dp)

        # head-batched fused Q/K/V projection; 1/sqrt(Dh) folded into Wq/bq.
        x_b = jnp.broadcast_to(x_bf[None, :, :], (H3, S, E))
        qkv = jax.lax.dot_general(
            x_b, wqkv_ref[...],
            dimension_numbers=(((2,), (1,)), ((0,), (0,))),
            preferred_element_type=jnp.float32) + bqkv_ref[...]   # (3H, S, Dp)

        q = qkv[0:H].astype(jnp.bfloat16)                  # (H, S, Dp)
        k = qkv[H:2 * H].astype(jnp.bfloat16)
        v = qkv[2 * H:3 * H].astype(jnp.bfloat16)

        # head-batched scores + softmax (f32)
        s = jax.lax.dot_general(
            q, k, (((2,), (2,)), ((0,), (0,))),
            preferred_element_type=jnp.float32)            # (H, S, S)
        m = jnp.max(s, axis=-1, keepdims=True)
        p = jnp.exp(s - m)
        inv = pl.reciprocal(jnp.sum(p, axis=-1, keepdims=True), approx=True)
        p = (p * inv).astype(jnp.bfloat16)

        # head-batched context
        ctx = jax.lax.dot_general(
            p, v, (((2,), (1,)), ((0,), (0,))),
            preferred_element_type=jnp.float32)            # (H, S, Dp)

        # per-head output projection, summed over heads (no lane concat)
        attn_h = jax.lax.dot_general(
            ctx.astype(jnp.bfloat16), wo_ref[...],
            (((2,), (1,)), ((0,), (0,))),
            preferred_element_type=jnp.float32)            # (H, S, E)
        attn = jnp.sum(attn_h, axis=0) + consts_ref[_BO:_BO + 1, :]

        # residual + LayerNorm 1 (post-norm), f32 math
        x1 = x_f32 + attn
        mu = jnp.mean(x1, axis=-1, keepdims=True)
        var = jnp.mean((x1 - mu) ** 2, axis=-1, keepdims=True)
        x1 = ((x1 - mu) * jax.lax.rsqrt(var + EPS)
              * consts_ref[_G1:_G1 + 1, :] + consts_ref[_BE1:_BE1 + 1, :])

        # FFN input (bf16 matmul operand) + accumulator preloaded with the
        # f32 residual and the linear2 bias.
        x1_scratch[...] = x1.astype(jnp.bfloat16)
        ffn_acc[...] = x1 + consts_ref[_B2:_B2 + 1, :]

    # --- FFN chunk over the hidden dimension (streamed w1/w2 blocks) --------
    hdn = jnp.dot(x1_scratch[...], w1_ref[...],
                  preferred_element_type=jnp.float32) + b1_ref[...]   # (S, chunk)
    hdn = jnp.maximum(hdn, 0.0)
    ffn_acc[...] += jnp.dot(hdn.astype(jnp.bfloat16), w2_ref[...],
                            preferred_element_type=jnp.float32)       # (S, E)

    # --- LayerNorm 2 on the last chunk ---------------------------------------
    @pl.when(f == n_ff - 1)
    def _finalize():
        x2 = ffn_acc[...]
        mu2 = jnp.mean(x2, axis=-1, keepdims=True)
        var2 = jnp.mean((x2 - mu2) ** 2, axis=-1, keepdims=True)
        out = ((x2 - mu2) * jax.lax.rsqrt(var2 + EPS)
               * consts_ref[_G2:_G2 + 1, :] + consts_ref[_BE2:_BE2 + 1, :])
        o_ref[0] = out.astype(o_ref.dtype)


# ----------------------------------------------------------------------------
# Sizing helpers (per-generation VMEM budget, FF chunk) + Buffered(1) probe
# ----------------------------------------------------------------------------
def _vmem_limit_bytes():
    try:
        cap = int(pltpu.get_tpu_info().vmem_capacity_bytes)
    except Exception:
        cap = 64 * 1024 * 1024  # conservative (v7x per-TensorCore capacity)
    return max(16 * 1024 * 1024, int(cap * 0.55))


def _pick_ff_chunk(FF, E, S, vmem_limit):
    """Largest FF chunk (multiple of 128, divisor of FF) whose double-buffered
    streamed w1/w2/b1 blocks plus the (S, chunk) hidden temp fit in ~1/4 of
    the scoped-VMEM budget (rest is left for attention, x/out, consts)."""
    def est(c):
        w1 = E * c * 2          # bf16
        w2 = c * E * 2          # bf16
        b1 = c * 4              # f32
        hdn = S * c * 4         # f32 temp
        return 2 * (w1 + w2 + b1) + hdn

    budget = vmem_limit // 4
    cands = [c for c in range(FF, 0, -1)
             if FF % c == 0 and (c % 128 == 0 or c == FF)]
    for c in cands:
        if est(c) <= budget:
            return c
    return cands[-1]


@functools.lru_cache(maxsize=None)
def _buffered_one_supported():
    """One-time compile-only probe for pipeline_mode=pl.Buffered(1)."""
    def probe_kernel(x_ref, o_ref):
        o_ref[...] = x_ref[...] + 1.0

    try:
        spec = pl.BlockSpec((8, 128), lambda i: (0, 0),
                            pipeline_mode=pl.Buffered(1))
        fn = pl.pallas_call(
            probe_kernel,
            out_shape=jax.ShapeDtypeStruct((8, 128), jnp.float32),
            grid_spec=pltpu.PrefetchScalarGridSpec(
                num_scalar_prefetch=0, grid=(1,),
                in_specs=[spec],
                out_specs=pl.BlockSpec((8, 128), lambda i: (0, 0))))
        jax.jit(fn).lower(jax.ShapeDtypeStruct((8, 128), jnp.float32)).compile()
        return True
    except Exception:
        return False


# ----------------------------------------------------------------------------
# Layer / encoder wrappers
# ----------------------------------------------------------------------------
def encoder_layer_pallas(x, kp, num_heads, *, vmem_limit, ff_chunk, buffered_one):
    """Apply one encoder layer. x: (B, S, E) float32."""
    B, S, E = x.shape
    FF = kp['w1'].shape[1]
    chunk = ff_chunk
    n_ff = FF // chunk

    def const_spec(arr):
        nd = arr.ndim
        idx = lambda b, f, nd=nd: (0,) * nd
        if buffered_one:
            return pl.BlockSpec(arr.shape, idx, pipeline_mode=pl.Buffered(1))
        return pl.BlockSpec(arr.shape, idx)

    in_specs = [
        pl.BlockSpec((1, S, E), lambda b, f: (b, 0, 0)),          # x
        const_spec(kp['wqkv']),                                   # (3H, E, Dp)
        const_spec(kp['bqkv']),                                   # (3H, 1, Dp)
        const_spec(kp['wo']),                                     # (H, Dp, E)
        const_spec(kp['consts']),                                 # (8, E)
        pl.BlockSpec((E, chunk), lambda b, f: (0, f)),            # w1 chunk
        pl.BlockSpec((1, chunk), lambda b, f: (0, f)),            # b1 chunk
        pl.BlockSpec((chunk, E), lambda b, f: (f, 0)),            # w2 chunk
    ]
    out_specs = pl.BlockSpec((1, S, E), lambda b, f: (b, 0, 0))

    kernel = functools.partial(encoder_layer_kernel, num_heads)
    call = pl.pallas_call(
        kernel,
        out_shape=jax.ShapeDtypeStruct((B, S, E), x.dtype),
        grid_spec=pltpu.PrefetchScalarGridSpec(
            num_scalar_prefetch=0,
            grid=(B, n_ff),
            in_specs=in_specs,
            out_specs=out_specs,
            scratch_shapes=[pltpu.VMEM((S, E), jnp.bfloat16),     # x1 (post-LN1)
                            pltpu.VMEM((S, E), jnp.float32)]),    # FFN accumulator
        compiler_params=pltpu.CompilerParams(
            dimension_semantics=("parallel", "arbitrary"),
            vmem_limit_bytes=vmem_limit),
    )
    return call(x, kp['wqkv'], kp['bqkv'], kp['wo'], kp['consts'],
                kp['w1'], kp['b1'], kp['w2'])


def transformer_encoder_pallas(src, layer_kparams, num_heads):
    B, S, E = src.shape
    FF = layer_kparams[0]['w1'].shape[1]
    vmem_limit = _vmem_limit_bytes()
    ff_chunk = _pick_ff_chunk(FF, E, S, vmem_limit)
    buffered_one = _buffered_one_supported()

    out = src
    for kp in layer_kparams:
        out = encoder_layer_pallas(out, kp, num_heads,
                                   vmem_limit=vmem_limit,
                                   ff_chunk=ff_chunk,
                                   buffered_one=buffered_one)
    return out


# ----------------------------------------------------------------------------
# Parameter init (PyTorch layout) and conversion to kernel layout
# ----------------------------------------------------------------------------
def init_layer_params_torch_layout(key, E, FF):
    """Deterministic synthetic params in the same shapes PyTorch uses."""
    ks = jax.random.split(key, 8)
    s = 0.02
    return dict(
        in_proj_weight=jax.random.normal(ks[0], (3 * E, E), jnp.float32) * s,
        in_proj_bias=jax.random.normal(ks[1], (3 * E,), jnp.float32) * s,
        out_proj_weight=jax.random.normal(ks[2], (E, E), jnp.float32) * s,
        out_proj_bias=jax.random.normal(ks[3], (E,), jnp.float32) * s,
        linear1_weight=jax.random.normal(ks[4], (FF, E), jnp.float32) * s,
        linear1_bias=jax.random.normal(ks[5], (FF,), jnp.float32) * s,
        linear2_weight=jax.random.normal(ks[6], (E, FF), jnp.float32) * s,
        linear2_bias=jax.random.normal(ks[7], (E,), jnp.float32) * s,
        norm1_weight=jnp.ones((E,), jnp.float32),
        norm1_bias=jnp.zeros((E,), jnp.float32),
        norm2_weight=jnp.ones((E,), jnp.float32),
        norm2_bias=jnp.zeros((E,), jnp.float32),
    )


def convert_params_for_kernel(p, H):
    """PyTorch (out,in) weights -> head-batched, lane-padded kernel layout.

    Q/K/V weights become (3H, E, Dp) with Dp = Dh rounded up to a multiple of
    128 (zero padding), biases (3H, 1, Dp); the 1/sqrt(Dh) scale is folded
    into the Q head weights/biases. out_proj becomes (H, Dp, E). The six (E,)
    LayerNorm/bias vectors are packed into one (8, E) constant block."""
    E = p['out_proj_weight'].shape[0]
    Dh = E // H
    Dp = ((Dh + 127) // 128) * 128
    scale = 1.0 / math.sqrt(Dh)

    w_in = p['in_proj_weight'].astype(jnp.float32)        # (3E, E)
    b_in = p['in_proj_bias'].astype(jnp.float32)          # (3E,)

    def head_blocks(w_rows, b_rows, s):
        wt = w_rows.T * s                                  # (E_in, E_out)
        bt = b_rows * s                                    # (E_out,)
        w_h = wt.reshape(E, H, Dh).transpose(1, 0, 2)      # (H, E, Dh)
        b_h = bt.reshape(H, 1, Dh)                         # (H, 1, Dh)
        w_h = jnp.pad(w_h, ((0, 0), (0, 0), (0, Dp - Dh)))
        b_h = jnp.pad(b_h, ((0, 0), (0, 0), (0, Dp - Dh)))
        return w_h, b_h

    wq, bq = head_blocks(w_in[:E], b_in[:E], scale)
    wk, bk = head_blocks(w_in[E:2 * E], b_in[E:2 * E], 1.0)
    wv, bv = head_blocks(w_in[2 * E:], b_in[2 * E:], 1.0)
    wqkv = jnp.concatenate([wq, wk, wv], axis=0).astype(jnp.bfloat16)   # (3H,E,Dp)
    bqkv = jnp.concatenate([bq, bk, bv], axis=0).astype(jnp.float32)    # (3H,1,Dp)

    wo = p['out_proj_weight'].T.astype(jnp.float32).reshape(H, Dh, E)
    wo = jnp.pad(wo, ((0, 0), (0, Dp - Dh), (0, 0))).astype(jnp.bfloat16)  # (H,Dp,E)

    consts = jnp.zeros((8, E), jnp.float32)
    consts = consts.at[_G1].set(p['norm1_weight'])
    consts = consts.at[_BE1].set(p['norm1_bias'])
    consts = consts.at[_G2].set(p['norm2_weight'])
    consts = consts.at[_BE2].set(p['norm2_bias'])
    consts = consts.at[_BO].set(p['out_proj_bias'])
    consts = consts.at[_B2].set(p['linear2_bias'])

    return dict(
        wqkv=wqkv, bqkv=bqkv, wo=wo, consts=consts,
        w1=p['linear1_weight'].T.astype(jnp.bfloat16),     # (E, FF)
        b1=p['linear1_bias'].reshape(1, -1).astype(jnp.float32),
        w2=p['linear2_weight'].T.astype(jnp.bfloat16),     # (FF, E)
    )


# ----------------------------------------------------------------------------
# Pure-JAX reference (mirrors PyTorch TransformerEncoderLayer, post-norm, eval)
# ----------------------------------------------------------------------------
def encoder_layer_ref(x, p, H):
    B, S, E = x.shape
    Dh = E // H

    def ln(t, g, b):
        mu = t.mean(-1, keepdims=True)
        var = ((t - mu) ** 2).mean(-1, keepdims=True)
        return (t - mu) / jnp.sqrt(var + EPS) * g + b

    qkv = x @ p['in_proj_weight'].T + p['in_proj_bias']    # (B, S, 3E)
    q, k, v = jnp.split(qkv, 3, axis=-1)

    def hd(t):
        return t.reshape(B, S, H, Dh).transpose(0, 2, 1, 3)

    q, k, v = hd(q), hd(k), hd(v)
    s = jnp.einsum('bhqd,bhkd->bhqk', q, k) / math.sqrt(Dh)
    a = jax.nn.softmax(s, axis=-1)
    ctx = jnp.einsum('bhqk,bhkd->bhqd', a, v).transpose(0, 2, 1, 3).reshape(B, S, E)
    attn = ctx @ p['out_proj_weight'].T + p['out_proj_bias']

    x1 = ln(x + attn, p['norm1_weight'], p['norm1_bias'])
    ffn = jnp.maximum(x1 @ p['linear1_weight'].T + p['linear1_bias'], 0.0)
    ffn = ffn @ p['linear2_weight'].T + p['linear2_bias']
    return ln(x1 + ffn, p['norm2_weight'], p['norm2_bias'])


if __name__ == "__main__":
    # Small shapes consistent with the module's forward: src is (B, S, E).
    B, S, E, H, L = 2, 8, 32, 4, 2
    FF = 2048  # nn.TransformerEncoderLayer default dim_feedforward
    assert E % H == 0

    key = jax.random.PRNGKey(0)
    kx, *kls = jax.random.split(key, L + 1)
    src = jax.random.normal(kx, (B, S, E), jnp.float32)

    torch_layout_params = [init_layer_params_torch_layout(k, E, FF) for k in kls]
    kernel_params = [convert_params_for_kernel(p, H) for p in torch_layout_params]

    out = transformer_encoder_pallas(src, kernel_params, H)
    out = jax.block_until_ready(out)

    ref = src
    for p in torch_layout_params:
        ref = encoder_layer_ref(ref, p, H)
    ref = jax.block_until_ready(ref)

    assert out.shape == (B, S, E)
    # bf16 matmul inputs in the kernel (and default-precision matmuls in the
    # reference) -> widened tolerance vs. an f32 'highest'-precision check.
    np.testing.assert_allclose(np.asarray(out), np.asarray(ref), atol=3e-2, rtol=3e-2)
    print("KERNEL_OK")
</pallas_src>

<mosaic_0001>
module attributes {stable_mosaic.version = 11 : i64} {
  func.func @encoder_layer_kernel(%arg0: i32, %arg1: i32, %arg2: memref<1x8x32xf32, #tpu.memory_space<vmem>>, %arg3: memref<12x32x128xbf16, #tpu.memory_space<vmem>>, %arg4: memref<12x1x128xf32, #tpu.memory_space<vmem>>, %arg5: memref<4x128x32xbf16, #tpu.memory_space<vmem>>, %arg6: memref<8x32xf32, #tpu.memory_space<vmem>>, %arg7: memref<32x2048xbf16, #tpu.memory_space<vmem>>, %arg8: memref<1x2048xf32, #tpu.memory_space<vmem>>, %arg9: memref<2048x32xbf16, #tpu.memory_space<vmem>>, %arg10: memref<1x8x32xf32, #tpu.memory_space<vmem>>, %arg11: memref<8x32xbf16, #tpu.memory_space<vmem>>, %arg12: memref<8x32xf32, #tpu.memory_space<vmem>>) attributes {dimension_semantics = [#tpu.dimension_semantics<parallel>, #tpu.dimension_semantics<arbitrary>], iteration_bounds = array<i64: 2, 1>, scalar_prefetch = 0 : i64, scratch_operands = 2 : i64, tpu.core_type = #tpu.core_type<tc>, window_params = [{transform_indices = @transform_0, window_bounds = array<i64: 1, 8, 32>}, {pipeline_mode = #tpu.pipeline_mode<synchronous>, transform_indices = @transform_1, window_bounds = array<i64: 12, 32, 128>}, {pipeline_mode = #tpu.pipeline_mode<synchronous>, transform_indices = @transform_2, window_bounds = array<i64: 12, 1, 128>}, {pipeline_mode = #tpu.pipeline_mode<synchronous>, transform_indices = @transform_3, window_bounds = array<i64: 4, 128, 32>}, {pipeline_mode = #tpu.pipeline_mode<synchronous>, transform_indices = @transform_4, window_bounds = array<i64: 8, 32>}, {transform_indices = @transform_5, window_bounds = array<i64: 32, 2048>}, {transform_indices = @transform_6, window_bounds = array<i64: 1, 2048>}, {transform_indices = @transform_7, window_bounds = array<i64: 2048, 32>}, {transform_indices = @transform_8, window_bounds = array<i64: 1, 8, 32>}]} {
    %c0_i32 = arith.constant 0 : i32
    %0 = arith.cmpi eq, %arg1, %c0_i32 : i32
    %1 = arith.extui %0 : i1 to i32
    %c0_i32_0 = arith.constant 0 : i32
    %2 = arith.cmpi ne, %1, %c0_i32_0 : i32
    scf.if %2 {
      %c0_16 = arith.constant 0 : index
      %c0_17 = arith.constant 0 : index
      %c0_18 = arith.constant 0 : index
      %20 = vector.load %arg2[%c0_16, %c0_17, %c0_18] : memref<1x8x32xf32, #tpu.memory_space<vmem>>, vector<1x8x32xf32>
      %21 = vector.shape_cast %20 : vector<1x8x32xf32> to vector<8x32xf32>
      %22 = arith.truncf %21 : vector<8x32xf32> to vector<8x32xbf16>
      %23 = vector.shape_cast %22 : vector<8x32xbf16> to vector<1x8x32xbf16>
      %24 = vector.shape_cast %23 : vector<1x8x32xbf16> to vector<1x8x32xbf16>
      %25 = vector.broadcast %24 : vector<1x8x32xbf16> to vector<12x8x32xbf16>
      %c0_19 = arith.constant 0 : index
      %c0_20 = arith.constant 0 : index
      %c0_21 = arith.constant 0 : index
      %26 = vector.load %arg3[%c0_19, %c0_20, %c0_21] : memref<12x32x128xbf16, #tpu.memory_space<vmem>>, vector<12x32x128xbf16>
      %cst_22 = arith.constant dense<0.000000e+00> : vector<12x8x128xf32>
      %27 = tpu.matmul %25, %26, %cst_22 {dimension_numbers = #tpu.dot_dimension_numbers<[2], [1], [1], [2], [0, 0, 0, 1, 1, 2], [0], [0]>} : vector<12x8x32xbf16>, vector<12x32x128xbf16>, vector<12x8x128xf32> -> vector<12x8x128xf32>
      %c0_23 = arith.constant 0 : index
      %c0_24 = arith.constant 0 : index
      %c0_25 = arith.constant 0 : index
      %28 = vector.load %arg4[%c0_23, %c0_24, %c0_25] : memref<12x1x128xf32, #tpu.memory_space<vmem>>, vector<12x1x128xf32>
      %29 = vector.broadcast %28 : vector<12x1x128xf32> to vector<12x8x128xf32>
      %30 = arith.addf %27, %29 : vector<12x8x128xf32>
      %31 = vector.extract_strided_slice %30 {offsets = [0, 0, 0], sizes = [4, 8, 128], strides = [1, 1, 1]} : vector<12x8x128xf32> to vector<4x8x128xf32>
      %32 = arith.truncf %31 : vector<4x8x128xf32> to vector<4x8x128xbf16>
      %33 = vector.extract_strided_slice %30 {offsets = [4, 0, 0], sizes = [4, 8, 128], strides = [1, 1, 1]} : vector<12x8x128xf32> to vector<4x8x128xf32>
      %34 = arith.truncf %33 : vector<4x8x128xf32> to vector<4x8x128xbf16>
      %35 = vector.extract_strided_slice %30 {offsets = [8, 0, 0], sizes = [4, 8, 128], strides = [1, 1, 1]} : vector<12x8x128xf32> to vector<4x8x128xf32>
      %36 = arith.truncf %35 : vector<4x8x128xf32> to vector<4x8x128xbf16>
      %cst_26 = arith.constant dense<0.000000e+00> : vector<4x8x8xf32>
      %37 = tpu.matmul %32, %34, %cst_26 {dimension_numbers = #tpu.dot_dimension_numbers<[2], [2], [1], [1], [0, 0, 0, 1, 1, 1], [0], [0]>} : vector<4x8x128xbf16>, vector<4x8x128xbf16>, vector<4x8x8xf32> -> vector<4x8x8xf32>
      %cst_27 = arith.constant dense<0xFF800000> : vector<4x8xf32>
      %38 = vector.multi_reduction <maximumf>, %37, %cst_27 [2] : vector<4x8x8xf32> to vector<4x8xf32>
      %39 = vector.shape_cast %38 : vector<4x8xf32> to vector<4x8x1xf32>
      %40 = vector.broadcast %39 : vector<4x8x1xf32> to vector<4x8x8xf32>
      %41 = arith.subf %37, %40 : vector<4x8x8xf32>
      %42 = math.exp %41 : vector<4x8x8xf32>
      %cst_28 = arith.constant dense<0.000000e+00> : vector<4x8xf32>
      %43 = vector.multi_reduction <add>, %42, %cst_28 [2] : vector<4x8x8xf32> to vector<4x8xf32>
      %44 = vector.shape_cast %43 : vector<4x8xf32> to vector<4x8x1xf32>
      %45 = tpu.reciprocal %44 {approx = true} : vector<4x8x1xf32> -> vector<4x8x1xf32>
      %46 = vector.broadcast %45 : vector<4x8x1xf32> to vector<4x8x8xf32>
      %47 = arith.mulf %42, %46 : vector<4x8x8xf32>
      %48 = arith.truncf %47 : vector<4x8x8xf32> to vector<4x8x8xbf16>
      %cst_29 = arith.constant dense<0.000000e+00> : vector<4x8x128xf32>
      %49 = tpu.matmul %48, %36, %cst_29 {dimension_numbers = #tpu.dot_dimension_numbers<[2], [1], [1], [2], [0, 0, 0, 1, 1, 2], [0], [0]>} : vector<4x8x8xbf16>, vector<4x8x128xbf16>, vector<4x8x128xf32> -> vector<4x8x128xf32>
      %50 = arith.truncf %49 : vector<4x8x128xf32> to vector<4x8x128xbf16>
      %c0_30 = arith.constant 0 : index
      %c0_31 = arith.constant 0 : index
      %c0_32 = arith.constant 0 : index
      %51 = vector.load %arg5[%c0_30, %c0_31, %c0_32] : memref<4x128x32xbf16, #tpu.memory_space<vmem>>, vector<4x128x32xbf16>
      %cst_33 = arith.constant dense<0.000000e+00> : vector<4x8x32xf32>
      %52 = tpu.matmul %50, %51, %cst_33 {dimension_numbers = #tpu.dot_dimension_numbers<[2], [1], [1], [2], [0, 0, 0, 1, 1, 2], [0], [0]>} : vector<4x8x128xbf16>, vector<4x128x32xbf16>, vector<4x8x32xf32> -> vector<4x8x32xf32>
      %cst_34 = arith.constant dense<0.000000e+00> : vector<8x32xf32>
      %53 = vector.multi_reduction <add>, %52, %cst_34 [0] : vector<4x8x32xf32> to vector<8x32xf32>
      %c4 = arith.constant 4 : index
      %c0_35 = arith.constant 0 : index
      %54 = vector.load %arg6[%c4, %c0_35] : memref<8x32xf32, #tpu.memory_space<vmem>>, vector<1x32xf32>
      %55 = vector.broadcast %54 : vector<1x32xf32> to vector<8x32xf32>
      %56 = arith.addf %53, %55 : vector<8x32xf32>
      %57 = arith.addf %21, %56 : vector<8x32xf32>
      %cst_36 = arith.constant dense<0.000000e+00> : vector<8xf32>
      %58 = vector.multi_reduction <add>, %57, %cst_36 [1] : vector<8x32xf32> to vector<8xf32>
      %59 = vector.shape_cast %58 : vector<8xf32> to vector<8x1xf32>
      %cst_37 = arith.constant 3.200000e+01 : f32
      %60 = vector.broadcast %cst_37 : f32 to vector<8x1xf32>
      %61 = arith.divf %59, %60 : vector<8x1xf32>
      %62 = vector.broadcast %61 : vector<8x1xf32> to vector<8x32xf32>
      %63 = arith.subf %57, %62 : vector<8x32xf32>
      %64 = arith.mulf %63, %63 : vector<8x32xf32>
      %cst_38 = arith.constant dense<0.000000e+00> : vector<8xf32>
      %65 = vector.multi_reduction <add>, %64, %cst_38 [1] : vector<8x32xf32> to vector<8xf32>
      %66 = vector.shape_cast %65 : vector<8xf32> to vector<8x1xf32>
      %cst_39 = arith.constant 3.200000e+01 : f32
      %67 = vector.broadcast %cst_39 : f32 to vector<8x1xf32>
      %68 = arith.divf %66, %67 : vector<8x1xf32>
      %69 = vector.broadcast %61 : vector<8x1xf32> to vector<8x32xf32>
      %70 = arith.subf %57, %69 : vector<8x32xf32>
      %cst_40 = arith.constant 9.99999974E-6 : f32
      %71 = vector.broadcast %cst_40 : f32 to vector<8x1xf32>
      %72 = arith.addf %68, %71 : vector<8x1xf32>
      %73 = math.rsqrt %72 : vector<8x1xf32>
      %74 = vector.broadcast %73 : vector<8x1xf32> to vector<8x32xf32>
      %75 = arith.mulf %70, %74 : vector<8x32xf32>
      %c0_41 = arith.constant 0 : index
      %c0_42 = arith.constant 0 : index
      %76 = vector.load %arg6[%c0_41, %c0_42] : memref<8x32xf32, #tpu.memory_space<vmem>>, vector<1x32xf32>
      %77 = vector.broadcast %76 : vector<1x32xf32> to vector<8x32xf32>
      %78 = arith.mulf %75, %77 : vector<8x32xf32>
      %c1 = arith.constant 1 : index
      %c0_43 = arith.constant 0 : index
      %79 = vector.load %arg6[%c1, %c0_43] : memref<8x32xf32, #tpu.memory_space<vmem>>, vector<1x32xf32>
      %80 = vector.broadcast %79 : vector<1x32xf32> to vector<8x32xf32>
      %81 = arith.addf %78, %80 : vector<8x32xf32>
      %82 = arith.truncf %81 : vector<8x32xf32> to vector<8x32xbf16>
      %c0_44 = arith.constant 0 : index
      %c0_45 = arith.constant 0 : index
      %83 = vector.load %arg11[%c0_44, %c0_45] : memref<8x32xbf16, #tpu.memory_space<vmem>>, vector<8x32xbf16>
      tpu.vector_store %arg11[%c0_44, %c0_45], %82 {strides = array<i32>} : memref<8x32xbf16, #tpu.memory_space<vmem>>, vector<8x32xbf16>,
      %c5 = arith.constant 5 : index
      %c0_46 = arith.constant 0 : index
      %84 = vector.load %arg6[%c5, %c0_46] : memref<8x32xf32, #tpu.memory_space<vmem>>, vector<1x32xf32>
      %85 = vector.broadcast %84 : vector<1x32xf32> to vector<8x32xf32>
      %86 = arith.addf %81, %85 : vector<8x32xf32>
      %c0_47 = arith.constant 0 : index
      %c0_48 = arith.constant 0 : index
      %87 = vector.load %arg12[%c0_47, %c0_48] : memref<8x32xf32, #tpu.memory_space<vmem>>, vector<8x32xf32>
      tpu.vector_store %arg12[%c0_47, %c0_48], %86 {strides = array<i32>} : memref<8x32xf32, #tpu.memory_space<vmem>>, vector<8x32xf32>,
    } else {
    }
    %c0 = arith.constant 0 : index
    %c0_1 = arith.constant 0 : index
    %3 = vector.load %arg11[%c0, %c0_1] : memref<8x32xbf16, #tpu.memory_space<vmem>>, vector<8x32xbf16>
    %c0_2 = arith.constant 0 : index
    %c0_3 = arith.constant 0 : index
    %4 = vector.load %arg7[%c0_2, %c0_3] : memref<32x2048xbf16, #tpu.memory_space<vmem>>, vector<32x2048xbf16>
    %cst = arith.constant dense<0.000000e+00> : vector<8x2048xf32>
    %5 = tpu.matmul %3, %4, %cst {dimension_numbers = #tpu.dot_dimension_numbers<[1], [0], [0], [1], [0, 0, 1, 1], [], []>} : vector<8x32xbf16>, vector<32x2048xbf16>, vector<8x2048xf32> -> vector<8x2048xf32>
    %c0_4 = arith.constant 0 : index
    %c0_5 = arith.constant 0 : index
    %6 = vector.load %arg8[%c0_4, %c0_5] : memref<1x2048xf32, #tpu.memory_space<vmem>>, vector<1x2048xf32>
    %7 = vector.broadcast %6 : vector<1x2048xf32> to vector<8x2048xf32>
    %8 = arith.addf %5, %7 : vector<8x2048xf32>
    %cst_6 = arith.constant 0.000000e+00 : f32
    %9 = vector.broadcast %cst_6 : f32 to vector<8x2048xf32>
    %10 = arith.maximumf %8, %9 : vector<8x2048xf32>
    %c0_7 = arith.constant 0 : index
    %c0_8 = arith.constant 0 : index
    %11 = vector.load %arg12[%c0_7, %c0_8] : memref<8x32xf32, #tpu.memory_space<vmem>>, vector<8x32xf32>
    %12 = arith.truncf %10 : vector<8x2048xf32> to vector<8x2048xbf16>
    %c0_9 = arith.constant 0 : index
    %c0_10 = arith.constant 0 : index
    %13 = vector.load %arg9[%c0_9, %c0_10] : memref<2048x32xbf16, #tpu.memory_space<vmem>>, vector<2048x32xbf16>
    %cst_11 = arith.constant dense<0.000000e+00> : vector<8x32xf32>
    %14 = tpu.matmul %12, %13, %cst_11 {dimension_numbers = #tpu.dot_dimension_numbers<[1], [0], [0], [1], [0, 0, 1, 1], [], []>} : vector<8x2048xbf16>, vector<2048x32xbf16>, vector<8x32xf32> -> vector<8x32xf32>
    %15 = arith.addf %11, %14 : vector<8x32xf32>
    %c0_12 = arith.constant 0 : index
    %c0_13 = arith.constant 0 : index
    %16 = vector.load %arg12[%c0_12, %c0_13] : memref<8x32xf32, #tpu.memory_space<vmem>>, vector<8x32xf32>
    tpu.vector_store %arg12[%c0_12, %c0_13], %15 {strides = array<i32>} : memref<8x32xf32, #tpu.memory_space<vmem>>, vector<8x32xf32>,
    %c0_i32_14 = arith.constant 0 : i32
    %17 = arith.cmpi eq, %arg1, %c0_i32_14 : i32
    %18 = arith.extui %17 : i1 to i32
    %c0_i32_15 = arith.constant 0 : i32
    %19 = arith.cmpi ne, %18, %c0_i32_15 : i32
    scf.if %19 {
      %c0_16 = arith.constant 0 : index
      %c0_17 = arith.constant 0 : index
      %20 = vector.load %arg12[%c0_16, %c0_17] : memref<8x32xf32, #tpu.memory_space<vmem>>, vector<8x32xf32>
      %cst_18 = arith.constant dense<0.000000e+00> : vector<8xf32>
      %21 = vector.multi_reduction <add>, %20, %cst_18 [1] : vector<8x32xf32> to vector<8xf32>
      %22 = vector.shape_cast %21 : vector<8xf32> to vector<8x1xf32>
      %cst_19 = arith.constant 3.200000e+01 : f32
      %23 = vector.broadcast %cst_19 : f32 to vector<8x1xf32>
      %24 = arith.divf %22, %23 : vector<8x1xf32>
      %25 = vector.broadcast %24 : vector<8x1xf32> to vector<8x32xf32>
      %26 = arith.subf %20, %25 : vector<8x32xf32>
      %27 = arith.mulf %26, %26 : vector<8x32xf32>
      %cst_20 = arith.constant dense<0.000000e+00> : vector<8xf32>
      %28 = vector.multi_reduction <add>, %27, %cst_20 [1] : vector<8x32xf32> to vector<8xf32>
      %29 = vector.shape_cast %28 : vector<8xf32> to vector<8x1xf32>
      %cst_21 = arith.constant 3.200000e+01 : f32
      %30 = vector.broadcast %cst_21 : f32 to vector<8x1xf32>
      %31 = arith.divf %29, %30 : vector<8x1xf32>
      %32 = vector.broadcast %24 : vector<8x1xf32> to vector<8x32xf32>
      %33 = arith.subf %20, %32 : vector<8x32xf32>
      %cst_22 = arith.constant 9.99999974E-6 : f32
      %34 = vector.broadcast %cst_22 : f32 to vector<8x1xf32>
      %35 = arith.addf %31, %34 : vector<8x1xf32>
      %36 = math.rsqrt %35 : vector<8x1xf32>
      %37 = vector.broadcast %36 : vector<8x1xf32> to vector<8x32xf32>
      %38 = arith.mulf %33, %37 : vector<8x32xf32>
      %c2 = arith.constant 2 : index
      %c0_23 = arith.constant 0 : index
      %39 = vector.load %arg6[%c2, %c0_23] : memref<8x32xf32, #tpu.memory_space<vmem>>, vector<1x32xf32>
      %40 = vector.broadcast %39 : vector<1x32xf32> to vector<8x32xf32>
      %41 = arith.mulf %38, %40 : vector<8x32xf32>
      %c3 = arith.constant 3 : index
      %c0_24 = arith.constant 0 : index
      %42 = vector.load %arg6[%c3, %c0_24] : memref<8x32xf32, #tpu.memory_space<vmem>>, vector<1x32xf32>
      %43 = vector.broadcast %42 : vector<1x32xf32> to vector<8x32xf32>
      %44 = arith.addf %41, %43 : vector<8x32xf32>
      %c0_25 = arith.constant 0 : index
      %c0_26 = arith.constant 0 : index
      %c0_27 = arith.constant 0 : index
      %45 = vector.load %arg10[%c0_25, %c0_26, %c0_27] : memref<1x8x32xf32, #tpu.memory_space<vmem>>, vector<1x8x32xf32>
      %46 = vector.shape_cast %45 : vector<1x8x32xf32> to vector<8x32xf32>
      %47 = vector.shape_cast %44 : vector<8x32xf32> to vector<1x8x32xf32>
      tpu.vector_store %arg10[%c0_25, %c0_26, %c0_27], %47 {strides = array<i32>} : memref<1x8x32xf32, #tpu.memory_space<vmem>>, vector<1x8x32xf32>,
    } else {
    }
    return
  }
  func.func @transform_0(%arg0: i32, %arg1: i32) -> (i32, i32, i32) {
    %c0_i32 = arith.constant 0 : i32
    %c0_i32_0 = arith.constant 0 : i32
    %c0_i32_1 = arith.constant 0 : i32
    return %arg0, %c0_i32, %c0_i32_0 : i32, i32, i32
  }
  func.func @transform_1(%arg0: i32, %arg1: i32) -> (i32, i32, i32) {
    %c0_i32 = arith.constant 0 : i32
    %c0_i32_0 = arith.constant 0 : i32
    %c0_i32_1 = arith.constant 0 : i32
    %c0_i32_2 = arith.constant 0 : i32
    return %c0_i32, %c0_i32_0, %c0_i32_1 : i32, i32, i32
  }
  func.func @transform_2(%arg0: i32, %arg1: i32) -> (i32, i32, i32) {
    %c0_i32 = arith.constant 0 : i32
    %c0_i32_0 = arith.constant 0 : i32
    %c0_i32_1 = arith.constant 0 : i32
    %c0_i32_2 = arith.constant 0 : i32
    return %c0_i32, %c0_i32_0, %c0_i32_1 : i32, i32, i32
  }
  func.func @transform_3(%arg0: i32, %arg1: i32) -> (i32, i32, i32) {
    %c0_i32 = arith.constant 0 : i32
    %c0_i32_0 = arith.constant 0 : i32
    %c0_i32_1 = arith.constant 0 : i32
    %c0_i32_2 = arith.constant 0 : i32
    return %c0_i32, %c0_i32_0, %c0_i32_1 : i32, i32, i32
  }
  func.func @transform_4(%arg0: i32, %arg1: i32) -> (i32, i32) {
    %c0_i32 = arith.constant 0 : i32
    %c0_i32_0 = arith.constant 0 : i32
    %c0_i32_1 = arith.constant 0 : i32
    return %c0_i32, %c0_i32_0 : i32, i32
  }
  func.func @transform_5(%arg0: i32, %arg1: i32) -> (i32, i32) {
    %c0_i32 = arith.constant 0 : i32
    %c0_i32_0 = arith.constant 0 : i32
    return %c0_i32, %arg1 : i32, i32
  }
  func.func @transform_6(%arg0: i32, %arg1: i32) -> (i32, i32) {
    %c0_i32 = arith.constant 0 : i32
    %c0_i32_0 = arith.constant 0 : i32
    return %c0_i32, %arg1 : i32, i32
  }
  func.func @transform_7(%arg0: i32, %arg1: i32) -> (i32, i32) {
    %c0_i32 = arith.constant 0 : i32
    %c0_i32_0 = arith.constant 0 : i32
    return %arg1, %c0_i32 : i32, i32
  }
  func.func @transform_8(%arg0: i32, %arg1: i32) -> (i32, i32, i32) {
    %c0_i32 = arith.constant 0 : i32
    %c0_i32_0 = arith.constant 0 : i32
    %c0_i32_1 = arith.constant 0 : i32
    return %arg0, %c0_i32, %c0_i32_0 : i32, i32, i32
  }
}

</mosaic_0001>

<llo_original>
// kernel: tpu_custom_call.1
$region0: #{tpu_custom_call.1}
  #allocation0 [shape = 'u32[]', space=smem, size = 0x4, offset = 0x4, fixed_abs, tag = 'smem constant byte address 0x4 - core index']
  #allocation1 [shape = 'u32[144,128]{1,0:T(1,128)}', space=vmem, size = 0x12000, scoped, tag = 'internal scratch']
  #allocation2 [shape = 'bf16[8,32]{1,0:T(8,128)(2,1)}', space=vmem, size = 0x800, scoped, tag = 'scratch operand']
  #allocation3 [shape = 'f32[8,32]{1,0:T(8,128)}', space=vmem, size = 0x1000, scoped, tag = 'scratch operand']
  %s0 = inlined_call_operand.vmem [shape: f32[2,8,32], index: 0, kind: input, shape index: {}]
  %s1 = inlined_call_operand.vmem [shape: bf16[12,32,128], index: 1, kind: input, shape index: {}]
  %s2 = inlined_call_operand.vmem [shape: f32[12,1,128], index: 2, kind: input, shape index: {}]
  %s3 = inlined_call_operand.vmem [shape: bf16[4,128,32], index: 3, kind: input, shape index: {}]
  %s4 = inlined_call_operand.vmem [shape: f32[8,32], index: 4, kind: input, shape index: {}]
  %s5 = inlined_call_operand.vmem [shape: bf16[32,2048], index: 5, kind: input, shape index: {}]
  %s6 = inlined_call_operand.vmem [shape: f32[1,2048], index: 6, kind: input, shape index: {}]
  %s7 = inlined_call_operand.vmem [shape: bf16[2048,32], index: 7, kind: input, shape index: {}]
  %s8 = inlined_call_operand.hbm [shape: f32[2,8,32], index: 8, kind: output, shape index: {}]
  %s9 = sld [smem:[#allocation0]]
  $region73: #{tpu_custom_call.1} parent=0
    _
  %s11 = ssub.s32 1, %s9
  %s12 = scalar_select 0, %s11, %s9
  $region1: #{tpu_custom_call.1} parent=0
    #allocation4 [shape = 'u8[8192]{0}', space=vmem, size = 0x2000, scoped, tag = 'output window, operand 0']
    #allocation5 [shape = 's32[2]{0}', space=sflag, size = 0x8, scoped, tag = 'scoped memory for tpu_custom_call.1']
    %13 = vsyncpa [#allocation5], 0
    %s14 = scalar_lea.sflag [#allocation5], 1
    %15 = vsyncpa %s14, 0
    loop: start=0, step=1, limit=4
    $region2: #{tpu_custom_call.1} parent=1 // loop_pre_header
      _
    $region3: #{tpu_custom_call.1} parent=1 // loop_header
      %s17 = sphi 0, %s21
      %p18 = scmp.ge.s32.totalorder %s17, 4
      %s24 = sphi 0, %s36
      %s25 = sphi 0, %s32
      %s26 = sphi 0, %s24
      %s27 = sphi 0, %s25
      %s28 = sphi 0, %s26
      %s29 = sphi 0, %s27
      %s39 = sphi 0, %s41
      %s42 = sphi 0, %s39
      %s43 = sphi 0, %s42
      %s59 = sphi 0, %s43
      %s63 = sphi 0, %s63
      %s65 = sphi 0, %s63
      %s66 = sphi 0, %s65
      %s80 = sphi 0, %s66
      %s84 = sphi 0, %s84
      %s86 = sphi 0, %s84
      %s87 = sphi 0, %s86
      %s101 = sphi 0, %s87
      %s105 = sphi 0, %s105
      %s107 = sphi 0, %s105
      %s108 = sphi 0, %s107
      %s122 = sphi 0, %s108
      %s126 = sphi 0, %s126
      %s128 = sphi 0, %s126
      %s129 = sphi 0, %s128
      %s143 = sphi 0, %s129
      %s149 = sphi 0, %s151
      %s152 = sphi 0, %s149
      %s153 = sphi 0, %s152
      %s169 = sphi 0, %s153
      %s175 = sphi 0, %s177
      %s178 = sphi 0, %s175
      %s179 = sphi 0, %s178
      %s195 = sphi 0, %s179
      %s201 = sphi 0, %s203
      %s204 = sphi 0, %s201
      %s205 = sphi 0, %s204
      %s221 = sphi 0, %s205
      %s227 = sphi 0, %s229
      %s230 = sphi 0, %s227
      %s231 = sphi 0, %s230
      %s247 = sphi 0, %s231
    $region4: #{tpu_custom_call.1} parent=1 // loop_header_branch
      %20 = sbr.rel (%p18) target = $region8
    $region5: #{tpu_custom_call.1} parent=1 // loop_body
      %s22 = ssub.s32 %s17, 1
      %s23 = ssub.s32 %s17, 2
      %s30 = sadd.s32 1, %s25
      %p31 = scmp.ge.s32.totalorder %s30, 1
      %s32 = scalar_select %p31, 0, %s30
      %s33 = sadd.s32 1, %s24
      %s34 = scalar_select %p31, %s33, %s24
      %p35 = scmp.ge.s32.totalorder %s34, 2
      %s36 = scalar_select %p35, 0, %s34
      %s37 = ssub.s32 %s24, %s36
      %p38 = scmp.eq.s32.totalorder %s37, 0
      %s40 = sadd.s32 %s39, 1
      %s41 = scalar_select %p38, %s39, %s40
      %p44 = pneg %p38
      %p45 = scmp.eq.s32.totalorder %s17, 1
      %p46 = por %p44, %p45
      %p47 = scmp.ne.s32.totalorder %s39, %s42
      %p48 = scmp.eq.s32.totalorder %s17, 0
      %p49 = por %p47, %p48
      %p50 = scmp.ne.s32.totalorder %s39, %s42
      %p51 = scmp.eq.s32.totalorder %s22, 1
      %p52 = por %p50, %p51
      %p53 = scmp.ne.s32.totalorder %s42, %s43
      %p54 = scmp.eq.s32.totalorder %s22, 0
      %p55 = por %p53, %p54
      %p56 = scmp.ne.s32.totalorder %s42, %s43
      %p57 = scmp.eq.s32.totalorder %s23, 1
      %p58 = por %p56, %p57
      %p60 = scmp.ne.s32.totalorder %s43, %s59
      %p61 = scmp.eq.s32.totalorder %s23, 0
      %p62 = por %p60, %p61
      %s64 = sadd.s32 %s63, 1
      %p67 = scmp.eq.s32.totalorder %s17, 1
      %p68 = scmp.ne.s32.totalorder %s63, %s65
      %p69 = scmp.eq.s32.totalorder %s17, 0
      %p70 = por %p68, %p69
      %p71 = scmp.ne.s32.totalorder %s63, %s65
      %p72 = scmp.eq.s32.totalorder %s22, 1
      %p73 = por %p71, %p72
      %p74 = scmp.ne.s32.totalorder %s65, %s66
      %p75 = scmp.eq.s32.totalorder %s22, 0
      %p76 = por %p74, %p75
      %p77 = scmp.ne.s32.totalorder %s65, %s66
      %p78 = scmp.eq.s32.totalorder %s23, 1
      %p79 = por %p77, %p78
      %p81 = scmp.ne.s32.totalorder %s66, %s80
      %p82 = scmp.eq.s32.totalorder %s23, 0
      %p83 = por %p81, %p82
      %s85 = sadd.s32 %s84, 1
      %p88 = scmp.eq.s32.totalorder %s17, 1
      %p89 = scmp.ne.s32.totalorder %s84, %s86
      %p90 = scmp.eq.s32.totalorder %s17, 0
      %p91 = por %p89, %p90
      %p92 = scmp.ne.s32.totalorder %s84, %s86
      %p93 = scmp.eq.s32.totalorder %s22, 1
      %p94 = por %p92, %p93
      %p95 = scmp.ne.s32.totalorder %s86, %s87
      %p96 = scmp.eq.s32.totalorder %s22, 0
      %p97 = por %p95, %p96
      %p98 = scmp.ne.s32.totalorder %s86, %s87
      %p99 = scmp.eq.s32.totalorder %s23, 1
      %p100 = por %p98, %p99
      %p102 = scmp.ne.s32.totalorder %s87, %s101
      %p103 = scmp.eq.s32.totalorder %s23, 0
      %p104 = por %p102, %p103
      %s106 = sadd.s32 %s105, 1
      %p109 = scmp.eq.s32.totalorder %s17, 1
      %p110 = scmp.ne.s32.totalorder %s105, %s107
      %p111 = scmp.eq.s32.totalorder %s17, 0
      %p112 = por %p110, %p111
      %p113 = scmp.ne.s32.totalorder %s105, %s107
      %p114 = scmp.eq.s32.totalorder %s22, 1
      %p115 = por %p113, %p114
      %p116 = scmp.ne.s32.totalorder %s107, %s108
      %p117 = scmp.eq.s32.totalorder %s22, 0
      %p118 = por %p116, %p117
      %p119 = scmp.ne.s32.totalorder %s107, %s108
      %p120 = scmp.eq.s32.totalorder %s23, 1
      %p121 = por %p119, %p120
      %p123 = scmp.ne.s32.totalorder %s108, %s122
      %p124 = scmp.eq.s32.totalorder %s23, 0
      %p125 = por %p123, %p124
      %s127 = sadd.s32 %s126, 1
      %p130 = scmp.eq.s32.totalorder %s17, 1
      %p131 = scmp.ne.s32.totalorder %s126, %s128
      %p132 = scmp.eq.s32.totalorder %s17, 0
      %p133 = por %p131, %p132
      %p134 = scmp.ne.s32.totalorder %s126, %s128
      %p135 = scmp.eq.s32.totalorder %s22, 1
      %p136 = por %p134, %p135
      %p137 = scmp.ne.s32.totalorder %s128, %s129
      %p138 = scmp.eq.s32.totalorder %s22, 0
      %p139 = por %p137, %p138
      %p140 = scmp.ne.s32.totalorder %s128, %s129
      %p141 = scmp.eq.s32.totalorder %s23, 1
      %p142 = por %p140, %p141
      %p144 = scmp.ne.s32.totalorder %s129, %s143
      %p145 = scmp.eq.s32.totalorder %s23, 0
      %p146 = por %p144, %p145
      %s147 = ssub.s32 %s25, %s32
      %p148 = scmp.eq.s32.totalorder %s147, 0
      %s150 = sadd.s32 %s149, 1
      %s151 = scalar_select %p148, %s149, %s150
      %p154 = pneg %p148
      %p155 = scmp.eq.s32.totalorder %s17, 1
      %p156 = por %p154, %p155
      %p157 = scmp.ne.s32.totalorder %s149, %s152
      %p158 = scmp.eq.s32.totalorder %s17, 0
      %p159 = por %p157, %p158
      %p160 = scmp.ne.s32.totalorder %s149, %s152
      %p161 = scmp.eq.s32.totalorder %s22, 1
      %p162 = por %p160, %p161
      %p163 = scmp.ne.s32.totalorder %s152, %s153
      %p164 = scmp.eq.s32.totalorder %s22, 0
      %p165 = por %p163, %p164
      %p166 = scmp.ne.s32.totalorder %s152, %s153
      %p167 = scmp.eq.s32.totalorder %s23, 1
      %p168 = por %p166, %p167
      %p170 = scmp.ne.s32.totalorder %s153, %s169
      %p171 = scmp.eq.s32.totalorder %s23, 0
      %p172 = por %p170, %p171
      %s173 = ssub.s32 %s25, %s32
      %p174 = scmp.eq.s32.totalorder %s173, 0
      %s176 = sadd.s32 %s175, 1
      %s177 = scalar_select %p174, %s175, %s176
      %p180 = pneg %p174
      %p181 = scmp.eq.s32.totalorder %s17, 1
      %p182 = por %p180, %p181
      %p183 = scmp.ne.s32.totalorder %s175, %s178
      %p184 = scmp.eq.s32.totalorder %s17, 0
      %p185 = por %p183, %p184
      %p186 = scmp.ne.s32.totalorder %s175, %s178
      %p187 = scmp.eq.s32.totalorder %s22, 1
      %p188 = por %p186, %p187
      %p189 = scmp.ne.s32.totalorder %s178, %s179
      %p190 = scmp.eq.s32.totalorder %s22, 0
      %p191 = por %p189, %p190
      %p192 = scmp.ne.s32.totalorder %s178, %s179
      %p193 = scmp.eq.s32.totalorder %s23, 1
      %p194 = por %p192, %p193
      %p196 = scmp.ne.s32.totalorder %s179, %s195
      %p197 = scmp.eq.s32.totalorder %s23, 0
      %p198 = por %p196, %p197
      %s199 = ssub.s32 %s25, %s32
      %p200 = scmp.eq.s32.totalorder %s199, 0
      %s202 = sadd.s32 %s201, 1
      %s203 = scalar_select %p200, %s201, %s202
      %p206 = pneg %p200
      %p207 = scmp.eq.s32.totalorder %s17, 1
      %p208 = por %p206, %p207
      %p209 = scmp.ne.s32.totalorder %s201, %s204
      %p210 = scmp.eq.s32.totalorder %s17, 0
      %p211 = por %p209, %p210
      %p212 = scmp.ne.s32.totalorder %s201, %s204
      %p213 = scmp.eq.s32.totalorder %s22, 1
      %p214 = por %p212, %p213
      %p215 = scmp.ne.s32.totalorder %s204, %s205
      %p216 = scmp.eq.s32.totalorder %s22, 0
      %p217 = por %p215, %p216
      %p218 = scmp.ne.s32.totalorder %s204, %s205
      %p219 = scmp.eq.s32.totalorder %s23, 1
      %p220 = por %p218, %p219
      %p222 = scmp.ne.s32.totalorder %s205, %s221
      %p223 = scmp.eq.s32.totalorder %s23, 0
      %p224 = por %p222, %p223
      %s225 = ssub.s32 %s24, %s36
      %p226 = scmp.eq.s32.totalorder %s225, 0
      %s228 = sadd.s32 %s227, 1
      %s229 = scalar_select %p226, %s227, %s228
      %p232 = pneg %p226
      %p233 = scmp.eq.s32.totalorder %s17, 1
      %p234 = por %p232, %p233
      %p235 = scmp.ne.s32.totalorder %s227, %s230
      %p236 = scmp.eq.s32.totalorder %s17, 0
      %p237 = por %p235, %p236
      %p238 = scmp.ne.s32.totalorder %s227, %s230
      %p239 = scmp.eq.s32.totalorder %s22, 1
      %p240 = por %p238, %p239
      %p241 = scmp.ne.s32.totalorder %s230, %s231
      %p242 = scmp.eq.s32.totalorder %s22, 0
      %p243 = por %p241, %p242
      %p244 = scmp.ne.s32.totalorder %s230, %s231
      %p245 = scmp.eq.s32.totalorder %s23, 1
      %p246 = por %p244, %p245
      %p248 = scmp.ne.s32.totalorder %s231, %s247
      %p249 = scmp.eq.s32.totalorder %s23, 0
      %p250 = por %p248, %p249
      %p251 = scmp.le.s32.totalorder 1, %s17
      %p252 = scmp.lt.s32.totalorder %s17, 3
      %p253 = pnand %p251, %p252
      %p254 = pneg %p253
      // Predicated region
      $region9: #{tpu_custom_call.1} parent=5 // pred_check
        _
      $region10: #{tpu_custom_call.1} parent=5 // pred_check_branch
        %256 = sbr.rel (%p253) target = $region12
      $region11: #{tpu_custom_call.1} parent=5 // pred_region
        %s257 = ssub.s32 %s17, 1
        // Predicated region
        $region13: #{tpu_custom_call.1} parent=11 // pred_check
          %p258 = pneg %p76
        $region14: #{tpu_custom_call.1} parent=11 // pred_check_branch
          %260 = sbr.rel (%p258) target = $region16
        $region15: #{tpu_custom_call.1} parent=11 // pred_region
          _
        $region16: #{tpu_custom_call.1} parent=11 // pred_fallthru
          _
        // Predicated region
        $region17: #{tpu_custom_call.1} parent=11 // pred_check
          %p261 = pneg %p97
        $region18: #{tpu_custom_call.1} parent=11 // pred_check_branch
          %263 = sbr.rel (%p261) target = $region20
        $region19: #{tpu_custom_call.1} parent=11 // pred_region
          _
        $region20: #{tpu_custom_call.1} parent=11 // pred_fallthru
          _
        // Predicated region
        $region21: #{tpu_custom_call.1} parent=11 // pred_check
          %p264 = pneg %p118
        $region22: #{tpu_custom_call.1} parent=11 // pred_check_branch
          %266 = sbr.rel (%p264) target = $region24
        $region23: #{tpu_custom_call.1} parent=11 // pred_region
          _
        $region24: #{tpu_custom_call.1} parent=11 // pred_fallthru
          _
        // Predicated region
        $region25: #{tpu_custom_call.1} parent=11 // pred_check
          %p267 = pneg %p139
        $region26: #{tpu_custom_call.1} parent=11 // pred_check_branch
          %269 = sbr.rel (%p267) target = $region28
        $region27: #{tpu_custom_call.1} parent=11 // pred_region
          _
        $region28: #{tpu_custom_call.1} parent=11 // pred_fallthru
          _
        // Predicated region
        $region29: #{tpu_custom_call.1} parent=11 // pred_check
          %p270 = pneg %p165
        $region30: #{tpu_custom_call.1} parent=11 // pred_check_branch
          %272 = sbr.rel (%p270) target = $region32
        $region31: #{tpu_custom_call.1} parent=11 // pred_region
          %s273 = smul.u32 16, %s27
          %p274 = scmp.lt.s32.totalorder %s273, 15
          %s275 = scalar_select %p274, %s273, 15
          %s276 = smul.addr %s275, 4
          %s277 = scalar_lea.vmem %s5, %s276
          %s278 = smul.u32 16, %s27
        $region32: #{tpu_custom_call.1} parent=11 // pred_fallthru
          _
        // Predicated region
        $region33: #{tpu_custom_call.1} parent=11 // pred_check
          %p279 = pneg %p191
        $region34: #{tpu_custom_call.1} parent=11 // pred_check_branch
          %281 = sbr.rel (%p279) target = $region36
        $region35: #{tpu_custom_call.1} parent=11 // pred_region
          %s282 = smul.u32 16, %s27
          %p283 = scmp.lt.s32.totalorder %s282, 15
          %s284 = scalar_select %p283, %s282, 15
          %s285 = scalar_lea.vmem %s6, %s284
          %s286 = smul.u32 16, %s27
        $region36: #{tpu_custom_call.1} parent=11 // pred_fallthru
          _
        // Predicated region
        $region37: #{tpu_custom_call.1} parent=11 // pred_check
          %p287 = pneg %p217
        $region38: #{tpu_custom_call.1} parent=11 // pred_check_branch
          %289 = sbr.rel (%p287) target = $region40
        $region39: #{tpu_custom_call.1} parent=11 // pred_region
          %s290 = smul.u32 256, %s27
          %p291 = scmp.lt.s32.totalorder %s290, 255
          %s292 = scalar_select %p291, %s290, 255
          %s293 = smul.addr %s292, 4
          %s294 = scalar_lea.vmem %s7, %s293
          %s295 = smul.u32 256, %s27
        $region40: #{tpu_custom_call.1} parent=11 // pred_fallthru
          _
      $region12: #{tpu_custom_call.1} parent=5 // pred_fallthru
        _
      %p296 = scmp.lt.s32.totalorder %s17, 2
      // Predicated region
      $region41: #{tpu_custom_call.1} parent=5 // pred_check
        %p297 = pneg %p296
      $region42: #{tpu_custom_call.1} parent=5 // pred_check_branch
        %299 = sbr.rel (%p297) target = $region44
      $region43: #{tpu_custom_call.1} parent=5 // pred_region
        // Predicated region
        $region45: #{tpu_custom_call.1} parent=43 // pred_check
          %p300 = pneg %p49
        $region46: #{tpu_custom_call.1} parent=43 // pred_check_branch
          %302 = sbr.rel (%p300) target = $region48
        $region47: #{tpu_custom_call.1} parent=43 // pred_region
          %p303 = scmp.lt.s32.totalorder %s24, 1
          %s304 = scalar_select %p303, %s24, 1
          %s305 = smul.addr %s304, 8
          %s306 = scalar_lea.vmem %s0, %s305
        $region48: #{tpu_custom_call.1} parent=43 // pred_fallthru
          _
      $region44: #{tpu_custom_call.1} parent=5 // pred_fallthru
        _
      %p307 = scmp.le.s32.totalorder 1, %s17
      %p308 = scmp.lt.s32.totalorder %s17, 3
      %p309 = pnand %p307, %p308
      %p310 = pneg %p309
      // Predicated region
      $region49: #{tpu_custom_call.1} parent=5 // pred_check
        _
      $region50: #{tpu_custom_call.1} parent=5 // pred_check_branch
        %312 = sbr.rel (%p309) target = $region52
      $region51: #{tpu_custom_call.1} parent=5 // pred_region
        %s313 = ssub.s32 %s17, 1
        %p314 = scmp.lt.s32.totalorder %s26, 1
        %s315 = scalar_select %p314, %s26, 1
        %s316 = smul.addr %s315, 8
        %s317 = scalar_lea.vmem %s0, %s316
        %p318 = pneg %p55
        %p319 = pneg %p52
        %p320 = pneg %p76
        %p321 = pneg %p73
        %p322 = pneg %p97
        %p323 = pneg %p94
        %p324 = pneg %p118
        %p325 = pneg %p115
        %p326 = pneg %p139
        %p327 = pneg %p136
        %s328 = smul.u32 16, %s27
        %p329 = scmp.lt.s32.totalorder %s328, 15
        %s330 = scalar_select %p329, %s328, 15
        %s331 = smul.addr %s330, 4
        %s332 = scalar_lea.vmem %s5, %s331
        %p333 = pneg %p165
        %p334 = pneg %p162
        %s335 = smul.u32 16, %s27
        %p336 = scmp.lt.s32.totalorder %s335, 15
        %s337 = scalar_select %p336, %s335, 15
        %s338 = scalar_lea.vmem %s6, %s337
        %p339 = pneg %p191
        %p340 = pneg %p188
        %s341 = smul.u32 256, %s27
        %p342 = scmp.lt.s32.totalorder %s341, 255
        %s343 = scalar_select %p342, %s341, 255
        %s344 = smul.addr %s343, 4
        %s345 = scalar_lea.vmem %s7, %s344
        %p346 = pneg %p217
        %p347 = pneg %p214
        %p348 = pneg %p243
        %p349 = pneg %p240
        %s350 = sand.u32 %s230, 1
        %s351 = scalar_lea.sflag [#allocation5], %s350
        %s352 = sand.u32 %s230, 1
        %s353 = smul.addr %s352, 8
        %s354 = scalar_lea.vmem [#allocation4], %s353
        %p355 = scmp.lt.s32.totalorder %s26, 1
        %s356 = scalar_select %p355, %s26, 1
        %s357 = smul.addr %s356, 8
        %s358 = scalar_lea.vmem %s0, %s357
        %s359 = smul.u32 16, %s27
        %p360 = scmp.lt.s32.totalorder %s359, 15
        %s361 = scalar_select %p360, %s359, 15
        %s362 = smul.addr %s361, 4
        %s363 = scalar_lea.vmem %s5, %s362
        %s364 = smul.u32 16, %s27
        %s365 = smul.u32 16, %s27
        %p366 = scmp.lt.s32.totalorder %s365, 15
        %s367 = scalar_select %p366, %s365, 15
        %s368 = scalar_lea.vmem %s6, %s367
        %s369 = smul.u32 16, %s27
        %s370 = smul.u32 256, %s27
        %p371 = scmp.lt.s32.totalorder %s370, 255
        %s372 = scalar_select %p371, %s370, 255
        %s373 = smul.addr %s372, 4
        %s374 = scalar_lea.vmem %s7, %s373
        %s375 = smul.u32 256, %s27
        %p377 = scmp.eq.s32.totalorder %s27, 0
        // Predicated region
        $region53: #{tpu_custom_call.1} parent=51 // pred_check
          %p378 = pneg %p377
        $region54: #{tpu_custom_call.1} parent=51 // pred_check_branch
          %380 = sbr.rel (%p378) target = $region56
        $region55: #{tpu_custom_call.1} parent=51 // pred_region
          %v381 = vld [vmem:[%s358] sm:$0xff]
          %v382 = vpack.c.bf16 %v381, %v381
          %v383 = vld [vmem:[%s1] sm:$0xf]
          %v384 = vld [vmem:[%s1 + $0x4] sm:$0xf]
          %v385 = vld [vmem:[%s1 + $0x8] sm:$0xf]
          %v386 = vld [vmem:[%s1 + $0xc] sm:$0xf]
          %v387 = vld [vmem:[%s1 + $0x10] sm:$0xf]
          %v388 = vld [vmem:[%s1 + $0x14] sm:$0xf]
          %v389 = vld [vmem:[%s1 + $0x18] sm:$0xf]
          %v390 = vld [vmem:[%s1 + $0x1c] sm:$0xf]
          %v391 = vld [vmem:[%s1 + $0x20] sm:$0xf]
          %v392 = vld [vmem:[%s1 + $0x24] sm:$0xf]
          %v393 = vld [vmem:[%s1 + $0x28] sm:$0xf]
          %v394 = vld [vmem:[%s1 + $0x2c] sm:$0xf]
          %v395 = vld [vmem:[%s1 + $0x30] sm:$0xf]
          %v396 = vld [vmem:[%s1 + $0x34] sm:$0xf]
          %v397 = vld [vmem:[%s1 + $0x38] sm:$0xf]
          %v398 = vld [vmem:[%s1 + $0x3c] sm:$0xf]
          %v399 = vld [vmem:[%s1 + $0x40] sm:$0xf]
          %v400 = vld [vmem:[%s1 + $0x44] sm:$0xf]
          %v401 = vld [vmem:[%s1 + $0x48] sm:$0xf]
          %v402 = vld [vmem:[%s1 + $0x4c] sm:$0xf]
          %v403 = vld [vmem:[%s1 + $0x50] sm:$0xf]
          %v404 = vld [vmem:[%s1 + $0x54] sm:$0xf]
          %v405 = vld [vmem:[%s1 + $0x58] sm:$0xf]
          %v406 = vld [vmem:[%s1 + $0x5c] sm:$0xf]
          %v407 = vld [vmem:[%s1 + $0x60] sm:$0xf]
          %v408 = vld [vmem:[%s1 + $0x64] sm:$0xf]
          %v409 = vld [vmem:[%s1 + $0x68] sm:$0xf]
          %v410 = vld [vmem:[%s1 + $0x6c] sm:$0xf]
          %v411 = vld [vmem:[%s1 + $0x70] sm:$0xf]
          %v412 = vld [vmem:[%s1 + $0x74] sm:$0xf]
          %v413 = vld [vmem:[%s1 + $0x78] sm:$0xf]
          %v414 = vld [vmem:[%s1 + $0x7c] sm:$0xf]
          %v415 = vld [vmem:[%s1 + $0x80] sm:$0xf]
          %v416 = vld [vmem:[%s1 + $0x84] sm:$0xf]
          %v417 = vld [vmem:[%s1 + $0x88] sm:$0xf]
          %v418 = vld [vmem:[%s1 + $0x8c] sm:$0xf]
          %v419 = vld [vmem:[%s1 + $0x90] sm:$0xf]
          %v420 = vld [vmem:[%s1 + $0x94] sm:$0xf]
          %v421 = vld [vmem:[%s1 + $0x98] sm:$0xf]
          %v422 = vld [vmem:[%s1 + $0x9c] sm:$0xf]
          %v423 = vld [vmem:[%s1 + $0xa0] sm:$0xf]
          %v424 = vld [vmem:[%s1 + $0xa4] sm:$0xf]
          %v425 = vld [vmem:[%s1 + $0xa8] sm:$0xf]
          %v426 = vld [vmem:[%s1 + $0xac] sm:$0xf]
          %v427 = vld [vmem:[%s1 + $0xb0] sm:$0xf]
          %v428 = vld [vmem:[%s1 + $0xb4] sm:$0xf]
          %v429 = vld [vmem:[%s1 + $0xb8] sm:$0xf]
          %v430 = vld [vmem:[%s1 + $0xbc] sm:$0xf]
          %v431 = vld [vmem:[%s2] sm:$0x1]
          %v432 = vld [vmem:[%s2 + $0x1] sm:$0x1]
          %v433 = vld [vmem:[%s2 + $0x2] sm:$0x1]
          %v434 = vld [vmem:[%s2 + $0x3] sm:$0x1]
          %v435 = vld [vmem:[%s2 + $0x4] sm:$0x1]
          %v436 = vld [vmem:[%s2 + $0x5] sm:$0x1]
          %v437 = vld [vmem:[%s2 + $0x6] sm:$0x1]
          %v438 = vld [vmem:[%s2 + $0x7] sm:$0x1]
          %v439 = vld [vmem:[%s2 + $0x8] sm:$0x1]
          %v440 = vld [vmem:[%s2 + $0x9] sm:$0x1]
          %v441 = vld [vmem:[%s2 + $0xa] sm:$0x1]
          %v442 = vld [vmem:[%s2 + $0xb] sm:$0x1]
          %v455 = vlaneseq
          %v456 = vshrl.u32 %v455, 7
          %v457 = vsub.s32 0, %v456
          %v458 = vrot.slane %v431, %v457
          %v459 = vlaneseq
          %v460 = vshrl.u32 %v459, 7
          %v461 = vsub.s32 0, %v460
          %v462 = vrot.slane %v432, %v461
          %v463 = vlaneseq
          %v464 = vshrl.u32 %v463, 7
          %v465 = vsub.s32 0, %v464
          %v466 = vrot.slane %v433, %v465
          %v467 = vlaneseq
          %v468 = vshrl.u32 %v467, 7
          %v469 = vsub.s32 0, %v468
          %v470 = vrot.slane %v434, %v469
          %v471 = vlaneseq
          %v472 = vshrl.u32 %v471, 7
          %v473 = vsub.s32 0, %v472
          %v474 = vrot.slane %v435, %v473
          %v475 = vlaneseq
          %v476 = vshrl.u32 %v475, 7
          %v477 = vsub.s32 0, %v476
          %v478 = vrot.slane %v436, %v477
          %v479 = vlaneseq
          %v480 = vshrl.u32 %v479, 7
          %v481 = vsub.s32 0, %v480
          %v482 = vrot.slane %v437, %v481
          %v483 = vlaneseq
          %v484 = vshrl.u32 %v483, 7
          %v485 = vsub.s32 0, %v484
          %v486 = vrot.slane %v438, %v485
          %v487 = vlaneseq
          %v488 = vshrl.u32 %v487, 7
          %v489 = vsub.s32 0, %v488
          %v490 = vrot.slane %v439, %v489
          %v491 = vlaneseq
          %v492 = vshrl.u32 %v491, 7
          %v493 = vsub.s32 0, %v492
          %v494 = vrot.slane %v440, %v493
          %v495 = vlaneseq
          %v496 = vshrl.u32 %v495, 7
          %v497 = vsub.s32 0, %v496
          %v498 = vrot.slane %v441, %v497
          %v499 = vlaneseq
          %v500 = vshrl.u32 %v499, 7
          %v501 = vsub.s32 0, %v500
          %v502 = vrot.slane %v442, %v501
          %v519 = vunpack.c.l.b16 %v383
          %v520 = vunpack.c.l.b16 %v384
          %v521 = vunpack.c.l.b16 %v385
          %v522 = vunpack.c.l.b16 %v386
          %v523 = vpack.c.b16 %v520, %v519
          %v524 = vpack.c.b16 %v522, %v521
          %vm527 = vcmask 261120
          %v529 = vsel %vm527, %v382, 0
          %531 = vmatprep.subr.bf16.mxu0 0
          %532 = vmatpush1.bf16.msra.mxu0 %v523
          %533 = vmatprep.subr.bf16.mxu0 0
          %534 = vmatpush1.bf16.msra.mxu0 %v524
          %535 = vmatprep.subr.bf16.mxu0 0
          %536 = vmatpush1.bf16.msra.mxu0 0
          %537 = vmatprep.subr.bf16.mxu0 0
          %538 = vmatpush1.bf16.msra.mxu0 0
          %539 = vmatprep.subr.bf16.mxu0 0
          %540 = vmatpush1.bf16.msra.mxu0 0
          %541 = vmatprep.subr.bf16.mxu0 0
          %542 = vmatpush1.bf16.msra.mxu0 0
          %543 = vmatprep.subr.bf16.mxu0 0
          %544 = vmatpush1.bf16.msra.mxu0 0
          %545 = vmatprep.subr.bf16.mxu0 0
          %546 = vmatpush1.bf16.msra.mxu0 0
          %547 = vmatprep.subr.bf16.mxu0 0
          %548 = vmatpush1.bf16.msra.mxu0 0
          %549 = vmatprep.subr.bf16.mxu0 0
          %550 = vmatpush1.bf16.msra.mxu0 0
          %551 = vmatprep.subr.bf16.mxu0 0
          %552 = vmatpush1.bf16.msra.mxu0 0
          %553 = vmatprep.subr.bf16.mxu0 0
          %554 = vmatpush1.bf16.msra.mxu0 0
          %555 = vmatprep.subr.bf16.mxu0 0
          %556 = vmatpush1.bf16.msra.mxu0 0
          %557 = vmatprep.subr.bf16.mxu0 0
          %558 = vmatpush1.bf16.msra.mxu0 0
          %559 = vmatprep.subr.bf16.mxu0 0
          %560 = vmatpush1.bf16.msra.mxu0 0
          %561 = vmatprep.subr.bf16.mxu0 0
          %562 = vmatpush1.bf16.msra.mxu0 0
          %563 = vmatprep.mubr.bf16.mxu0 0
          %564 = vmatmul.mubr.bf16.gmra.mrb[0].mxu0 %v529
          %v565 = vpop.f32.mrb[0].mxu0
          %v566 = vadd.f32 %v458, %v565
          %v567 = vpop.f32.mrb[0].mxu0
          %v568 = vpop.f32.mrb[0].mxu0
          %v569 = vpop.f32.mrb[0].mxu0
          %570 = vdwg.mxu0
          %v575 = vunpack.c.l.b16 %v387
          %v576 = vunpack.c.l.b16 %v388
          %v577 = vunpack.c.l.b16 %v389
          %v578 = vunpack.c.l.b16 %v390
          %v579 = vpack.c.b16 %v576, %v575
          %v580 = vpack.c.b16 %v578, %v577
          %583 = vmatprep.subr.bf16.mxu0 0
          %584 = vmatpush1.bf16.msra.mxu0 %v579
          %585 = vmatprep.subr.bf16.mxu0 0
          %586 = vmatpush1.bf16.msra.mxu0 %v580
          %587 = vmatprep.subr.bf16.mxu0 0
          %588 = vmatpush1.bf16.msra.mxu0 0
          %589 = vmatprep.subr.bf16.mxu0 0
          %590 = vmatpush1.bf16.msra.mxu0 0
          %591 = vmatprep.subr.bf16.mxu0 0
          %592 = vmatpush1.bf16.msra.mxu0 0
          %593 = vmatprep.subr.bf16.mxu0 0
          %594 = vmatpush1.bf16.msra.mxu0 0
          %595 = vmatprep.subr.bf16.mxu0 0
          %596 = vmatpush1.bf16.msra.mxu0 0
          %597 = vmatprep.subr.bf16.mxu0 0
          %598 = vmatpush1.bf16.msra.mxu0 0
          %599 = vmatprep.subr.bf16.mxu0 0
          %600 = vmatpush1.bf16.msra.mxu0 0
          %601 = vmatprep.subr.bf16.mxu0 0
          %602 = vmatpush1.bf16.msra.mxu0 0
          %603 = vmatprep.subr.bf16.mxu0 0
          %604 = vmatpush1.bf16.msra.mxu0 0
          %605 = vmatprep.subr.bf16.mxu0 0
          %606 = vmatpush1.bf16.msra.mxu0 0
          %607 = vmatprep.subr.bf16.mxu0 0
          %608 = vmatpush1.bf16.msra.mxu0 0
          %609 = vmatprep.subr.bf16.mxu0 0
          %610 = vmatpush1.bf16.msra.mxu0 0
          %611 = vmatprep.subr.bf16.mxu0 0
          %612 = vmatpush1.bf16.msra.mxu0 0
          %613 = vmatprep.subr.bf16.mxu0 0
          %614 = vmatpush1.bf16.msra.mxu0 0
          %615 = vmatprep.mubr.bf16.mxu0 0
          %616 = vmatmul.mubr.bf16.gmra.mrb[0].mxu0 %v529
          %v617 = vpop.f32.mrb[0].mxu0
          %v618 = vadd.f32 %v462, %v617
          %v619 = vpop.f32.mrb[0].mxu0
          %v620 = vpop.f32.mrb[0].mxu0
          %v621 = vpop.f32.mrb[0].mxu0
          %622 = vdwg.mxu0
          %v627 = vunpack.c.l.b16 %v391
          %v628 = vunpack.c.l.b16 %v392
          %v629 = vunpack.c.l.b16 %v393
          %v630 = vunpack.c.l.b16 %v394
          %v631 = vpack.c.b16 %v628, %v627
          %v632 = vpack.c.b16 %v630, %v629
          %635 = vmatprep.subr.bf16.mxu0 0
          %636 = vmatpush1.bf16.msra.mxu0 %v631
          %637 = vmatprep.subr.bf16.mxu0 0
          %638 = vmatpush1.bf16.msra.mxu0 %v632
          %639 = vmatprep.subr.bf16.mxu0 0
          %640 = vmatpush1.bf16.msra.mxu0 0
          %641 = vmatprep.subr.bf16.mxu0 0
          %642 = vmatpush1.bf16.msra.mxu0 0
          %643 = vmatprep.subr.bf16.mxu0 0
          %644 = vmatpush1.bf16.msra.mxu0 0
          %645 = vmatprep.subr.bf16.mxu0 0
          %646 = vmatpush1.bf16.msra.mxu0 0
          %647 = vmatprep.subr.bf16.mxu0 0
          %648 = vmatpush1.bf16.msra.mxu0 0
          %649 = vmatprep.subr.bf16.mxu0 0
          %650 = vmatpush1.bf16.msra.mxu0 0
          %651 = vmatprep.subr.bf16.mxu0 0
          %652 = vmatpush1.bf16.msra.mxu0 0
          %653 = vmatprep.subr.bf16.mxu0 0
          %654 = vmatpush1.bf16.msra.mxu0 0
          %655 = vmatprep.subr.bf16.mxu0 0
          %656 = vmatpush1.bf16.msra.mxu0 0
          %657 = vmatprep.subr.bf16.mxu0 0
          %658 = vmatpush1.bf16.msra.mxu0 0
          %659 = vmatprep.subr.bf16.mxu0 0
          %660 = vmatpush1.bf16.msra.mxu0 0
          %661 = vmatprep.subr.bf16.mxu0 0
          %662 = vmatpush1.bf16.msra.mxu0 0
          %663 = vmatprep.subr.bf16.mxu0 0
          %664 = vmatpush1.bf16.msra.mxu0 0
          %665 = vmatprep.subr.bf16.mxu0 0
          %666 = vmatpush1.bf16.msra.mxu0 0
          %667 = vmatprep.mubr.bf16.mxu0 0
          %668 = vmatmul.mubr.bf16.gmra.mrb[0].mxu0 %v529
          %v669 = vpop.f32.mrb[0].mxu0
          %v670 = vadd.f32 %v466, %v669
          %v671 = vpop.f32.mrb[0].mxu0
          %v672 = vpop.f32.mrb[0].mxu0
          %v673 = vpop.f32.mrb[0].mxu0
          %674 = vdwg.mxu0
          %v679 = vunpack.c.l.b16 %v395
          %v680 = vunpack.c.l.b16 %v396
          %v681 = vunpack.c.l.b16 %v397
          %v682 = vunpack.c.l.b16 %v398
          %v683 = vpack.c.b16 %v680, %v679
          %v684 = vpack.c.b16 %v682, %v681
          %687 = vmatprep.subr.bf16.mxu0 0
          %688 = vmatpush1.bf16.msra.mxu0 %v683
          %689 = vmatprep.subr.bf16.mxu0 0
          %690 = vmatpush1.bf16.msra.mxu0 %v684
          %691 = vmatprep.subr.bf16.mxu0 0
          %692 = vmatpush1.bf16.msra.mxu0 0
          %693 = vmatprep.subr.bf16.mxu0 0
          %694 = vmatpush1.bf16.msra.mxu0 0
          %695 = vmatprep.subr.bf16.mxu0 0
          %696 = vmatpush1.bf16.msra.mxu0 0
          %697 = vmatprep.subr.bf16.mxu0 0
          %698 = vmatpush1.bf16.msra.mxu0 0
          %699 = vmatprep.subr.bf16.mxu0 0
          %700 = vmatpush1.bf16.msra.mxu0 0
          %701 = vmatprep.subr.bf16.mxu0 0
          %702 = vmatpush1.bf16.msra.mxu0 0
          %703 = vmatprep.subr.bf16.mxu0 0
          %704 = vmatpush1.bf16.msra.mxu0 0
          %705 = vmatprep.subr.bf16.mxu0 0
          %706 = vmatpush1.bf16.msra.mxu0 0
          %707 = vmatprep.subr.bf16.mxu0 0
          %708 = vmatpush1.bf16.msra.mxu0 0
          %709 = vmatprep.subr.bf16.mxu0 0
          %710 = vmatpush1.bf16.msra.mxu0 0
          %711 = vmatprep.subr.bf16.mxu0 0
          %712 = vmatpush1.bf16.msra.mxu0 0
          %713 = vmatprep.subr.bf16.mxu0 0
          %714 = vmatpush1.bf16.msra.mxu0 0
          %715 = vmatprep.subr.bf16.mxu0 0
          %716 = vmatpush1.bf16.msra.mxu0 0
          %717 = vmatprep.subr.bf16.mxu0 0
          %718 = vmatpush1.bf16.msra.mxu0 0
          %719 = vmatprep.mubr.bf16.mxu0 0
          %720 = vmatmul.mubr.bf16.gmra.mrb[0].mxu0 %v529
          %v721 = vpop.f32.mrb[0].mxu0
          %v722 = vadd.f32 %v470, %v721
          %v723 = vpop.f32.mrb[0].mxu0
          %v724 = vpop.f32.mrb[0].mxu0
          %v725 = vpop.f32.mrb[0].mxu0
          %726 = vdwg.mxu0
          %v731 = vunpack.c.l.b16 %v399
          %v732 = vunpack.c.l.b16 %v400
          %v733 = vunpack.c.l.b16 %v401
          %v734 = vunpack.c.l.b16 %v402
          %v735 = vpack.c.b16 %v732, %v731
          %v736 = vpack.c.b16 %v734, %v733
          %739 = vmatprep.subr.bf16.mxu0 0
          %740 = vmatpush1.bf16.msra.mxu0 %v735
          %741 = vmatprep.subr.bf16.mxu0 0
          %742 = vmatpush1.bf16.msra.mxu0 %v736
          %743 = vmatprep.subr.bf16.mxu0 0
          %744 = vmatpush1.bf16.msra.mxu0 0
          %745 = vmatprep.subr.bf16.mxu0 0
          %746 = vmatpush1.bf16.msra.mxu0 0
          %747 = vmatprep.subr.bf16.mxu0 0
          %748 = vmatpush1.bf16.msra.mxu0 0
          %749 = vmatprep.subr.bf16.mxu0 0
          %750 = vmatpush1.bf16.msra.mxu0 0
          %751 = vmatprep.subr.bf16.mxu0 0
          %752 = vmatpush1.bf16.msra.mxu0 0
          %753 = vmatprep.subr.bf16.mxu0 0
          %754 = vmatpush1.bf16.msra.mxu0 0
          %755 = vmatprep.subr.bf16.mxu0 0
          %756 = vmatpush1.bf16.msra.mxu0 0
          %757 = vmatprep.subr.bf16.mxu0 0
          %758 = vmatpush1.bf16.msra.mxu0 0
          %759 = vmatprep.subr.bf16.mxu0 0
          %760 = vmatpush1.bf16.msra.mxu0 0
          %761 = vmatprep.subr.bf16.mxu0 0
          %762 = vmatpush1.bf16.msra.mxu0 0
          %763 = vmatprep.subr.bf16.mxu0 0
          %764 = vmatpush1.bf16.msra.mxu0 0
          %765 = vmatprep.subr.bf16.mxu0 0
          %766 = vmatpush1.bf16.msra.mxu0 0
          %767 = vmatprep.subr.bf16.mxu0 0
          %768 = vmatpush1.bf16.msra.mxu0 0
          %769 = vmatprep.subr.bf16.mxu0 0
          %770 = vmatpush1.bf16.msra.mxu0 0
          %771 = vmatprep.mubr.bf16.mxu0 0
          %772 = vmatmul.mubr.bf16.gmra.mrb[0].mxu0 %v529
          %v773 = vpop.f32.mrb[0].mxu0
          %v774 = vadd.f32 %v474, %v773
          %v775 = vpop.f32.mrb[0].mxu0
          %v776 = vpop.f32.mrb[0].mxu0
          %v777 = vpop.f32.mrb[0].mxu0
          %778 = vdwg.mxu0
          %v783 = vunpack.c.l.b16 %v403
          %v784 = vunpack.c.l.b16 %v404
          %v785 = vunpack.c.l.b16 %v405
          %v786 = vunpack.c.l.b16 %v406
          %v787 = vpack.c.b16 %v784, %v783
          %v788 = vpack.c.b16 %v786, %v785
          %791 = vmatprep.subr.bf16.mxu0 0
          %792 = vmatpush1.bf16.msra.mxu0 %v787
          %793 = vmatprep.subr.bf16.mxu0 0
          %794 = vmatpush1.bf16.msra.mxu0 %v788
          %795 = vmatprep.subr.bf16.mxu0 0
          %796 = vmatpush1.bf16.msra.mxu0 0
          %797 = vmatprep.subr.bf16.mxu0 0
          %798 = vmatpush1.bf16.msra.mxu0 0
          %799 = vmatprep.subr.bf16.mxu0 0
          %800 = vmatpush1.bf16.msra.mxu0 0
          %801 = vmatprep.subr.bf16.mxu0 0
          %802 = vmatpush1.bf16.msra.mxu0 0
          %803 = vmatprep.subr.bf16.mxu0 0
          %804 = vmatpush1.bf16.msra.mxu0 0
          %805 = vmatprep.subr.bf16.mxu0 0
          %806 = vmatpush1.bf16.msra.mxu0 0
          %807 = vmatprep.subr.bf16.mxu0 0
          %808 = vmatpush1.bf16.msra.mxu0 0
          %809 = vmatprep.subr.bf16.mxu0 0
          %810 = vmatpush1.bf16.msra.mxu0 0
          %811 = vmatprep.subr.bf16.mxu0 0
          %812 = vmatpush1.bf16.msra.mxu0 0
          %813 = vmatprep.subr.bf16.mxu0 0
          %814 = vmatpush1.bf16.msra.mxu0 0
          %815 = vmatprep.subr.bf16.mxu0 0
          %816 = vmatpush1.bf16.msra.mxu0 0
          %817 = vmatprep.subr.bf16.mxu0 0
          %818 = vmatpush1.bf16.msra.mxu0 0
          %819 = vmatprep.subr.bf16.mxu0 0
          %820 = vmatpush1.bf16.msra.mxu0 0
          %821 = vmatprep.subr.bf16.mxu0 0
          %822 = vmatpush1.bf16.msra.mxu0 0
          %823 = vmatprep.mubr.bf16.mxu0 0
          %824 = vmatmul.mubr.bf16.gmra.mrb[0].mxu0 %v529
          %v825 = vpop.f32.mrb[0].mxu0
          %v826 = vadd.f32 %v478, %v825
          %v827 = vpop.f32.mrb[0].mxu0
          %v828 = vpop.f32.mrb[0].mxu0
          %v829 = vpop.f32.mrb[0].mxu0
          %830 = vdwg.mxu0
          %v835 = vunpack.c.l.b16 %v407
          %v836 = vunpack.c.l.b16 %v408
          %v837 = vunpack.c.l.b16 %v409
          %v838 = vunpack.c.l.b16 %v410
          %v839 = vpack.c.b16 %v836, %v835
          %v840 = vpack.c.b16 %v838, %v837
          %843 = vmatprep.subr.bf16.mxu0 0
          %844 = vmatpush1.bf16.msra.mxu0 %v839
          %845 = vmatprep.subr.bf16.mxu0 0
          %846 = vmatpush1.bf16.msra.mxu0 %v840
          %847 = vmatprep.subr.bf16.mxu0 0
          %848 = vmatpush1.bf16.msra.mxu0 0
          %849 = vmatprep.subr.bf16.mxu0 0
          %850 = vmatpush1.bf16.msra.mxu0 0
          %851 = vmatprep.subr.bf16.mxu0 0
          %852 = vmatpush1.bf16.msra.mxu0 0
          %853 = vmatprep.subr.bf16.mxu0 0
          %854 = vmatpush1.bf16.msra.mxu0 0
          %855 = vmatprep.subr.bf16.mxu0 0
          %856 = vmatpush1.bf16.msra.mxu0 0
          %857 = vmatprep.subr.bf16.mxu0 0
          %858 = vmatpush1.bf16.msra.mxu0 0
          %859 = vmatprep.subr.bf16.mxu0 0
          %860 = vmatpush1.bf16.msra.mxu0 0
          %861 = vmatprep.subr.bf16.mxu0 0
          %862 = vmatpush1.bf16.msra.mxu0 0
          %863 = vmatprep.subr.bf16.mxu0 0
          %864 = vmatpush1.bf16.msra.mxu0 0
          %865 = vmatprep.subr.bf16.mxu0 0
          %866 = vmatpush1.bf16.msra.mxu0 0
          %867 = vmatprep.subr.bf16.mxu0 0
          %868 = vmatpush1.bf16.msra.mxu0 0
          %869 = vmatprep.subr.bf16.mxu0 0
          %870 = vmatpush1.bf16.msra.mxu0 0
          %871 = vmatprep.subr.bf16.mxu0 0
          %872 = vmatpush1.bf16.msra.mxu0 0
          %873 = vmatprep.subr.bf16.mxu0 0
          %874 = vmatpush1.bf16.msra.mxu0 0
          %875 = vmatprep.mubr.bf16.mxu0 0
          %876 = vmatmul.mubr.bf16.gmra.mrb[0].mxu0 %v529
          %v877 = vpop.f32.mrb[0].mxu0
          %v878 = vadd.f32 %v482, %v877
          %v879 = vpop.f32.mrb[0].mxu0
          %v880 = vpop.f32.mrb[0].mxu0
          %v881 = vpop.f32.mrb[0].mxu0
          %882 = vdwg.mxu0
          %v887 = vunpack.c.l.b16 %v411
          %v888 = vunpack.c.l.b16 %v412
          %v889 = vunpack.c.l.b16 %v413
          %v890 = vunpack.c.l.b16 %v414
          %v891 = vpack.c.b16 %v888, %v887
          %v892 = vpack.c.b16 %v890, %v889
          %895 = vmatprep.subr.bf16.mxu0 0
          %896 = vmatpush1.bf16.msra.mxu0 %v891
          %897 = vmatprep.subr.bf16.mxu0 0
          %898 = vmatpush1.bf16.msra.mxu0 %v892
          %899 = vmatprep.subr.bf16.mxu0 0
          %900 = vmatpush1.bf16.msra.mxu0 0
          %901 = vmatprep.subr.bf16.mxu0 0
          %902 = vmatpush1.bf16.msra.mxu0 0
          %903 = vmatprep.subr.bf16.mxu0 0
          %904 = vmatpush1.bf16.msra.mxu0 0
          %905 = vmatprep.subr.bf16.mxu0 0
          %906 = vmatpush1.bf16.msra.mxu0 0
          %907 = vmatprep.subr.bf16.mxu0 0
          %908 = vmatpush1.bf16.msra.mxu0 0
          %909 = vmatprep.subr.bf16.mxu0 0
          %910 = vmatpush1.bf16.msra.mxu0 0
          %911 = vmatprep.subr.bf16.mxu0 0
          %912 = vmatpush1.bf16.msra.mxu0 0
          %913 = vmatprep.subr.bf16.mxu0 0
          %914 = vmatpush1.bf16.msra.mxu0 0
          %915 = vmatprep.subr.bf16.mxu0 0
          %916 = vmatpush1.bf16.msra.mxu0 0
          %917 = vmatprep.subr.bf16.mxu0 0
          %918 = vmatpush1.bf16.msra.mxu0 0
          %919 = vmatprep.subr.bf16.mxu0 0
          %920 = vmatpush1.bf16.msra.mxu0 0
          %921 = vmatprep.subr.bf16.mxu0 0
          %922 = vmatpush1.bf16.msra.mxu0 0
          %923 = vmatprep.subr.bf16.mxu0 0
          %924 = vmatpush1.bf16.msra.mxu0 0
          %925 = vmatprep.subr.bf16.mxu0 0
          %926 = vmatpush1.bf16.msra.mxu0 0
          %927 = vmatprep.mubr.bf16.mxu0 0
          %928 = vmatmul.mubr.bf16.gmra.mrb[0].mxu0 %v529
          %v929 = vpop.f32.mrb[0].mxu0
          %v930 = vadd.f32 %v486, %v929
          %v931 = vpop.f32.mrb[0].mxu0
          %v932 = vpop.f32.mrb[0].mxu0
          %v933 = vpop.f32.mrb[0].mxu0
          %934 = vdwg.mxu0
          %v939 = vunpack.c.l.b16 %v415
          %v940 = vunpack.c.l.b16 %v416
          %v941 = vunpack.c.l.b16 %v417
          %v942 = vunpack.c.l.b16 %v418
          %v943 = vpack.c.b16 %v940, %v939
          %v944 = vpack.c.b16 %v942, %v941
          %947 = vmatprep.subr.bf16.mxu0 0
          %948 = vmatpush1.bf16.msra.mxu0 %v943
          %949 = vmatprep.subr.bf16.mxu0 0
          %950 = vmatpush1.bf16.msra.mxu0 %v944
          %951 = vmatprep.subr.bf16.mxu0 0
          %952 = vmatpush1.bf16.msra.mxu0 0
          %953 = vmatprep.subr.bf16.mxu0 0
          %954 = vmatpush1.bf16.msra.mxu0 0
          %955 = vmatprep.subr.bf16.mxu0 0
          %956 = vmatpush1.bf16.msra.mxu0 0
          %957 = vmatprep.subr.bf16.mxu0 0
          %958 = vmatpush1.bf16.msra.mxu0 0
          %959 = vmatprep.subr.bf16.mxu0 0
          %960 = vmatpush1.bf16.msra.mxu0 0
          %961 = vmatprep.subr.bf16.mxu0 0
          %962 = vmatpush1.bf16.msra.mxu0 0
          %963 = vmatprep.subr.bf16.mxu0 0
          %964 = vmatpush1.bf16.msra.mxu0 0
          %965 = vmatprep.subr.bf16.mxu0 0
          %966 = vmatpush1.bf16.msra.mxu0 0
          %967 = vmatprep.subr.bf16.mxu0 0
          %968 = vmatpush1.bf16.msra.mxu0 0
          %969 = vmatprep.subr.bf16.mxu0 0
          %970 = vmatpush1.bf16.msra.mxu0 0
          %971 = vmatprep.subr.bf16.mxu0 0
          %972 = vmatpush1.bf16.msra.mxu0 0
          %973 = vmatprep.subr.bf16.mxu0 0
          %974 = vmatpush1.bf16.msra.mxu0 0
          %975 = vmatprep.subr.bf16.mxu0 0
          %976 = vmatpush1.bf16.msra.mxu0 0
          %977 = vmatprep.subr.bf16.mxu0 0
          %978 = vmatpush1.bf16.msra.mxu0 0
          %979 = vmatprep.mubr.bf16.mxu0 0
          %980 = vmatmul.mubr.bf16.gmra.mrb[0].mxu0 %v529
          %v981 = vpop.f32.mrb[0].mxu0
          %v982 = vadd.f32 %v490, %v981
          %v983 = vpop.f32.mrb[0].mxu0
          %v984 = vpop.f32.mrb[0].mxu0
          %v985 = vpop.f32.mrb[0].mxu0
          %986 = vdwg.mxu0
          %v991 = vunpack.c.l.b16 %v419
          %v992 = vunpack.c.l.b16 %v420
          %v993 = vunpack.c.l.b16 %v421
          %v994 = vunpack.c.l.b16 %v422
          %v995 = vpack.c.b16 %v992, %v991
          %v996 = vpack.c.b16 %v994, %v993
          %999 = vmatprep.subr.bf16.mxu0 0
          %1000 = vmatpush1.bf16.msra.mxu0 %v995
          %1001 = vmatprep.subr.bf16.mxu0 0
          %1002 = vmatpush1.bf16.msra.mxu0 %v996
          %1003 = vmatprep.subr.bf16.mxu0 0
          %1004 = vmatpush1.bf16.msra.mxu0 0
          %1005 = vmatprep.subr.bf16.mxu0 0
          %1006 = vmatpush1.bf16.msra.mxu0 0
          %1007 = vmatprep.subr.bf16.mxu0 0
          %1008 = vmatpush1.bf16.msra.mxu0 0
          %1009 = vmatprep.subr.bf16.mxu0 0
          %1010 = vmatpush1.bf16.msra.mxu0 0
          %1011 = vmatprep.subr.bf16.mxu0 0
          %1012 = vmatpush1.bf16.msra.mxu0 0
          %1013 = vmatprep.subr.bf16.mxu0 0
          %1014 = vmatpush1.bf16.msra.mxu0 0
          %1015 = vmatprep.subr.bf16.mxu0 0
          %1016 = vmatpush1.bf16.msra.mxu0 0
          %1017 = vmatprep.subr.bf16.mxu0 0
          %1018 = vmatpush1.bf16.msra.mxu0 0
          %1019 = vmatprep.subr.bf16.mxu0 0
          %1020 = vmatpush1.bf16.msra.mxu0 0
          %1021 = vmatprep.subr.bf16.mxu0 0
          %1022 = vmatpush1.bf16.msra.mxu0 0
          %1023 = vmatprep.subr.bf16.mxu0 0
          %1024 = vmatpush1.bf16.msra.mxu0 0
          %1025 = vmatprep.subr.bf16.mxu0 0
          %1026 = vmatpush1.bf16.msra.mxu0 0
          %1027 = vmatprep.subr.bf16.mxu0 0
          %1028 = vmatpush1.bf16.msra.mxu0 0
          %1029 = vmatprep.subr.bf16.mxu0 0
          %1030 = vmatpush1.bf16.msra.mxu0 0
          %1031 = vmatprep.mubr.bf16.mxu0 0
          %1032 = vmatmul.mubr.bf16.gmra.mrb[0].mxu0 %v529
          %v1033 = vpop.f32.mrb[0].mxu0
          %v1034 = vadd.f32 %v494, %v1033
          %v1035 = vpop.f32.mrb[0].mxu0
          %v1036 = vpop.f32.mrb[0].mxu0
          %v1037 = vpop.f32.mrb[0].mxu0
          %1038 = vdwg.mxu0
          %v1043 = vunpack.c.l.b16 %v423
          %v1044 = vunpack.c.l.b16 %v424
          %v1045 = vunpack.c.l.b16 %v425
          %v1046 = vunpack.c.l.b16 %v426
          %v1047 = vpack.c.b16 %v1044, %v1043
          %v1048 = vpack.c.b16 %v1046, %v1045
          %1051 = vmatprep.subr.bf16.mxu0 0
          %1052 = vmatpush1.bf16.msra.mxu0 %v1047
          %1053 = vmatprep.subr.bf16.mxu0 0
          %1054 = vmatpush1.bf16.msra.mxu0 %v1048
          %1055 = vmatprep.subr.bf16.mxu0 0
          %1056 = vmatpush1.bf16.msra.mxu0 0
          %1057 = vmatprep.subr.bf16.mxu0 0
          %1058 = vmatpush1.bf16.msra.mxu0 0
          %1059 = vmatprep.subr.bf16.mxu0 0
          %1060 = vmatpush1.bf16.msra.mxu0 0
          %1061 = vmatprep.subr.bf16.mxu0 0
          %1062 = vmatpush1.bf16.msra.mxu0 0
          %1063 = vmatprep.subr.bf16.mxu0 0
          %1064 = vmatpush1.bf16.msra.mxu0 0
          %1065 = vmatprep.subr.bf16.mxu0 0
          %1066 = vmatpush1.bf16.msra.mxu0 0
          %1067 = vmatprep.subr.bf16.mxu0 0
          %1068 = vmatpush1.bf16.msra.mxu0 0
          %1069 = vmatprep.subr.bf16.mxu0 0
          %1070 = vmatpush1.bf16.msra.mxu0 0
          %1071 = vmatprep.subr.bf16.mxu0 0
          %1072 = vmatpush1.bf16.msra.mxu0 0
          %1073 = vmatprep.subr.bf16.mxu0 0
          %1074 = vmatpush1.bf16.msra.mxu0 0
          %1075 = vmatprep.subr.bf16.mxu0 0
          %1076 = vmatpush1.bf16.msra.mxu0 0
          %1077 = vmatprep.subr.bf16.mxu0 0
          %1078 = vmatpush1.bf16.msra.mxu0 0
          %1079 = vmatprep.subr.bf16.mxu0 0
          %1080 = vmatpush1.bf16.msra.mxu0 0
          %1081 = vmatprep.subr.bf16.mxu0 0
          %1082 = vmatpush1.bf16.msra.mxu0 0
          %1083 = vmatprep.mubr.bf16.mxu0 0
          %1084 = vmatmul.mubr.bf16.gmra.mrb[0].mxu0 %v529
          %v1085 = vpop.f32.mrb[0].mxu0
          %v1086 = vadd.f32 %v498, %v1085
          %v1087 = vpop.f32.mrb[0].mxu0
          %v1088 = vpop.f32.mrb[0].mxu0
          %v1089 = vpop.f32.mrb[0].mxu0
          %1090 = vdwg.mxu0
          %v1095 = vunpack.c.l.b16 %v427
          %v1096 = vunpack.c.l.b16 %v428
          %v1097 = vunpack.c.l.b16 %v429
          %v1098 = vunpack.c.l.b16 %v430
          %v1099 = vpack.c.b16 %v1096, %v1095
          %v1100 = vpack.c.b16 %v1098, %v1097
          %1103 = vmatprep.subr.bf16.mxu0 0
          %1104 = vmatpush1.bf16.msra.mxu0 %v1099
          %1105 = vmatprep.subr.bf16.mxu0 0
          %1106 = vmatpush1.bf16.msra.mxu0 %v1100
          %1107 = vmatprep.subr.bf16.mxu0 0
          %1108 = vmatpush1.bf16.msra.mxu0 0
          %1109 = vmatprep.subr.bf16.mxu0 0
          %1110 = vmatpush1.bf16.msra.mxu0 0
          %1111 = vmatprep.subr.bf16.mxu0 0
          %1112 = vmatpush1.bf16.msra.mxu0 0
          %1113 = vmatprep.subr.bf16.mxu0 0
          %1114 = vmatpush1.bf16.msra.mxu0 0
          %1115 = vmatprep.subr.bf16.mxu0 0
          %1116 = vmatpush1.bf16.msra.mxu0 0
          %1117 = vmatprep.subr.bf16.mxu0 0
          %1118 = vmatpush1.bf16.msra.mxu0 0
          %1119 = vmatprep.subr.bf16.mxu0 0
          %1120 = vmatpush1.bf16.msra.mxu0 0
          %1121 = vmatprep.subr.bf16.mxu0 0
          %1122 = vmatpush1.bf16.msra.mxu0 0
          %1123 = vmatprep.subr.bf16.mxu0 0
          %1124 = vmatpush1.bf16.msra.mxu0 0
          %1125 = vmatprep.subr.bf16.mxu0 0
          %1126 = vmatpush1.bf16.msra.mxu0 0
          %1127 = vmatprep.subr.bf16.mxu0 0
          %1128 = vmatpush1.bf16.msra.mxu0 0
          %1129 = vmatprep.subr.bf16.mxu0 0
          %1130 = vmatpush1.bf16.msra.mxu0 0
          %1131 = vmatprep.subr.bf16.mxu0 0
          %1132 = vmatpush1.bf16.msra.mxu0 0
          %1133 = vmatprep.subr.bf16.mxu0 0
          %1134 = vmatpush1.bf16.msra.mxu0 0
          %1135 = vmatprep.mubr.bf16.mxu0 0
          %1136 = vmatmul.mubr.bf16.gmra.mrb[0].mxu0 %v529
          %v1137 = vpop.f32.mrb[0].mxu0
          %v1138 = vadd.f32 %v502, %v1137
          %v1139 = vpop.f32.mrb[0].mxu0
          %v1140 = vpop.f32.mrb[0].mxu0
          %v1141 = vpop.f32.mrb[0].mxu0
          %1142 = vdwg.mxu0
          %v1143 = vpack.c.bf16 %v566, %v566
          %v1144 = vpack.c.bf16 %v618, %v618
          %v1145 = vpack.c.bf16 %v670, %v670
          %v1146 = vpack.c.bf16 %v722, %v722
          %v1147 = vpack.c.bf16 %v774, %v774
          %v1148 = vpack.c.bf16 %v826, %v826
          %v1149 = vpack.c.bf16 %v878, %v878
          %v1150 = vpack.c.bf16 %v930, %v930
          %v1151 = vpack.c.bf16 %v982, %v982
          %v1152 = vpack.c.bf16 %v1034, %v1034
          %v1153 = vpack.c.bf16 %v1086, %v1086
          %v1154 = vpack.c.bf16 %v1138, %v1138
          %1155 = vmatprep.subr.bf16.mxu0 0
          %1156 = vmatpush1.bf16.xpose.msra.mxu0 %v1147
          %1157 = vmatprep.subr.bf16.mxu0 0
          %1158 = vmatpush1.bf16.xpose.msra.mxu0 0
          %1159 = vmatprep.subr.bf16.mxu0 0
          %1160 = vmatpush1.bf16.xpose.msra.mxu0 0
          %1161 = vmatprep.subr.bf16.mxu0 0
          %1162 = vmatpush1.bf16.xpose.msra.mxu0 0
          %1163 = vmatprep.subr.bf16.mxu0 0
          %1164 = vmatpush1.bf16.xpose.msra.mxu0 0
          %1165 = vmatprep.subr.bf16.mxu0 0
          %1166 = vmatpush1.bf16.xpose.msra.mxu0 0
          %1167 = vmatprep.subr.bf16.mxu0 0
          %1168 = vmatpush1.bf16.xpose.msra.mxu0 0
          %1169 = vmatprep.subr.bf16.mxu0 0
          %1170 = vmatpush1.bf16.xpose.msra.mxu0 0
          %1171 = vmatprep.subr.bf16.mxu0 0
          %1172 = vmatpush1.bf16.xpose.msra.mxu0 0
          %1173 = vmatprep.subr.bf16.mxu0 0
          %1174 = vmatpush1.bf16.xpose.msra.mxu0 0
          %1175 = vmatprep.subr.bf16.mxu0 0
          %1176 = vmatpush1.bf16.xpose.msra.mxu0 0
          %1177 = vmatprep.subr.bf16.mxu0 0
          %1178 = vmatpush1.bf16.xpose.msra.mxu0 0
          %1179 = vmatprep.subr.bf16.mxu0 0
          %1180 = vmatpush1.bf16.xpose.msra.mxu0 0
          %1181 = vmatprep.subr.bf16.mxu0 0
          %1182 = vmatpush1.bf16.xpose.msra.mxu0 0
          %1183 = vmatprep.subr.bf16.mxu0 0
          %1184 = vmatpush1.bf16.xpose.msra.mxu0 0
          %1185 = vmatprep.subr.bf16.mxu0 0
          %1186 = vmatpush1.bf16.xpose.msra.mxu0 0
          %1187 = vmatprep.mubr.bf16.mxu0 0
          %1188 = vmatmul.mubr.bf16.gmra.mrb[0].mxu0 %v1143
          %v1189 = vpop.f32.mrb[0].mxu0
          %v1190 = vadd.f32 0.0, %v1189
          %v1191 = vpop.f32.mrb[0].mxu0
          %v1192 = vpop.f32.mrb[0].mxu0
          %v1193 = vpop.f32.mrb[0].mxu0
          %1194 = vdwg.mxu0
          %1195 = vmatprep.subr.bf16.mxu0 0
          %1196 = vmatpush1.bf16.xpose.msra.mxu0 %v1148
          %1197 = vmatprep.subr.bf16.mxu0 0
          %1198 = vmatpush1.bf16.xpose.msra.mxu0 0
          %1199 = vmatprep.subr.bf16.mxu0 0
          %1200 = vmatpush1.bf16.xpose.msra.mxu0 0
          %1201 = vmatprep.subr.bf16.mxu0 0
          %1202 = vmatpush1.bf16.xpose.msra.mxu0 0
          %1203 = vmatprep.subr.bf16.mxu0 0
          %1204 = vmatpush1.bf16.xpose.msra.mxu0 0
          %1205 = vmatprep.subr.bf16.mxu0 0
          %1206 = vmatpush1.bf16.xpose.msra.mxu0 0
          %1207 = vmatprep.subr.bf16.mxu0 0
          %1208 = vmatpush1.bf16.xpose.msra.mxu0 0
          %1209 = vmatprep.subr.bf16.mxu0 0
          %1210 = vmatpush1.bf16.xpose.msra.mxu0 0
          %1211 = vmatprep.subr.bf16.mxu0 0
          %1212 = vmatpush1.bf16.xpose.msra.mxu0 0
          %1213 = vmatprep.subr.bf16.mxu0 0
          %1214 = vmatpush1.bf16.xpose.msra.mxu0 0
          %1215 = vmatprep.subr.bf16.mxu0 0
          %1216 = vmatpush1.bf16.xpose.msra.mxu0 0
          %1217 = vmatprep.subr.bf16.mxu0 0
          %1218 = vmatpush1.bf16.xpose.msra.mxu0 0
          %1219 = vmatprep.subr.bf16.mxu0 0
          %1220 = vmatpush1.bf16.xpose.msra.mxu0 0
          %1221 = vmatprep.subr.bf16.mxu0 0
          %1222 = vmatpush1.bf16.xpose.msra.mxu0 0
          %1223 = vmatprep.subr.bf16.mxu0 0
          %1224 = vmatpush1.bf16.xpose.msra.mxu0 0
          %1225 = vmatprep.subr.bf16.mxu0 0
          %1226 = vmatpush1.bf16.xpose.msra.mxu0 0
          %1227 = vmatprep.mubr.bf16.mxu0 0
          %1228 = vmatmul.mubr.bf16.gmra.mrb[0].mxu0 %v1144
          %v1229 = vpop.f32.mrb[0].mxu0
          %v1230 = vadd.f32 0.0, %v1229
          %v1231 = vpop.f32.mrb[0].mxu0
          %v1232 = vpop.f32.mrb[0].mxu0
          %v1233 = vpop.f32.mrb[0].mxu0
          %1234 = vdwg.mxu0
          %1235 = vmatprep.subr.bf16.mxu0 0
          %1236 = vmatpush1.bf16.xpose.msra.mxu0 %v1149
          %1237 = vmatprep.subr.bf16.mxu0 0
          %1238 = vmatpush1.bf16.xpose.msra.mxu0 0
          %1239 = vmatprep.subr.bf16.mxu0 0
          %1240 = vmatpush1.bf16.xpose.msra.mxu0 0
          %1241 = vmatprep.subr.bf16.mxu0 0
          %1242 = vmatpush1.bf16.xpose.msra.mxu0 0
          %1243 = vmatprep.subr.bf16.mxu0 0
          %1244 = vmatpush1.bf16.xpose.msra.mxu0 0
          %1245 = vmatprep.subr.bf16.mxu0 0
          %1246 = vmatpush1.bf16.xpose.msra.mxu0 0
          %1247 = vmatprep.subr.bf16.mxu0 0
          %1248 = vmatpush1.bf16.xpose.msra.mxu0 0
          %1249 = vmatprep.subr.bf16.mxu0 0
          %1250 = vmatpush1.bf16.xpose.msra.mxu0 0
          %1251 = vmatprep.subr.bf16.mxu0 0
          %1252 = vmatpush1.bf16.xpose.msra.mxu0 0
          %1253 = vmatprep.subr.bf16.mxu0 0
          %1254 = vmatpush1.bf16.xpose.msra.mxu0 0
          %1255 = vmatprep.subr.bf16.mxu0 0
          %1256 = vmatpush1.bf16.xpose.msra.mxu0 0
          %1257 = vmatprep.subr.bf16.mxu0 0
          %1258 = vmatpush1.bf16.xpose.msra.mxu0 0
          %1259 = vmatprep.subr.bf16.mxu0 0
          %1260 = vmatpush1.bf16.xpose.msra.mxu0 0
          %1261 = vmatprep.subr.bf16.mxu0 0
          %1262 = vmatpush1.bf16.xpose.msra.mxu0 0
          %1263 = vmatprep.subr.bf16.mxu0 0
          %1264 = vmatpush1.bf16.xpose.msra.mxu0 0
          %1265 = vmatprep.subr.bf16.mxu0 0
          %1266 = vmatpush1.bf16.xpose.msra.mxu0 0
          %1267 = vmatprep.mubr.bf16.mxu0 0
          %1268 = vmatmul.mubr.bf16.gmra.mrb[0].mxu0 %v1145
          %v1269 = vpop.f32.mrb[0].mxu0
          %v1270 = vadd.f32 0.0, %v1269
          %v1271 = vpop.f32.mrb[0].mxu0
          %v1272 = vpop.f32.mrb[0].mxu0
          %v1273 = vpop.f32.mrb[0].mxu0
          %1274 = vdwg.mxu0
          %1275 = vmatprep.subr.bf16.mxu0 0
          %1276 = vmatpush1.bf16.xpose.msra.mxu0 %v1150
          %1277 = vmatprep.subr.bf16.mxu0 0
          %1278 = vmatpush1.bf16.xpose.msra.mxu0 0
          %1279 = vmatprep.subr.bf16.mxu0 0
          %1280 = vmatpush1.bf16.xpose.msra.mxu0 0
          %1281 = vmatprep.subr.bf16.mxu0 0
          %1282 = vmatpush1.bf16.xpose.msra.mxu0 0
          %1283 = vmatprep.subr.bf16.mxu0 0
          %1284 = vmatpush1.bf16.xpose.msra.mxu0 0
          %1285 = vmatprep.subr.bf16.mxu0 0
          %1286 = vmatpush1.bf16.xpose.msra.mxu0 0
          %1287 = vmatprep.subr.bf16.mxu0 0
          %1288 = vmatpush1.bf16.xpose.msra.mxu0 0
          %1289 = vmatprep.subr.bf16.mxu0 0
          %1290 = vmatpush1.bf16.xpose.msra.mxu0 0
          %1291 = vmatprep.subr.bf16.mxu0 0
          %1292 = vmatpush1.bf16.xpose.msra.mxu0 0
          %1293 = vmatprep.subr.bf16.mxu0 0
          %1294 = vmatpush1.bf16.xpose.msra.mxu0 0
          %1295 = vmatprep.subr.bf16.mxu0 0
          %1296 = vmatpush1.bf16.xpose.msra.mxu0 0
          %1297 = vmatprep.subr.bf16.mxu0 0
          %1298 = vmatpush1.bf16.xpose.msra.mxu0 0
          %1299 = vmatprep.subr.bf16.mxu0 0
          %1300 = vmatpush1.bf16.xpose.msra.mxu0 0
          %1301 = vmatprep.subr.bf16.mxu0 0
          %1302 = vmatpush1.bf16.xpose.msra.mxu0 0
          %1303 = vmatprep.subr.bf16.mxu0 0
          %1304 = vmatpush1.bf16.xpose.msra.mxu0 0
          %1305 = vmatprep.subr.bf16.mxu0 0
          %1306 = vmatpush1.bf16.xpose.msra.mxu0 0
          %1307 = vmatprep.mubr.bf16.mxu0 0
          %1308 = vmatmul.mubr.bf16.gmra.mrb[0].mxu0 %v1146
          %v1309 = vpop.f32.mrb[0].mxu0
          %v1310 = vadd.f32 0.0, %v1309
          %v1311 = vpop.f32.mrb[0].mxu0
          %v1312 = vpop.f32.mrb[0].mxu0
          %v1313 = vpop.f32.mrb[0].mxu0
          %1314 = vdwg.mxu0
          %vm1315 = vcmask 64512
          %v1316 = vsel %vm1315, %v1190, -inf
          %1317 = vmax.xlane.f32.xlu0 %v1316
          %v1318 = vpop.xlane.xlu0 %1317
          %v1319 = vsel %vm1315, %v1230, -inf
          %1320 = vmax.xlane.f32.xlu0 %v1319
          %v1321 = vpop.xlane.xlu0 %1320
          %v1322 = vsel %vm1315, %v1270, -inf
          %1323 = vmax.xlane.f32.xlu0 %v1322
          %v1324 = vpop.xlane.xlu0 %1323
          %v1325 = vsel %vm1315, %v1310, -inf
          %1326 = vmax.xlane.f32.xlu0 %v1325
          %v1327 = vpop.xlane.xlu0 %1326
          %v1328 = vsub.f32 %v1190, %v1318
          %v1329 = vsub.f32 %v1230, %v1321
          %v1330 = vsub.f32 %v1270, %v1324
          %v1331 = vsub.f32 %v1310, %v1327
          %v1332 = vmul.f32 %v1328, 1.442695
          %v1333 = vpow.pop %v1332
          %v1334 = vmul.f32 %v1329, 1.442695
          %v1335 = vpow.pop %v1334
          %v1336 = vmul.f32 %v1330, 1.442695
          %v1337 = vpow.pop %v1336
          %v1338 = vmul.f32 %v1331, 1.442695
          %v1339 = vpow.pop %v1338
          %v1340 = vsel %vm1315, %v1333, 0.0
          %1341 = vadd.xlane.f32.xlu0 %v1340
          %v1342 = vpop.xlane.xlu0 %1341
          %v1343 = vsel %vm1315, %v1335, 0.0
          %1344 = vadd.xlane.f32.xlu0 %v1343
          %v1345 = vpop.xlane.xlu0 %1344
          %v1346 = vsel %vm1315, %v1337, 0.0
          %1347 = vadd.xlane.f32.xlu0 %v1346
          %v1348 = vpop.xlane.xlu0 %1347
          %v1349 = vsel %vm1315, %v1339, 0.0
          %1350 = vadd.xlane.f32.xlu0 %v1349
          %v1351 = vpop.xlane.xlu0 %1350
          %v1352 = vrcp.pop %v1342
          %v1353 = vrcp.pop %v1345
          %v1354 = vrcp.pop %v1348
          %v1355 = vrcp.pop %v1351
          %v1356 = vmul.f32 %v1333, %v1352
          %v1357 = vmul.f32 %v1335, %v1353
          %v1358 = vmul.f32 %v1337, %v1354
          %v1359 = vmul.f32 %v1339, %v1355
          %v1360 = vpack.c.bf16 %v1356, %v1356
          %v1361 = vpack.c.bf16 %v1357, %v1357
          %v1362 = vpack.c.bf16 %v1358, %v1358
          %v1363 = vpack.c.bf16 %v1359, %v1359
          %v1365 = vsel %vm1315, %v1360, 0
          %vm1367 = vcmask 1043456
          %v1369 = vsel %vm1367, %v1151, 0
          %1371 = vmatprep.subr.bf16.mxu0 0
          %1372 = vmatpush1.bf16.msra.mxu0 %v1369
          %1373 = vmatprep.subr.bf16.mxu0 0
          %1374 = vmatpush1.bf16.msra.mxu0 0
          %1375 = vmatprep.subr.bf16.mxu0 0
          %1376 = vmatpush1.bf16.msra.mxu0 0
          %1377 = vmatprep.subr.bf16.mxu0 0
          %1378 = vmatpush1.bf16.msra.mxu0 0
          %1379 = vmatprep.subr.bf16.mxu0 0
          %1380 = vmatpush1.bf16.msra.mxu0 0
          %1381 = vmatprep.subr.bf16.mxu0 0
          %1382 = vmatpush1.bf16.msra.mxu0 0
          %1383 = vmatprep.subr.bf16.mxu0 0
          %1384 = vmatpush1.bf16.msra.mxu0 0
          %1385 = vmatprep.subr.bf16.mxu0 0
          %1386 = vmatpush1.bf16.msra.mxu0 0
          %1387 = vmatprep.subr.bf16.mxu0 0
          %1388 = vmatpush1.bf16.msra.mxu0 0
          %1389 = vmatprep.subr.bf16.mxu0 0
          %1390 = vmatpush1.bf16.msra.mxu0 0
          %1391 = vmatprep.subr.bf16.mxu0 0
          %1392 = vmatpush1.bf16.msra.mxu0 0
          %1393 = vmatprep.subr.bf16.mxu0 0
          %1394 = vmatpush1.bf16.msra.mxu0 0
          %1395 = vmatprep.subr.bf16.mxu0 0
          %1396 = vmatpush1.bf16.msra.mxu0 0
          %1397 = vmatprep.subr.bf16.mxu0 0
          %1398 = vmatpush1.bf16.msra.mxu0 0
          %1399 = vmatprep.subr.bf16.mxu0 0
          %1400 = vmatpush1.bf16.msra.mxu0 0
          %1401 = vmatprep.subr.bf16.mxu0 0
          %1402 = vmatpush1.bf16.msra.mxu0 0
          %1403 = vmatprep.mubr.bf16.mxu0 0
          %1404 = vmatmul.mubr.bf16.gmra.mrb[0].mxu0 %v1365
          %v1405 = vpop.f32.mrb[0].mxu0
          %v1406 = vadd.f32 0.0, %v1405
          %v1407 = vpop.f32.mrb[0].mxu0
          %v1408 = vpop.f32.mrb[0].mxu0
          %v1409 = vpop.f32.mrb[0].mxu0
          %1410 = vdwg.mxu0
          %v1412 = vsel %vm1315, %v1361, 0
          %v1415 = vsel %vm1367, %v1152, 0
          %1417 = vmatprep.subr.bf16.mxu0 0
          %1418 = vmatpush1.bf16.msra.mxu0 %v1415
          %1419 = vmatprep.subr.bf16.mxu0 0
          %1420 = vmatpush1.bf16.msra.mxu0 0
          %1421 = vmatprep.subr.bf16.mxu0 0
          %1422 = vmatpush1.bf16.msra.mxu0 0
          %1423 = vmatprep.subr.bf16.mxu0 0
          %1424 = vmatpush1.bf16.msra.mxu0 0
          %1425 = vmatprep.subr.bf16.mxu0 0
          %1426 = vmatpush1.bf16.msra.mxu0 0
          %1427 = vmatprep.subr.bf16.mxu0 0
          %1428 = vmatpush1.bf16.msra.mxu0 0
          %1429 = vmatprep.subr.bf16.mxu0 0
          %1430 = vmatpush1.bf16.msra.mxu0 0
          %1431 = vmatprep.subr.bf16.mxu0 0
          %1432 = vmatpush1.bf16.msra.mxu0 0
          %1433 = vmatprep.subr.bf16.mxu0 0
          %1434 = vmatpush1.bf16.msra.mxu0 0
          %1435 = vmatprep.subr.bf16.mxu0 0
          %1436 = vmatpush1.bf16.msra.mxu0 0
          %1437 = vmatprep.subr.bf16.mxu0 0
          %1438 = vmatpush1.bf16.msra.mxu0 0
          %1439 = vmatprep.subr.bf16.mxu0 0
          %1440 = vmatpush1.bf16.msra.mxu0 0
          %1441 = vmatprep.subr.bf16.mxu0 0
          %1442 = vmatpush1.bf16.msra.mxu0 0
          %1443 = vmatprep.subr.bf16.mxu0 0
          %1444 = vmatpush1.bf16.msra.mxu0 0
          %1445 = vmatprep.subr.bf16.mxu0 0
          %1446 = vmatpush1.bf16.msra.mxu0 0
          %1447 = vmatprep.subr.bf16.mxu0 0
          %1448 = vmatpush1.bf16.msra.mxu0 0
          %1449 = vmatprep.mubr.bf16.mxu0 0
          %1450 = vmatmul.mubr.bf16.gmra.mrb[0].mxu0 %v1412
          %v1451 = vpop.f32.mrb[0].mxu0
          %v1452 = vadd.f32 0.0, %v1451
          %v1453 = vpop.f32.mrb[0].mxu0
          %v1454 = vpop.f32.mrb[0].mxu0
          %v1455 = vpop.f32.mrb[0].mxu0
          %1456 = vdwg.mxu0
          %v1458 = vsel %vm1315, %v1362, 0
          %v1461 = vsel %vm1367, %v1153, 0
          %1463 = vmatprep.subr.bf16.mxu0 0
          %1464 = vmatpush1.bf16.msra.mxu0 %v1461
          %1465 = vmatprep.subr.bf16.mxu0 0
          %1466 = vmatpush1.bf16.msra.mxu0 0
          %1467 = vmatprep.subr.bf16.mxu0 0
          %1468 = vmatpush1.bf16.msra.mxu0 0
          %1469 = vmatprep.subr.bf16.mxu0 0
          %1470 = vmatpush1.bf16.msra.mxu0 0
          %1471 = vmatprep.subr.bf16.mxu0 0
          %1472 = vmatpush1.bf16.msra.mxu0 0
          %1473 = vmatprep.subr.bf16.mxu0 0
          %1474 = vmatpush1.bf16.msra.mxu0 0
          %1475 = vmatprep.subr.bf16.mxu0 0
          %1476 = vmatpush1.bf16.msra.mxu0 0
          %1477 = vmatprep.subr.bf16.mxu0 0
          %1478 = vmatpush1.bf16.msra.mxu0 0
          %1479 = vmatprep.subr.bf16.mxu0 0
          %1480 = vmatpush1.bf16.msra.mxu0 0
          %1481 = vmatprep.subr.bf16.mxu0 0
          %1482 = vmatpush1.bf16.msra.mxu0 0
          %1483 = vmatprep.subr.bf16.mxu0 0
          %1484 = vmatpush1.bf16.msra.mxu0 0
          %1485 = vmatprep.subr.bf16.mxu0 0
          %1486 = vmatpush1.bf16.msra.mxu0 0
          %1487 = vmatprep.subr.bf16.mxu0 0
          %1488 = vmatpush1.bf16.msra.mxu0 0
          %1489 = vmatprep.subr.bf16.mxu0 0
          %1490 = vmatpush1.bf16.msra.mxu0 0
          %1491 = vmatprep.subr.bf16.mxu0 0
          %1492 = vmatpush1.bf16.msra.mxu0 0
          %1493 = vmatprep.subr.bf16.mxu0 0
          %1494 = vmatpush1.bf16.msra.mxu0 0
          %1495 = vmatprep.mubr.bf16.mxu0 0
          %1496 = vmatmul.mubr.bf16.gmra.mrb[0].mxu0 %v1458
          %v1497 = vpop.f32.mrb[0].mxu0
          %v1498 = vadd.f32 0.0, %v1497
          %v1499 = vpop.f32.mrb[0].mxu0
          %v1500 = vpop.f32.mrb[0].mxu0
          %v1501 = vpop.f32.mrb[0].mxu0
          %1502 = vdwg.mxu0
          %v1504 = vsel %vm1315, %v1363, 0
          %v1507 = vsel %vm1367, %v1154, 0
          %1509 = vmatprep.subr.bf16.mxu0 0
          %1510 = vmatpush1.bf16.msra.mxu0 %v1507
          %1511 = vmatprep.subr.bf16.mxu0 0
          %1512 = vmatpush1.bf16.msra.mxu0 0
          %1513 = vmatprep.subr.bf16.mxu0 0
          %1514 = vmatpush1.bf16.msra.mxu0 0
          %1515 = vmatprep.subr.bf16.mxu0 0
          %1516 = vmatpush1.bf16.msra.mxu0 0
          %1517 = vmatprep.subr.bf16.mxu0 0
          %1518 = vmatpush1.bf16.msra.mxu0 0
          %1519 = vmatprep.subr.bf16.mxu0 0
          %1520 = vmatpush1.bf16.msra.mxu0 0
          %1521 = vmatprep.subr.bf16.mxu0 0
          %1522 = vmatpush1.bf16.msra.mxu0 0
          %1523 = vmatprep.subr.bf16.mxu0 0
          %1524 = vmatpush1.bf16.msra.mxu0 0
          %1525 = vmatprep.subr.bf16.mxu0 0
          %1526 = vmatpush1.bf16.msra.mxu0 0
          %1527 = vmatprep.subr.bf16.mxu0 0
          %1528 = vmatpush1.bf16.msra.mxu0 0
          %1529 = vmatprep.subr.bf16.mxu0 0
          %1530 = vmatpush1.bf16.msra.mxu0 0
          %1531 = vmatprep.subr.bf16.mxu0 0
          %1532 = vmatpush1.bf16.msra.mxu0 0
          %1533 = vmatprep.subr.bf16.mxu0 0
          %1534 = vmatpush1.bf16.msra.mxu0 0
          %1535 = vmatprep.subr.bf16.mxu0 0
          %1536 = vmatpush1.bf16.msra.mxu0 0
          %1537 = vmatprep.subr.bf16.mxu0 0
          %1538 = vmatpush1.bf16.msra.mxu0 0
          %1539 = vmatprep.subr.bf16.mxu0 0
          %1540 = vmatpush1.bf16.msra.mxu0 0
          %1541 = vmatprep.mubr.bf16.mxu0 0
          %1542 = vmatmul.mubr.bf16.gmra.mrb[0].mxu0 %v1504
          %v1543 = vpop.f32.mrb[0].mxu0
          %v1544 = vadd.f32 0.0, %v1543
          %v1545 = vpop.f32.mrb[0].mxu0
          %v1546 = vpop.f32.mrb[0].mxu0
          %v1547 = vpop.f32.mrb[0].mxu0
          %1548 = vdwg.mxu0
          %v1549 = vpack.c.bf16 %v1406, %v1406
          %v1550 = vpack.c.bf16 %v1452, %v1452
          %v1551 = vpack.c.bf16 %v1498, %v1498
          %v1552 = vpack.c.bf16 %v1544, %v1544
          %v1553 = vld [vmem:[%s3] sm:$0xf]
          %v1554 = vld [vmem:[%s3 + $0x4] sm:$0xf]
          %v1555 = vld [vmem:[%s3 + $0x8] sm:$0xf]
          %v1556 = vld [vmem:[%s3 + $0xc] sm:$0xf]
          %v1557 = vld [vmem:[%s3 + $0x10] sm:$0xf]
          %v1558 = vld [vmem:[%s3 + $0x14] sm:$0xf]
          %v1559 = vld [vmem:[%s3 + $0x18] sm:$0xf]
          %v1560 = vld [vmem:[%s3 + $0x1c] sm:$0xf]
          %v1561 = vld [vmem:[%s3 + $0x20] sm:$0xf]
          %v1562 = vld [vmem:[%s3 + $0x24] sm:$0xf]
          %v1563 = vld [vmem:[%s3 + $0x28] sm:$0xf]
          %v1564 = vld [vmem:[%s3 + $0x2c] sm:$0xf]
          %v1565 = vld [vmem:[%s3 + $0x30] sm:$0xf]
          %v1566 = vld [vmem:[%s3 + $0x34] sm:$0xf]
          %v1567 = vld [vmem:[%s3 + $0x38] sm:$0xf]
          %v1568 = vld [vmem:[%s3 + $0x3c] sm:$0xf]
          %v1569 = vld [vmem:[%s3 + $0x40] sm:$0xf]
          %v1570 = vld [vmem:[%s3 + $0x44] sm:$0xf]
          %v1571 = vld [vmem:[%s3 + $0x48] sm:$0xf]
          %v1572 = vld [vmem:[%s3 + $0x4c] sm:$0xf]
          %v1573 = vld [vmem:[%s3 + $0x50] sm:$0xf]
          %v1574 = vld [vmem:[%s3 + $0x54] sm:$0xf]
          %v1575 = vld [vmem:[%s3 + $0x58] sm:$0xf]
          %v1576 = vld [vmem:[%s3 + $0x5c] sm:$0xf]
          %v1577 = vld [vmem:[%s3 + $0x60] sm:$0xf]
          %v1578 = vld [vmem:[%s3 + $0x64] sm:$0xf]
          %v1579 = vld [vmem:[%s3 + $0x68] sm:$0xf]
          %v1580 = vld [vmem:[%s3 + $0x6c] sm:$0xf]
          %v1581 = vld [vmem:[%s3 + $0x70] sm:$0xf]
          %v1582 = vld [vmem:[%s3 + $0x74] sm:$0xf]
          %v1583 = vld [vmem:[%s3 + $0x78] sm:$0xf]
          %v1584 = vld [vmem:[%s3 + $0x7c] sm:$0xf]
          %v1585 = vld [vmem:[%s3 + $0x80] sm:$0xf]
          %v1586 = vld [vmem:[%s3 + $0x84] sm:$0xf]
          %v1587 = vld [vmem:[%s3 + $0x88] sm:$0xf]
          %v1588 = vld [vmem:[%s3 + $0x8c] sm:$0xf]
          %v1589 = vld [vmem:[%s3 + $0x90] sm:$0xf]
          %v1590 = vld [vmem:[%s3 + $0x94] sm:$0xf]
          %v1591 = vld [vmem:[%s3 + $0x98] sm:$0xf]
          %v1592 = vld [vmem:[%s3 + $0x9c] sm:$0xf]
          %v1593 = vld [vmem:[%s3 + $0xa0] sm:$0xf]
          %v1594 = vld [vmem:[%s3 + $0xa4] sm:$0xf]
          %v1595 = vld [vmem:[%s3 + $0xa8] sm:$0xf]
          %v1596 = vld [vmem:[%s3 + $0xac] sm:$0xf]
          %v1597 = vld [vmem:[%s3 + $0xb0] sm:$0xf]
          %v1598 = vld [vmem:[%s3 + $0xb4] sm:$0xf]
          %v1599 = vld [vmem:[%s3 + $0xb8] sm:$0xf]
          %v1600 = vld [vmem:[%s3 + $0xbc] sm:$0xf]
          %v1601 = vld [vmem:[%s3 + $0xc0] sm:$0xf]
          %v1602 = vld [vmem:[%s3 + $0xc4] sm:$0xf]
          %v1603 = vld [vmem:[%s3 + $0xc8] sm:$0xf]
          %v1604 = vld [vmem:[%s3 + $0xcc] sm:$0xf]
          %v1605 = vld [vmem:[%s3 + $0xd0] sm:$0xf]
          %v1606 = vld [vmem:[%s3 + $0xd4] sm:$0xf]
          %v1607 = vld [vmem:[%s3 + $0xd8] sm:$0xf]
          %v1608 = vld [vmem:[%s3 + $0xdc] sm:$0xf]
          %v1609 = vld [vmem:[%s3 + $0xe0] sm:$0xf]
          %v1610 = vld [vmem:[%s3 + $0xe4] sm:$0xf]
          %v1611 = vld [vmem:[%s3 + $0xe8] sm:$0xf]
          %v1612 = vld [vmem:[%s3 + $0xec] sm:$0xf]
          %v1613 = vld [vmem:[%s3 + $0xf0] sm:$0xf]
          %v1614 = vld [vmem:[%s3 + $0xf4] sm:$0xf]
          %v1615 = vld [vmem:[%s3 + $0xf8] sm:$0xf]
          %v1616 = vld [vmem:[%s3 + $0xfc] sm:$0xf]
          %v1633 = vunpack.c.l.b16 %v1553
          %v1634 = vunpack.c.l.b16 %v1554
          %v1635 = vunpack.c.l.b16 %v1555
          %v1636 = vunpack.c.l.b16 %v1556
          %v1637 = vunpack.c.l.b16 %v1557
          %v1638 = vunpack.c.l.b16 %v1558
          %v1639 = vunpack.c.l.b16 %v1559
          %v1640 = vunpack.c.l.b16 %v1560
          %v1641 = vunpack.c.l.b16 %v1561
          %v1642 = vunpack.c.l.b16 %v1562
          %v1643 = vunpack.c.l.b16 %v1563
          %v1644 = vunpack.c.l.b16 %v1564
          %v1645 = vunpack.c.l.b16 %v1565
          %v1646 = vunpack.c.l.b16 %v1566
          %v1647 = vunpack.c.l.b16 %v1567
          %v1648 = vunpack.c.l.b16 %v1568
          %v1649 = vpack.c.b16 %v1634, %v1633
          %v1650 = vpack.c.b16 %v1636, %v1635
          %v1651 = vpack.c.b16 %v1638, %v1637
          %v1652 = vpack.c.b16 %v1640, %v1639
          %v1653 = vpack.c.b16 %v1642, %v1641
          %v1654 = vpack.c.b16 %v1644, %v1643
          %v1655 = vpack.c.b16 %v1646, %v1645
          %v1656 = vpack.c.b16 %v1648, %v1647
          %1665 = vmatprep.subr.bf16.mxu0 0
          %1666 = vmatpush1.bf16.msra.mxu0 %v1649
          %1667 = vmatprep.subr.bf16.mxu0 0
          %1668 = vmatpush1.bf16.msra.mxu0 %v1650
          %1669 = vmatprep.subr.bf16.mxu0 0
          %1670 = vmatpush1.bf16.msra.mxu0 %v1651
          %1671 = vmatprep.subr.bf16.mxu0 0
          %1672 = vmatpush1.bf16.msra.mxu0 %v1652
          %1673 = vmatprep.subr.bf16.mxu0 0
          %1674 = vmatpush1.bf16.msra.mxu0 %v1653
          %1675 = vmatprep.subr.bf16.mxu0 0
          %1676 = vmatpush1.bf16.msra.mxu0 %v1654
          %1677 = vmatprep.subr.bf16.mxu0 0
          %1678 = vmatpush1.bf16.msra.mxu0 %v1655
          %1679 = vmatprep.subr.bf16.mxu0 0
          %1680 = vmatpush1.bf16.msra.mxu0 %v1656
          %1681 = vmatprep.subr.bf16.mxu0 0
          %1682 = vmatpush1.bf16.msra.mxu0 0
          %1683 = vmatprep.subr.bf16.mxu0 0
          %1684 = vmatpush1.bf16.msra.mxu0 0
          %1685 = vmatprep.subr.bf16.mxu0 0
          %1686 = vmatpush1.bf16.msra.mxu0 0
          %1687 = vmatprep.subr.bf16.mxu0 0
          %1688 = vmatpush1.bf16.msra.mxu0 0
          %1689 = vmatprep.subr.bf16.mxu0 0
          %1690 = vmatpush1.bf16.msra.mxu0 0
          %1691 = vmatprep.subr.bf16.mxu0 0
          %1692 = vmatpush1.bf16.msra.mxu0 0
          %1693 = vmatprep.subr.bf16.mxu0 0
          %1694 = vmatpush1.bf16.msra.mxu0 0
          %1695 = vmatprep.subr.bf16.mxu0 0
          %1696 = vmatpush1.bf16.msra.mxu0 0
          %1697 = vmatprep.mubr.bf16.mxu0 0
          %1698 = vmatmul.mubr.bf16.gmra.mrb[0].mxu0 %v1549
          %v1699 = vpop.f32.mrb[0].mxu0
          %v1700 = vadd.f32 0.0, %v1699
          %v1701 = vpop.f32.mrb[0].mxu0
          %v1702 = vpop.f32.mrb[0].mxu0
          %v1703 = vpop.f32.mrb[0].mxu0
          %1704 = vdwg.mxu0
          %v1721 = vunpack.c.l.b16 %v1569
          %v1722 = vunpack.c.l.b16 %v1570
          %v1723 = vunpack.c.l.b16 %v1571
          %v1724 = vunpack.c.l.b16 %v1572
          %v1725 = vunpack.c.l.b16 %v1573
          %v1726 = vunpack.c.l.b16 %v1574
          %v1727 = vunpack.c.l.b16 %v1575
          %v1728 = vunpack.c.l.b16 %v1576
          %v1729 = vunpack.c.l.b16 %v1577
          %v1730 = vunpack.c.l.b16 %v1578
          %v1731 = vunpack.c.l.b16 %v1579
          %v1732 = vunpack.c.l.b16 %v1580
          %v1733 = vunpack.c.l.b16 %v1581
          %v1734 = vunpack.c.l.b16 %v1582
          %v1735 = vunpack.c.l.b16 %v1583
          %v1736 = vunpack.c.l.b16 %v1584
          %v1737 = vpack.c.b16 %v1722, %v1721
          %v1738 = vpack.c.b16 %v1724, %v1723
          %v1739 = vpack.c.b16 %v1726, %v1725
          %v1740 = vpack.c.b16 %v1728, %v1727
          %v1741 = vpack.c.b16 %v1730, %v1729
          %v1742 = vpack.c.b16 %v1732, %v1731
          %v1743 = vpack.c.b16 %v1734, %v1733
          %v1744 = vpack.c.b16 %v1736, %v1735
          %1753 = vmatprep.subr.bf16.mxu0 0
          %1754 = vmatpush1.bf16.msra.mxu0 %v1737
          %1755 = vmatprep.subr.bf16.mxu0 0
          %1756 = vmatpush1.bf16.msra.mxu0 %v1738
          %1757 = vmatprep.subr.bf16.mxu0 0
          %1758 = vmatpush1.bf16.msra.mxu0 %v1739
          %1759 = vmatprep.subr.bf16.mxu0 0
          %1760 = vmatpush1.bf16.msra.mxu0 %v1740
          %1761 = vmatprep.subr.bf16.mxu0 0
          %1762 = vmatpush1.bf16.msra.mxu0 %v1741
          %1763 = vmatprep.subr.bf16.mxu0 0
          %1764 = vmatpush1.bf16.msra.mxu0 %v1742
          %1765 = vmatprep.subr.bf16.mxu0 0
          %1766 = vmatpush1.bf16.msra.mxu0 %v1743
          %1767 = vmatprep.subr.bf16.mxu0 0
          %1768 = vmatpush1.bf16.msra.mxu0 %v1744
          %1769 = vmatprep.subr.bf16.mxu0 0
          %1770 = vmatpush1.bf16.msra.mxu0 0
          %1771 = vmatprep.subr.bf16.mxu0 0
          %1772 = vmatpush1.bf16.msra.mxu0 0
          %1773 = vmatprep.subr.bf16.mxu0 0
          %1774 = vmatpush1.bf16.msra.mxu0 0
          %1775 = vmatprep.subr.bf16.mxu0 0
          %1776 = vmatpush1.bf16.msra.mxu0 0
          %1777 = vmatprep.subr.bf16.mxu0 0
          %1778 = vmatpush1.bf16.msra.mxu0 0
          %1779 = vmatprep.subr.bf16.mxu0 0
          %1780 = vmatpush1.bf16.msra.mxu0 0
          %1781 = vmatprep.subr.bf16.mxu0 0
          %1782 = vmatpush1.bf16.msra.mxu0 0
          %1783 = vmatprep.subr.bf16.mxu0 0
          %1784 = vmatpush1.bf16.msra.mxu0 0
          %1785 = vmatprep.mubr.bf16.mxu0 0
          %1786 = vmatmul.mubr.bf16.gmra.mrb[0].mxu0 %v1550
          %v1787 = vpop.f32.mrb[0].mxu0
          %v1788 = vadd.f32 0.0, %v1787
          %v1789 = vpop.f32.mrb[0].mxu0
          %v1790 = vpop.f32.mrb[0].mxu0
          %v1791 = vpop.f32.mrb[0].mxu0
          %1792 = vdwg.mxu0
          %v1809 = vunpack.c.l.b16 %v1585
          %v1810 = vunpack.c.l.b16 %v1586
          %v1811 = vunpack.c.l.b16 %v1587
          %v1812 = vunpack.c.l.b16 %v1588
          %v1813 = vunpack.c.l.b16 %v1589
          %v1814 = vunpack.c.l.b16 %v1590
          %v1815 = vunpack.c.l.b16 %v1591
          %v1816 = vunpack.c.l.b16 %v1592
          %v1817 = vunpack.c.l.b16 %v1593
          %v1818 = vunpack.c.l.b16 %v1594
          %v1819 = vunpack.c.l.b16 %v1595
          %v1820 = vunpack.c.l.b16 %v1596
          %v1821 = vunpack.c.l.b16 %v1597
          %v1822 = vunpack.c.l.b16 %v1598
          %v1823 = vunpack.c.l.b16 %v1599
          %v1824 = vunpack.c.l.b16 %v1600
          %v1825 = vpack.c.b16 %v1810, %v1809
          %v1826 = vpack.c.b16 %v1812, %v1811
          %v1827 = vpack.c.b16 %v1814, %v1813
          %v1828 = vpack.c.b16 %v1816, %v1815
          %v1829 = vpack.c.b16 %v1818, %v1817
          %v1830 = vpack.c.b16 %v1820, %v1819
          %v1831 = vpack.c.b16 %v1822, %v1821
          %v1832 = vpack.c.b16 %v1824, %v1823
          %1841 = vmatprep.subr.bf16.mxu0 0
          %1842 = vmatpush1.bf16.msra.mxu0 %v1825
          %1843 = vmatprep.subr.bf16.mxu0 0
          %1844 = vmatpush1.bf16.msra.mxu0 %v1826
          %1845 = vmatprep.subr.bf16.mxu0 0
          %1846 = vmatpush1.bf16.msra.mxu0 %v1827
          %1847 = vmatprep.subr.bf16.mxu0 0
          %1848 = vmatpush1.bf16.msra.mxu0 %v1828
          %1849 = vmatprep.subr.bf16.mxu0 0
          %1850 = vmatpush1.bf16.msra.mxu0 %v1829
          %1851 = vmatprep.subr.bf16.mxu0 0
          %1852 = vmatpush1.bf16.msra.mxu0 %v1830
          %1853 = vmatprep.subr.bf16.mxu0 0
          %1854 = vmatpush1.bf16.msra.mxu0 %v1831
          %1855 = vmatprep.subr.bf16.mxu0 0
          %1856 = vmatpush1.bf16.msra.mxu0 %v1832
          %1857 = vmatprep.subr.bf16.mxu0 0
          %1858 = vmatpush1.bf16.msra.mxu0 0
          %1859 = vmatprep.subr.bf16.mxu0 0
          %1860 = vmatpush1.bf16.msra.mxu0 0
          %1861 = vmatprep.subr.bf16.mxu0 0
          %1862 = vmatpush1.bf16.msra.mxu0 0
          %1863 = vmatprep.subr.bf16.mxu0 0
          %1864 = vmatpush1.bf16.msra.mxu0 0
          %1865 = vmatprep.subr.bf16.mxu0 0
          %1866 = vmatpush1.bf16.msra.mxu0 0
          %1867 = vmatprep.subr.bf16.mxu0 0
          %1868 = vmatpush1.bf16.msra.mxu0 0
          %1869 = vmatprep.subr.bf16.mxu0 0
          %1870 = vmatpush1.bf16.msra.mxu0 0
          %1871 = vmatprep.subr.bf16.mxu0 0
          %1872 = vmatpush1.bf16.msra.mxu0 0
          %1873 = vmatprep.mubr.bf16.mxu0 0
          %1874 = vmatmul.mubr.bf16.gmra.mrb[0].mxu0 %v1551
          %v1875 = vpop.f32.mrb[0].mxu0
          %v1876 = vadd.f32 0.0, %v1875
          %v1877 = vpop.f32.mrb[0].mxu0
          %v1878 = vpop.f32.mrb[0].mxu0
          %v1879 = vpop.f32.mrb[0].mxu0
          %1880 = vdwg.mxu0
          %v1897 = vunpack.c.l.b16 %v1601
          %v1898 = vunpack.c.l.b16 %v1602
          %v1899 = vunpack.c.l.b16 %v1603
          %v1900 = vunpack.c.l.b16 %v1604
          %v1901 = vunpack.c.l.b16 %v1605
          %v1902 = vunpack.c.l.b16 %v1606
          %v1903 = vunpack.c.l.b16 %v1607
          %v1904 = vunpack.c.l.b16 %v1608
          %v1905 = vunpack.c.l.b16 %v1609
          %v1906 = vunpack.c.l.b16 %v1610
          %v1907 = vunpack.c.l.b16 %v1611
          %v1908 = vunpack.c.l.b16 %v1612
          %v1909 = vunpack.c.l.b16 %v1613
          %v1910 = vunpack.c.l.b16 %v1614
          %v1911 = vunpack.c.l.b16 %v1615
          %v1912 = vunpack.c.l.b16 %v1616
          %v1913 = vpack.c.b16 %v1898, %v1897
          %v1914 = vpack.c.b16 %v1900, %v1899
          %v1915 = vpack.c.b16 %v1902, %v1901
          %v1916 = vpack.c.b16 %v1904, %v1903
          %v1917 = vpack.c.b16 %v1906, %v1905
          %v1918 = vpack.c.b16 %v1908, %v1907
          %v1919 = vpack.c.b16 %v1910, %v1909
          %v1920 = vpack.c.b16 %v1912, %v1911
          %1929 = vmatprep.subr.bf16.mxu0 0
          %1930 = vmatpush1.bf16.msra.mxu0 %v1913
          %1931 = vmatprep.subr.bf16.mxu0 0
          %1932 = vmatpush1.bf16.msra.mxu0 %v1914
          %1933 = vmatprep.subr.bf16.mxu0 0
          %1934 = vmatpush1.bf16.msra.mxu0 %v1915
          %1935 = vmatprep.subr.bf16.mxu0 0
          %1936 = vmatpush1.bf16.msra.mxu0 %v1916
          %1937 = vmatprep.subr.bf16.mxu0 0
          %1938 = vmatpush1.bf16.msra.mxu0 %v1917
          %1939 = vmatprep.subr.bf16.mxu0 0
          %1940 = vmatpush1.bf16.msra.mxu0 %v1918
          %1941 = vmatprep.subr.bf16.mxu0 0
          %1942 = vmatpush1.bf16.msra.mxu0 %v1919
          %1943 = vmatprep.subr.bf16.mxu0 0
          %1944 = vmatpush1.bf16.msra.mxu0 %v1920
          %1945 = vmatprep.subr.bf16.mxu0 0
          %1946 = vmatpush1.bf16.msra.mxu0 0
          %1947 = vmatprep.subr.bf16.mxu0 0
          %1948 = vmatpush1.bf16.msra.mxu0 0
          %1949 = vmatprep.subr.bf16.mxu0 0
          %1950 = vmatpush1.bf16.msra.mxu0 0
          %1951 = vmatprep.subr.bf16.mxu0 0
          %1952 = vmatpush1.bf16.msra.mxu0 0
          %1953 = vmatprep.subr.bf16.mxu0 0
          %1954 = vmatpush1.bf16.msra.mxu0 0
          %1955 = vmatprep.subr.bf16.mxu0 0
          %1956 = vmatpush1.bf16.msra.mxu0 0
          %1957 = vmatprep.subr.bf16.mxu0 0
          %1958 = vmatpush1.bf16.msra.mxu0 0
          %1959 = vmatprep.subr.bf16.mxu0 0
          %1960 = vmatpush1.bf16.msra.mxu0 0
          %1961 = vmatprep.mubr.bf16.mxu0 0
          %1962 = vmatmul.mubr.bf16.gmra.mrb[0].mxu0 %v1552
          %v1963 = vpop.f32.mrb[0].mxu0
          %v1964 = vadd.f32 0.0, %v1963
          %v1965 = vpop.f32.mrb[0].mxu0
          %v1966 = vpop.f32.mrb[0].mxu0
          %v1967 = vpop.f32.mrb[0].mxu0
          %1968 = vdwg.mxu0
          %v1969 = vsel %vm527, %v1700, 0.0
          %v1970 = vsel %vm527, %v1788, 0.0
          %v1971 = vadd.f32 %v1969, %v1970
          %v1972 = vsel %vm527, %v1876, 0.0
          %v1973 = vadd.f32 %v1971, %v1972
          %v1974 = vsel %vm527, %v1964, 0.0
          %v1975 = vadd.f32 %v1973, %v1974
          %v1976 = vld [vmem:[%s4 + $0x4] sm:$0x1]
          %v1977 = vlaneseq
          %v1978 = vshrl.u32 %v1977, 7
          %v1979 = vsub.s32 0, %v1978
          %v1980 = vrot.slane %v1976, %v1979
          %v1981 = vadd.f32 %v1975, %v1980
          %v1982 = vadd.f32 %v381, %v1981
          %v1983 = vsel %vm527, %v1982, 0.0
          %1984 = vadd.xlane.f32.xlu0 %v1983
          %v1985 = vpop.xlane.xlu0 %1984
          %v1986 = vrcp.pop 32.0
          %v1987 = vmul.f32 %v1985, %v1986
          %v1988 = vsub.f32 %v1982, %v1987
          %v1989 = vmul.f32 %v1988, %v1988
          %v1990 = vsel %vm527, %v1989, 0.0
          %1991 = vadd.xlane.f32.xlu0 %v1990
          %v1992 = vpop.xlane.xlu0 %1991
          %v1993 = vmul.f32 %v1992, %v1986
          %v1994 = vadd.f32 %v1993, 1e-05
          %v1995 = vrsqrt.pop %v1994
          %v1996 = vmul.f32 %v1988, %v1995
          %v1997 = vld [vmem:[%s4] sm:$0x1]
          %v1998 = vlaneseq
          %v1999 = vshrl.u32 %v1998, 7
          %v2000 = vsub.s32 0, %v1999
          %v2001 = vrot.slane %v1997, %v2000
          %v2002 = vmul.f32 %v1996, %v2001
          %v2003 = vld [vmem:[%s4 + $0x1] sm:$0x1]
          %v2004 = vlaneseq
          %v2005 = vshrl.u32 %v2004, 7
          %v2006 = vsub.s32 0, %v2005
          %v2007 = vrot.slane %v2003, %v2006
          %v2008 = vadd.f32 %v2002, %v2007
          %v2009 = vpack.c.bf16 %v2008, %v2008
          %vm2010 = vcmask 257024
          %2011 = vst.msk [vmem:[#allocation2] sm:$0xf] %vm2010, %v2009
          %v2012 = vld [vmem:[%s4 + $0x5] sm:$0x1]
          %v2013 = vlaneseq
          %v2014 = vshrl.u32 %v2013, 7
          %v2015 = vsub.s32 0, %v2014
          %v2016 = vrot.slane %v2012, %v2015
          %v2017 = vadd.f32 %v2008, %v2016
          %2018 = vst.msk [vmem:[#allocation3] sm:$0xff] %vm527, %v2017
        $region56: #{tpu_custom_call.1} parent=51 // pred_fallthru
          _
        %v2019 = vld [vmem:[#allocation2] sm:$0xf]
        %v2020 = vld [vmem:[%s363] sm:$0xff]
        %v2021 = vld [vmem:[%s363 + $0x8] sm:$0xff]
        %v2022 = vld [vmem:[%s363 + $0x10] sm:$0xff]
        %v2023 = vld [vmem:[%s363 + $0x18] sm:$0xff]
        %v2024 = vld [vmem:[%s363 + $0x20] sm:$0xff]
        %v2025 = vld [vmem:[%s363 + $0x28] sm:$0xff]
        %v2026 = vld [vmem:[%s363 + $0x30] sm:$0xff]
        %v2027 = vld [vmem:[%s363 + $0x38] sm:$0xff]
        %v2028 = vld [vmem:[%s363 + $0x40] sm:$0xff]
        %v2029 = vld [vmem:[%s363 + $0x48] sm:$0xff]
        %v2030 = vld [vmem:[%s363 + $0x50] sm:$0xff]
        %v2031 = vld [vmem:[%s363 + $0x58] sm:$0xff]
        %v2032 = vld [vmem:[%s363 + $0x60] sm:$0xff]
        %v2033 = vld [vmem:[%s363 + $0x68] sm:$0xff]
        %v2034 = vld [vmem:[%s363 + $0x70] sm:$0xff]
        %v2035 = vld [vmem:[%s363 + $0x78] sm:$0xff]
        %v2036 = vld [vmem:[%s363 + $0x80] sm:$0xff]
        %v2037 = vld [vmem:[%s363 + $0x88] sm:$0xff]
        %v2038 = vld [vmem:[%s363 + $0x90] sm:$0xff]
        %v2039 = vld [vmem:[%s363 + $0x98] sm:$0xff]
        %v2040 = vld [vmem:[%s363 + $0xa0] sm:$0xff]
        %v2041 = vld [vmem:[%s363 + $0xa8] sm:$0xff]
        %v2042 = vld [vmem:[%s363 + $0xb0] sm:$0xff]
        %v2043 = vld [vmem:[%s363 + $0xb8] sm:$0xff]
        %v2044 = vld [vmem:[%s363 + $0xc0] sm:$0xff]
        %v2045 = vld [vmem:[%s363 + $0xc8] sm:$0xff]
        %v2046 = vld [vmem:[%s363 + $0xd0] sm:$0xff]
        %v2047 = vld [vmem:[%s363 + $0xd8] sm:$0xff]
        %v2048 = vld [vmem:[%s363 + $0xe0] sm:$0xff]
        %v2049 = vld [vmem:[%s363 + $0xe8] sm:$0xff]
        %v2050 = vld [vmem:[%s363 + $0xf0] sm:$0xff]
        %v2051 = vld [vmem:[%s363 + $0xf8] sm:$0xff]
        %v2052 = vld [vmem:[%s368] sm:$0xff]
        %v2053 = vld [vmem:[%s368 + $0x8] sm:$0xff]
        %v2056 = vlaneseq
        %v2057 = vshrl.u32 %v2056, 7
        %v2058 = vsub.s32 0, %v2057
        %v2059 = vrot.slane %v2052, %v2058
        %v2060 = vlaneseq
        %v2061 = vshrl.u32 %v2060, 7
        %v2062 = vsub.s32 1, %v2061
        %v2063 = vrot.slane %v2052, %v2062
        %v2064 = vlaneseq
        %v2065 = vshrl.u32 %v2064, 7
        %v2066 = vsub.s32 2, %v2065
        %v2067 = vrot.slane %v2052, %v2066
        %v2068 = vlaneseq
        %v2069 = vshrl.u32 %v2068, 7
        %v2070 = vsub.s32 3, %v2069
        %v2071 = vrot.slane %v2052, %v2070
        %v2072 = vlaneseq
        %v2073 = vshrl.u32 %v2072, 7
        %v2074 = vsub.s32 4, %v2073
        %v2075 = vrot.slane %v2052, %v2074
        %v2076 = vlaneseq
        %v2077 = vshrl.u32 %v2076, 7
        %v2078 = vsub.s32 5, %v2077
        %v2079 = vrot.slane %v2052, %v2078
        %v2080 = vlaneseq
        %v2081 = vshrl.u32 %v2080, 7
        %v2082 = vsub.s32 6, %v2081
        %v2083 = vrot.slane %v2052, %v2082
        %v2084 = vlaneseq
        %v2085 = vshrl.u32 %v2084, 7
        %v2086 = vsub.s32 7, %v2085
        %v2087 = vrot.slane %v2052, %v2086
        %v2088 = vlaneseq
        %v2089 = vshrl.u32 %v2088, 7
        %v2090 = vsub.s32 0, %v2089
        %v2091 = vrot.slane %v2053, %v2090
        %v2092 = vlaneseq
        %v2093 = vshrl.u32 %v2092, 7
        %v2094 = vsub.s32 1, %v2093
        %v2095 = vrot.slane %v2053, %v2094
        %v2096 = vlaneseq
        %v2097 = vshrl.u32 %v2096, 7
        %v2098 = vsub.s32 2, %v2097
        %v2099 = vrot.slane %v2053, %v2098
        %v2100 = vlaneseq
        %v2101 = vshrl.u32 %v2100, 7
        %v2102 = vsub.s32 3, %v2101
        %v2103 = vrot.slane %v2053, %v2102
        %v2104 = vlaneseq
        %v2105 = vshrl.u32 %v2104, 7
        %v2106 = vsub.s32 4, %v2105
        %v2107 = vrot.slane %v2053, %v2106
        %v2108 = vlaneseq
        %v2109 = vshrl.u32 %v2108, 7
        %v2110 = vsub.s32 5, %v2109
        %v2111 = vrot.slane %v2053, %v2110
        %v2112 = vlaneseq
        %v2113 = vshrl.u32 %v2112, 7
        %v2114 = vsub.s32 6, %v2113
        %v2115 = vrot.slane %v2053, %v2114
        %v2116 = vlaneseq
        %v2117 = vshrl.u32 %v2116, 7
        %v2118 = vsub.s32 7, %v2117
        %v2119 = vrot.slane %v2053, %v2118
        %v2168 = vunpack.c.l.b16 %v2020
        %v2169 = vunpack.c.h.b16 %v2020
        %v2170 = vunpack.c.l.b16 %v2021
        %v2171 = vunpack.c.h.b16 %v2021
        %v2172 = vunpack.c.l.b16 %v2022
        %v2173 = vunpack.c.h.b16 %v2022
        %v2174 = vunpack.c.l.b16 %v2023
        %v2175 = vunpack.c.h.b16 %v2023
        %v2176 = vunpack.c.l.b16 %v2024
        %v2177 = vunpack.c.h.b16 %v2024
        %v2178 = vunpack.c.l.b16 %v2025
        %v2179 = vunpack.c.h.b16 %v2025
        %v2180 = vunpack.c.l.b16 %v2026
        %v2181 = vunpack.c.h.b16 %v2026
        %v2182 = vunpack.c.l.b16 %v2027
        %v2183 = vunpack.c.h.b16 %v2027
        %v2184 = vunpack.c.l.b16 %v2028
        %v2185 = vunpack.c.h.b16 %v2028
        %v2186 = vunpack.c.l.b16 %v2029
        %v2187 = vunpack.c.h.b16 %v2029
        %v2188 = vunpack.c.l.b16 %v2030
        %v2189 = vunpack.c.h.b16 %v2030
        %v2190 = vunpack.c.l.b16 %v2031
        %v2191 = vunpack.c.h.b16 %v2031
        %v2192 = vunpack.c.l.b16 %v2032
        %v2193 = vunpack.c.h.b16 %v2032
        %v2194 = vunpack.c.l.b16 %v2033
        %v2195 = vunpack.c.h.b16 %v2033
        %v2196 = vunpack.c.l.b16 %v2034
        %v2197 = vunpack.c.h.b16 %v2034
        %v2198 = vunpack.c.l.b16 %v2035
        %v2199 = vunpack.c.h.b16 %v2035
        %v2200 = vunpack.c.l.b16 %v2036
        %v2201 = vunpack.c.h.b16 %v2036
        %v2202 = vunpack.c.l.b16 %v2037
        %v2203 = vunpack.c.h.b16 %v2037
        %v2204 = vunpack.c.l.b16 %v2038
        %v2205 = vunpack.c.h.b16 %v2038
        %v2206 = vunpack.c.l.b16 %v2039
        %v2207 = vunpack.c.h.b16 %v2039
        %v2208 = vunpack.c.l.b16 %v2040
        %v2209 = vunpack.c.h.b16 %v2040
        %v2210 = vunpack.c.l.b16 %v2041
        %v2211 = vunpack.c.h.b16 %v2041
        %v2212 = vunpack.c.l.b16 %v2042
        %v2213 = vunpack.c.h.b16 %v2042
        %v2214 = vunpack.c.l.b16 %v2043
        %v2215 = vunpack.c.h.b16 %v2043
        %v2216 = vunpack.c.l.b16 %v2044
        %v2217 = vunpack.c.h.b16 %v2044
        %v2218 = vunpack.c.l.b16 %v2045
        %v2219 = vunpack.c.h.b16 %v2045
        %v2220 = vunpack.c.l.b16 %v2046
        %v2221 = vunpack.c.h.b16 %v2046
        %v2222 = vunpack.c.l.b16 %v2047
        %v2223 = vunpack.c.h.b16 %v2047
        %v2224 = vunpack.c.l.b16 %v2048
        %v2225 = vunpack.c.h.b16 %v2048
        %v2226 = vunpack.c.l.b16 %v2049
        %v2227 = vunpack.c.h.b16 %v2049
        %v2228 = vunpack.c.l.b16 %v2050
        %v2229 = vunpack.c.h.b16 %v2050
        %v2230 = vunpack.c.l.b16 %v2051
        %v2231 = vunpack.c.h.b16 %v2051
        %v2232 = vpack.c.b16 %v2184, %v2168
        %v2233 = vpack.c.b16 %v2185, %v2169
        %v2234 = vpack.c.b16 %v2186, %v2170
        %v2235 = vpack.c.b16 %v2187, %v2171
        %v2236 = vpack.c.b16 %v2188, %v2172
        %v2237 = vpack.c.b16 %v2189, %v2173
        %v2238 = vpack.c.b16 %v2190, %v2174
        %v2239 = vpack.c.b16 %v2191, %v2175
        %v2240 = vpack.c.b16 %v2192, %v2176
        %v2241 = vpack.c.b16 %v2193, %v2177
        %v2242 = vpack.c.b16 %v2194, %v2178
        %v2243 = vpack.c.b16 %v2195, %v2179
        %v2244 = vpack.c.b16 %v2196, %v2180
        %v2245 = vpack.c.b16 %v2197, %v2181
        %v2246 = vpack.c.b16 %v2198, %v2182
        %v2247 = vpack.c.b16 %v2199, %v2183
        %v2248 = vpack.c.b16 %v2216, %v2200
        %v2249 = vpack.c.b16 %v2217, %v2201
        %v2250 = vpack.c.b16 %v2218, %v2202
        %v2251 = vpack.c.b16 %v2219, %v2203
        %v2252 = vpack.c.b16 %v2220, %v2204
        %v2253 = vpack.c.b16 %v2221, %v2205
        %v2254 = vpack.c.b16 %v2222, %v2206
        %v2255 = vpack.c.b16 %v2223, %v2207
        %v2256 = vpack.c.b16 %v2224, %v2208
        %v2257 = vpack.c.b16 %v2225, %v2209
        %v2258 = vpack.c.b16 %v2226, %v2210
        %v2259 = vpack.c.b16 %v2227, %v2211
        %v2260 = vpack.c.b16 %v2228, %v2212
        %v2261 = vpack.c.b16 %v2229, %v2213
        %v2262 = vpack.c.b16 %v2230, %v2214
        %v2263 = vpack.c.b16 %v2231, %v2215
        %vm2296 = vcmask 261120
        %v2298 = vsel %vm2296, %v2019, 0
        %2300 = vmatprep.subr.bf16.mxu0 %v2233
        %2301 = vmatpush1.bf16.msra.mxu0 %v2232
        %2302 = vmatprep.subr.bf16.mxu0 %v2249
        %2303 = vmatpush1.bf16.msra.mxu0 %v2248
        %2304 = vmatprep.subr.bf16.mxu0 0
        %2305 = vmatpush1.bf16.msra.mxu0 0
        %2306 = vmatprep.subr.bf16.mxu0 0
        %2307 = vmatpush1.bf16.msra.mxu0 0
        %2308 = vmatprep.subr.bf16.mxu0 0
        %2309 = vmatpush1.bf16.msra.mxu0 0
        %2310 = vmatprep.subr.bf16.mxu0 0
        %2311 = vmatpush1.bf16.msra.mxu0 0
        %2312 = vmatprep.subr.bf16.mxu0 0
        %2313 = vmatpush1.bf16.msra.mxu0 0
        %2314 = vmatprep.subr.bf16.mxu0 0
        %2315 = vmatpush1.bf16.msra.mxu0 0
        %2316 = vmatprep.subr.bf16.mxu0 0
        %2317 = vmatpush1.bf16.msra.mxu0 0
        %2318 = vmatprep.subr.bf16.mxu0 0
        %2319 = vmatpush1.bf16.msra.mxu0 0
        %2320 = vmatprep.subr.bf16.mxu0 0
        %2321 = vmatpush1.bf16.msra.mxu0 0
        %2322 = vmatprep.subr.bf16.mxu0 0
        %2323 = vmatpush1.bf16.msra.mxu0 0
        %2324 = vmatprep.subr.bf16.mxu0 0
        %2325 = vmatpush1.bf16.msra.mxu0 0
        %2326 = vmatprep.subr.bf16.mxu0 0
        %2327 = vmatpush1.bf16.msra.mxu0 0
        %2328 = vmatprep.subr.bf16.mxu0 0
        %2329 = vmatpush1.bf16.msra.mxu0 0
        %2330 = vmatprep.subr.bf16.mxu0 0
        %2331 = vmatpush1.bf16.msra.mxu0 0
        %2332 = vmatprep.mubr.bf16.mxu0 0
        %2333 = vmatmul.mubr.bf16.gmra.mrb[0].mxu0 %v2298
        %v2334 = vpop.f32.mrb[0].mxu0
        %v2335 = vadd.f32 %v2059, %v2334
        %v2336 = vpop.f32.mrb[0].mxu0
        %v2337 = vadd.f32 %v2063, %v2336
        %v2338 = vpop.f32.mrb[0].mxu0
        %v2339 = vpop.f32.mrb[0].mxu0
        %2340 = vdwg.mxu0
        %2341 = vmatprep.subr.bf16.mxu0 %v2235
        %2342 = vmatpush1.bf16.msra.mxu0 %v2234
        %2343 = vmatprep.subr.bf16.mxu0 %v2251
        %2344 = vmatpush1.bf16.msra.mxu0 %v2250
        %2345 = vmatprep.subr.bf16.mxu0 0
        %2346 = vmatpush1.bf16.msra.mxu0 0
        %2347 = vmatprep.subr.bf16.mxu0 0
        %2348 = vmatpush1.bf16.msra.mxu0 0
        %2349 = vmatprep.subr.bf16.mxu0 0
        %2350 = vmatpush1.bf16.msra.mxu0 0
        %2351 = vmatprep.subr.bf16.mxu0 0
        %2352 = vmatpush1.bf16.msra.mxu0 0
        %2353 = vmatprep.subr.bf16.mxu0 0
        %2354 = vmatpush1.bf16.msra.mxu0 0
        %2355 = vmatprep.subr.bf16.mxu0 0
        %2356 = vmatpush1.bf16.msra.mxu0 0
        %2357 = vmatprep.subr.bf16.mxu0 0
        %2358 = vmatpush1.bf16.msra.mxu0 0
        %2359 = vmatprep.subr.bf16.mxu0 0
        %2360 = vmatpush1.bf16.msra.mxu0 0
        %2361 = vmatprep.subr.bf16.mxu0 0
        %2362 = vmatpush1.bf16.msra.mxu0 0
        %2363 = vmatprep.subr.bf16.mxu0 0
        %2364 = vmatpush1.bf16.msra.mxu0 0
        %2365 = vmatprep.subr.bf16.mxu0 0
        %2366 = vmatpush1.bf16.msra.mxu0 0
        %2367 = vmatprep.subr.bf16.mxu0 0
        %2368 = vmatpush1.bf16.msra.mxu0 0
        %2369 = vmatprep.subr.bf16.mxu0 0
        %2370 = vmatpush1.bf16.msra.mxu0 0
        %2371 = vmatprep.subr.bf16.mxu0 0
        %2372 = vmatpush1.bf16.msra.mxu0 0
        %2373 = vmatprep.mubr.bf16.mxu0 0
        %2374 = vmatmul.mubr.bf16.gmra.mrb[0].mxu0 %v2298
        %v2375 = vpop.f32.mrb[0].mxu0
        %v2376 = vadd.f32 %v2067, %v2375
        %v2377 = vpop.f32.mrb[0].mxu0
        %v2378 = vadd.f32 %v2071, %v2377
        %v2379 = vpop.f32.mrb[0].mxu0
        %v2380 = vpop.f32.mrb[0].mxu0
        %2381 = vdwg.mxu0
        %2382 = vmatprep.subr.bf16.mxu0 %v2237
        %2383 = vmatpush1.bf16.msra.mxu0 %v2236
        %2384 = vmatprep.subr.bf16.mxu0 %v2253
        %2385 = vmatpush1.bf16.msra.mxu0 %v2252
        %2386 = vmatprep.subr.bf16.mxu0 0
        %2387 = vmatpush1.bf16.msra.mxu0 0
        %2388 = vmatprep.subr.bf16.mxu0 0
        %2389 = vmatpush1.bf16.msra.mxu0 0
        %2390 = vmatprep.subr.bf16.mxu0 0
        %2391 = vmatpush1.bf16.msra.mxu0 0
        %2392 = vmatprep.subr.bf16.mxu0 0
        %2393 = vmatpush1.bf16.msra.mxu0 0
        %2394 = vmatprep.subr.bf16.mxu0 0
        %2395 = vmatpush1.bf16.msra.mxu0 0
        %2396 = vmatprep.subr.bf16.mxu0 0
        %2397 = vmatpush1.bf16.msra.mxu0 0
        %2398 = vmatprep.subr.bf16.mxu0 0
        %2399 = vmatpush1.bf16.msra.mxu0 0
        %2400 = vmatprep.subr.bf16.mxu0 0
        %2401 = vmatpush1.bf16.msra.mxu0 0
        %2402 = vmatprep.subr.bf16.mxu0 0
        %2403 = vmatpush1.bf16.msra.mxu0 0
        %2404 = vmatprep.subr.bf16.mxu0 0
        %2405 = vmatpush1.bf16.msra.mxu0 0
        %2406 = vmatprep.subr.bf16.mxu0 0
        %2407 = vmatpush1.bf16.msra.mxu0 0
        %2408 = vmatprep.subr.bf16.mxu0 0
        %2409 = vmatpush1.bf16.msra.mxu0 0
        %2410 = vmatprep.subr.bf16.mxu0 0
        %2411 = vmatpush1.bf16.msra.mxu0 0
        %2412 = vmatprep.subr.bf16.mxu0 0
        %2413 = vmatpush1.bf16.msra.mxu0 0
        %2414 = vmatprep.mubr.bf16.mxu0 0
        %2415 = vmatmul.mubr.bf16.gmra.mrb[0].mxu0 %v2298
        %v2416 = vpop.f32.mrb[0].mxu0
        %v2417 = vadd.f32 %v2075, %v2416
        %v2418 = vpop.f32.mrb[0].mxu0
        %v2419 = vadd.f32 %v2079, %v2418
        %v2420 = vpop.f32.mrb[0].mxu0
        %v2421 = vpop.f32.mrb[0].mxu0
        %2422 = vdwg.mxu0
        %2423 = vmatprep.subr.bf16.mxu0 %v2239
        %2424 = vmatpush1.bf16.msra.mxu0 %v2238
        %2425 = vmatprep.subr.bf16.mxu0 %v2255
        %2426 = vmatpush1.bf16.msra.mxu0 %v2254
        %2427 = vmatprep.subr.bf16.mxu0 0
        %2428 = vmatpush1.bf16.msra.mxu0 0
        %2429 = vmatprep.subr.bf16.mxu0 0
        %2430 = vmatpush1.bf16.msra.mxu0 0
        %2431 = vmatprep.subr.bf16.mxu0 0
        %2432 = vmatpush1.bf16.msra.mxu0 0
        %2433 = vmatprep.subr.bf16.mxu0 0
        %2434 = vmatpush1.bf16.msra.mxu0 0
        %2435 = vmatprep.subr.bf16.mxu0 0
        %2436 = vmatpush1.bf16.msra.mxu0 0
        %2437 = vmatprep.subr.bf16.mxu0 0
        %2438 = vmatpush1.bf16.msra.mxu0 0
        %2439 = vmatprep.subr.bf16.mxu0 0
        %2440 = vmatpush1.bf16.msra.mxu0 0
        %2441 = vmatprep.subr.bf16.mxu0 0
        %2442 = vmatpush1.bf16.msra.mxu0 0
        %2443 = vmatprep.subr.bf16.mxu0 0
        %2444 = vmatpush1.bf16.msra.mxu0 0
        %2445 = vmatprep.subr.bf16.mxu0 0
        %2446 = vmatpush1.bf16.msra.mxu0 0
        %2447 = vmatprep.subr.bf16.mxu0 0
        %2448 = vmatpush1.bf16.msra.mxu0 0
        %2449 = vmatprep.subr.bf16.mxu0 0
        %2450 = vmatpush1.bf16.msra.mxu0 0
        %2451 = vmatprep.subr.bf16.mxu0 0
        %2452 = vmatpush1.bf16.msra.mxu0 0
        %2453 = vmatprep.subr.bf16.mxu0 0
        %2454 = vmatpush1.bf16.msra.mxu0 0
        %2455 = vmatprep.mubr.bf16.mxu0 0
        %2456 = vmatmul.mubr.bf16.gmra.mrb[0].mxu0 %v2298
        %v2457 = vpop.f32.mrb[0].mxu0
        %v2458 = vadd.f32 %v2083, %v2457
        %v2459 = vpop.f32.mrb[0].mxu0
        %v2460 = vadd.f32 %v2087, %v2459
        %v2461 = vpop.f32.mrb[0].mxu0
        %v2462 = vpop.f32.mrb[0].mxu0
        %2463 = vdwg.mxu0
        %2464 = vmatprep.subr.bf16.mxu0 %v2241
        %2465 = vmatpush1.bf16.msra.mxu0 %v2240
        %2466 = vmatprep.subr.bf16.mxu0 %v2257
        %2467 = vmatpush1.bf16.msra.mxu0 %v2256
        %2468 = vmatprep.subr.bf16.mxu0 0
        %2469 = vmatpush1.bf16.msra.mxu0 0
        %2470 = vmatprep.subr.bf16.mxu0 0
        %2471 = vmatpush1.bf16.msra.mxu0 0
        %2472 = vmatprep.subr.bf16.mxu0 0
        %2473 = vmatpush1.bf16.msra.mxu0 0
        %2474 = vmatprep.subr.bf16.mxu0 0
        %2475 = vmatpush1.bf16.msra.mxu0 0
        %2476 = vmatprep.subr.bf16.mxu0 0
        %2477 = vmatpush1.bf16.msra.mxu0 0
        %2478 = vmatprep.subr.bf16.mxu0 0
        %2479 = vmatpush1.bf16.msra.mxu0 0
        %2480 = vmatprep.subr.bf16.mxu0 0
        %2481 = vmatpush1.bf16.msra.mxu0 0
        %2482 = vmatprep.subr.bf16.mxu0 0
        %2483 = vmatpush1.bf16.msra.mxu0 0
        %2484 = vmatprep.subr.bf16.mxu0 0
        %2485 = vmatpush1.bf16.msra.mxu0 0
        %2486 = vmatprep.subr.bf16.mxu0 0
        %2487 = vmatpush1.bf16.msra.mxu0 0
        %2488 = vmatprep.subr.bf16.mxu0 0
        %2489 = vmatpush1.bf16.msra.mxu0 0
        %2490 = vmatprep.subr.bf16.mxu0 0
        %2491 = vmatpush1.bf16.msra.mxu0 0
        %2492 = vmatprep.subr.bf16.mxu0 0
        %2493 = vmatpush1.bf16.msra.mxu0 0
        %2494 = vmatprep.subr.bf16.mxu0 0
        %2495 = vmatpush1.bf16.msra.mxu0 0
        %2496 = vmatprep.mubr.bf16.mxu0 0
        %2497 = vmatmul.mubr.bf16.gmra.mrb[0].mxu0 %v2298
        %v2498 = vpop.f32.mrb[0].mxu0
        %v2499 = vadd.f32 %v2091, %v2498
        %v2500 = vpop.f32.mrb[0].mxu0
        %v2501 = vadd.f32 %v2095, %v2500
        %v2502 = vpop.f32.mrb[0].mxu0
        %v2503 = vpop.f32.mrb[0].mxu0
        %2504 = vdwg.mxu0
        %2505 = vmatprep.subr.bf16.mxu0 %v2243
        %2506 = vmatpush1.bf16.msra.mxu0 %v2242
        %2507 = vmatprep.subr.bf16.mxu0 %v2259
        %2508 = vmatpush1.bf16.msra.mxu0 %v2258
        %2509 = vmatprep.subr.bf16.mxu0 0
        %2510 = vmatpush1.bf16.msra.mxu0 0
        %2511 = vmatprep.subr.bf16.mxu0 0
        %2512 = vmatpush1.bf16.msra.mxu0 0
        %2513 = vmatprep.subr.bf16.mxu0 0
        %2514 = vmatpush1.bf16.msra.mxu0 0
        %2515 = vmatprep.subr.bf16.mxu0 0
        %2516 = vmatpush1.bf16.msra.mxu0 0
        %2517 = vmatprep.subr.bf16.mxu0 0
        %2518 = vmatpush1.bf16.msra.mxu0 0
        %2519 = vmatprep.subr.bf16.mxu0 0
        %2520 = vmatpush1.bf16.msra.mxu0 0
        %2521 = vmatprep.subr.bf16.mxu0 0
        %2522 = vmatpush1.bf16.msra.mxu0 0
        %2523 = vmatprep.subr.bf16.mxu0 0
        %2524 = vmatpush1.bf16.msra.mxu0 0
        %2525 = vmatprep.subr.bf16.mxu0 0
        %2526 = vmatpush1.bf16.msra.mxu0 0
        %2527 = vmatprep.subr.bf16.mxu0 0
        %2528 = vmatpush1.bf16.msra.mxu0 0
        %2529 = vmatprep.subr.bf16.mxu0 0
        %2530 = vmatpush1.bf16.msra.mxu0 0
        %2531 = vmatprep.subr.bf16.mxu0 0
        %2532 = vmatpush1.bf16.msra.mxu0 0
        %2533 = vmatprep.subr.bf16.mxu0 0
        %2534 = vmatpush1.bf16.msra.mxu0 0
        %2535 = vmatprep.subr.bf16.mxu0 0
        %2536 = vmatpush1.bf16.msra.mxu0 0
        %2537 = vmatprep.mubr.bf16.mxu0 0
        %2538 = vmatmul.mubr.bf16.gmra.mrb[0].mxu0 %v2298
        %v2539 = vpop.f32.mrb[0].mxu0
        %v2540 = vadd.f32 %v2099, %v2539
        %v2541 = vpop.f32.mrb[0].mxu0
        %v2542 = vadd.f32 %v2103, %v2541
        %v2543 = vpop.f32.mrb[0].mxu0
        %v2544 = vpop.f32.mrb[0].mxu0
        %2545 = vdwg.mxu0
        %2546 = vmatprep.subr.bf16.mxu0 %v2245
        %2547 = vmatpush1.bf16.msra.mxu0 %v2244
        %2548 = vmatprep.subr.bf16.mxu0 %v2261
        %2549 = vmatpush1.bf16.msra.mxu0 %v2260
        %2550 = vmatprep.subr.bf16.mxu0 0
        %2551 = vmatpush1.bf16.msra.mxu0 0
        %2552 = vmatprep.subr.bf16.mxu0 0
        %2553 = vmatpush1.bf16.msra.mxu0 0
        %2554 = vmatprep.subr.bf16.mxu0 0
        %2555 = vmatpush1.bf16.msra.mxu0 0
        %2556 = vmatprep.subr.bf16.mxu0 0
        %2557 = vmatpush1.bf16.msra.mxu0 0
        %2558 = vmatprep.subr.bf16.mxu0 0
        %2559 = vmatpush1.bf16.msra.mxu0 0
        %2560 = vmatprep.subr.bf16.mxu0 0
        %2561 = vmatpush1.bf16.msra.mxu0 0
        %2562 = vmatprep.subr.bf16.mxu0 0
        %2563 = vmatpush1.bf16.msra.mxu0 0
        %2564 = vmatprep.subr.bf16.mxu0 0
        %2565 = vmatpush1.bf16.msra.mxu0 0
        %2566 = vmatprep.subr.bf16.mxu0 0
        %2567 = vmatpush1.bf16.msra.mxu0 0
        %2568 = vmatprep.subr.bf16.mxu0 0
        %2569 = vmatpush1.bf16.msra.mxu0 0
        %2570 = vmatprep.subr.bf16.mxu0 0
        %2571 = vmatpush1.bf16.msra.mxu0 0
        %2572 = vmatprep.subr.bf16.mxu0 0
        %2573 = vmatpush1.bf16.msra.mxu0 0
        %2574 = vmatprep.subr.bf16.mxu0 0
        %2575 = vmatpush1.bf16.msra.mxu0 0
        %2576 = vmatprep.subr.bf16.mxu0 0
        %2577 = vmatpush1.bf16.msra.mxu0 0
        %2578 = vmatprep.mubr.bf16.mxu0 0
        %2579 = vmatmul.mubr.bf16.gmra.mrb[0].mxu0 %v2298
        %v2580 = vpop.f32.mrb[0].mxu0
        %v2581 = vadd.f32 %v2107, %v2580
        %v2582 = vpop.f32.mrb[0].mxu0
        %v2583 = vadd.f32 %v2111, %v2582
        %v2584 = vpop.f32.mrb[0].mxu0
        %v2585 = vpop.f32.mrb[0].mxu0
        %2586 = vdwg.mxu0
        %2587 = vmatprep.subr.bf16.mxu0 %v2247
        %2588 = vmatpush1.bf16.msra.mxu0 %v2246
        %2589 = vmatprep.subr.bf16.mxu0 %v2263
        %2590 = vmatpush1.bf16.msra.mxu0 %v2262
        %2591 = vmatprep.subr.bf16.mxu0 0
        %2592 = vmatpush1.bf16.msra.mxu0 0
        %2593 = vmatprep.subr.bf16.mxu0 0
        %2594 = vmatpush1.bf16.msra.mxu0 0
        %2595 = vmatprep.subr.bf16.mxu0 0
        %2596 = vmatpush1.bf16.msra.mxu0 0
        %2597 = vmatprep.subr.bf16.mxu0 0
        %2598 = vmatpush1.bf16.msra.mxu0 0
        %2599 = vmatprep.subr.bf16.mxu0 0
        %2600 = vmatpush1.bf16.msra.mxu0 0
        %2601 = vmatprep.subr.bf16.mxu0 0
        %2602 = vmatpush1.bf16.msra.mxu0 0
        %2603 = vmatprep.subr.bf16.mxu0 0
        %2604 = vmatpush1.bf16.msra.mxu0 0
        %2605 = vmatprep.subr.bf16.mxu0 0
        %2606 = vmatpush1.bf16.msra.mxu0 0
        %2607 = vmatprep.subr.bf16.mxu0 0
        %2608 = vmatpush1.bf16.msra.mxu0 0
        %2609 = vmatprep.subr.bf16.mxu0 0
        %2610 = vmatpush1.bf16.msra.mxu0 0
        %2611 = vmatprep.subr.bf16.mxu0 0
        %2612 = vmatpush1.bf16.msra.mxu0 0
        %2613 = vmatprep.subr.bf16.mxu0 0
        %2614 = vmatpush1.bf16.msra.mxu0 0
        %2615 = vmatprep.subr.bf16.mxu0 0
        %2616 = vmatpush1.bf16.msra.mxu0 0
        %2617 = vmatprep.subr.bf16.mxu0 0
        %2618 = vmatpush1.bf16.msra.mxu0 0
        %2619 = vmatprep.mubr.bf16.mxu0 0
        %2620 = vmatmul.mubr.bf16.gmra.mrb[0].mxu0 %v2298
        %v2621 = vpop.f32.mrb[0].mxu0
        %v2622 = vadd.f32 %v2115, %v2621
        %v2623 = vpop.f32.mrb[0].mxu0
        %v2624 = vadd.f32 %v2119, %v2623
        %v2625 = vpop.f32.mrb[0].mxu0
        %v2626 = vpop.f32.mrb[0].mxu0
        %2627 = vdwg.mxu0
        %v2628 = vmax.f32 %v2335, 0.0
        %v2629 = vmax.f32 %v2337, 0.0
        %v2630 = vmax.f32 %v2376, 0.0
        %v2631 = vmax.f32 %v2378, 0.0
        %v2632 = vmax.f32 %v2417, 0.0
        %v2633 = vmax.f32 %v2419, 0.0
        %v2634 = vmax.f32 %v2458, 0.0
        %v2635 = vmax.f32 %v2460, 0.0
        %v2636 = vmax.f32 %v2499, 0.0
        %v2637 = vmax.f32 %v2501, 0.0
        %v2638 = vmax.f32 %v2540, 0.0
        %v2639 = vmax.f32 %v2542, 0.0
        %v2640 = vmax.f32 %v2581, 0.0
        %v2641 = vmax.f32 %v2583, 0.0
        %v2642 = vmax.f32 %v2622, 0.0
        %v2643 = vmax.f32 %v2624, 0.0
        %v2644 = vld [vmem:[#allocation3] sm:$0xff]
        %v2645 = vpack.c.bf16 %v2628, %v2628
        %v2646 = vpack.c.bf16 %v2629, %v2629
        %v2647 = vpack.c.bf16 %v2630, %v2630
        %v2648 = vpack.c.bf16 %v2631, %v2631
        %v2649 = vpack.c.bf16 %v2632, %v2632
        %v2650 = vpack.c.bf16 %v2633, %v2633
        %v2651 = vpack.c.bf16 %v2634, %v2634
        %v2652 = vpack.c.bf16 %v2635, %v2635
        %v2653 = vpack.c.bf16 %v2636, %v2636
        %v2654 = vpack.c.bf16 %v2637, %v2637
        %v2655 = vpack.c.bf16 %v2638, %v2638
        %v2656 = vpack.c.bf16 %v2639, %v2639
        %v2657 = vpack.c.bf16 %v2640, %v2640
        %v2658 = vpack.c.bf16 %v2641, %v2641
        %v2659 = vpack.c.bf16 %v2642, %v2642
        %v2660 = vpack.c.bf16 %v2643, %v2643
        %v2661 = vld [vmem:[%s374] sm:$0xf]
        %v2662 = vld [vmem:[%s374 + $0x4] sm:$0xf]
        %v2663 = vld [vmem:[%s374 + $0x8] sm:$0xf]
        %v2664 = vld [vmem:[%s374 + $0xc] sm:$0xf]
        %v2665 = vld [vmem:[%s374 + $0x10] sm:$0xf]
        %v2666 = vld [vmem:[%s374 + $0x14] sm:$0xf]
        %v2667 = vld [vmem:[%s374 + $0x18] sm:$0xf]
        %v2668 = vld [vmem:[%s374 + $0x1c] sm:$0xf]
        %v2669 = vld [vmem:[%s374 + $0x20] sm:$0xf]
        %v2670 = vld [vmem:[%s374 + $0x24] sm:$0xf]
        %v2671 = vld [vmem:[%s374 + $0x28] sm:$0xf]
        %v2672 = vld [vmem:[%s374 + $0x2c] sm:$0xf]
        %v2673 = vld [vmem:[%s374 + $0x30] sm:$0xf]
        %v2674 = vld [vmem:[%s374 + $0x34] sm:$0xf]
        %v2675 = vld [vmem:[%s374 + $0x38] sm:$0xf]
        %v2676 = vld [vmem:[%s374 + $0x3c] sm:$0xf]
        %v2677 = vld [vmem:[%s374 + $0x40] sm:$0xf]
        %v2678 = vld [vmem:[%s374 + $0x44] sm:$0xf]
        %v2679 = vld [vmem:[%s374 + $0x48] sm:$0xf]
        %v2680 = vld [vmem:[%s374 + $0x4c] sm:$0xf]
        %v2681 = vld [vmem:[%s374 + $0x50] sm:$0xf]
        %v2682 = vld [vmem:[%s374 + $0x54] sm:$0xf]
        %v2683 = vld [vmem:[%s374 + $0x58] sm:$0xf]
        %v2684 = vld [vmem:[%s374 + $0x5c] sm:$0xf]
        %v2685 = vld [vmem:[%s374 + $0x60] sm:$0xf]
        %v2686 = vld [vmem:[%s374 + $0x64] sm:$0xf]
        %v2687 = vld [vmem:[%s374 + $0x68] sm:$0xf]
        %v2688 = vld [vmem:[%s374 + $0x6c] sm:$0xf]
        %v2689 = vld [vmem:[%s374 + $0x70] sm:$0xf]
        %v2690 = vld [vmem:[%s374 + $0x74] sm:$0xf]
        %v2691 = vld [vmem:[%s374 + $0x78] sm:$0xf]
        %v2692 = vld [vmem:[%s374 + $0x7c] sm:$0xf]
        %v2693 = vld [vmem:[%s374 + $0x80] sm:$0xf]
        %v2694 = vld [vmem:[%s374 + $0x84] sm:$0xf]
        %v2695 = vld [vmem:[%s374 + $0x88] sm:$0xf]
        %v2696 = vld [vmem:[%s374 + $0x8c] sm:$0xf]
        %v2697 = vld [vmem:[%s374 + $0x90] sm:$0xf]
        %v2698 = vld [vmem:[%s374 + $0x94] sm:$0xf]
        %v2699 = vld [vmem:[%s374 + $0x98] sm:$0xf]
        %v2700 = vld [vmem:[%s374 + $0x9c] sm:$0xf]
        %v2701 = vld [vmem:[%s374 + $0xa0] sm:$0xf]
        %v2702 = vld [vmem:[%s374 + $0xa4] sm:$0xf]
        %v2703 = vld [vmem:[%s374 + $0xa8] sm:$0xf]
        %v2704 = vld [vmem:[%s374 + $0xac] sm:$0xf]
        %v2705 = vld [vmem:[%s374 + $0xb0] sm:$0xf]
        %v2706 = vld [vmem:[%s374 + $0xb4] sm:$0xf]
        %v2707 = vld [vmem:[%s374 + $0xb8] sm:$0xf]
        %v2708 = vld [vmem:[%s374 + $0xbc] sm:$0xf]
        %v2709 = vld [vmem:[%s374 + $0xc0] sm:$0xf]
        %v2710 = vld [vmem:[%s374 + $0xc4] sm:$0xf]
        %v2711 = vld [vmem:[%s374 + $0xc8] sm:$0xf]
        %v2712 = vld [vmem:[%s374 + $0xcc] sm:$0xf]
        %v2713 = vld [vmem:[%s374 + $0xd0] sm:$0xf]
        %v2714 = vld [vmem:[%s374 + $0xd4] sm:$0xf]
        %v2715 = vld [vmem:[%s374 + $0xd8] sm:$0xf]
        %v2716 = vld [vmem:[%s374 + $0xdc] sm:$0xf]
        %v2717 = vld [vmem:[%s374 + $0xe0] sm:$0xf]
        %v2718 = vld [vmem:[%s374 + $0xe4] sm:$0xf]
        %v2719 = vld [vmem:[%s374 + $0xe8] sm:$0xf]
        %v2720 = vld [vmem:[%s374 + $0xec] sm:$0xf]
        %v2721 = vld [vmem:[%s374 + $0xf0] sm:$0xf]
        %v2722 = vld [vmem:[%s374 + $0xf4] sm:$0xf]
        %v2723 = vld [vmem:[%s374 + $0xf8] sm:$0xf]
        %v2724 = vld [vmem:[%s374 + $0xfc] sm:$0xf]
        %v2725 = vld [vmem:[%s374 + $0x100] sm:$0xf]
        %v2726 = vld [vmem:[%s374 + $0x104] sm:$0xf]
        %v2727 = vld [vmem:[%s374 + $0x108] sm:$0xf]
        %v2728 = vld [vmem:[%s374 + $0x10c] sm:$0xf]
        %v2729 = vld [vmem:[%s374 + $0x110] sm:$0xf]
        %v2730 = vld [vmem:[%s374 + $0x114] sm:$0xf]
        %v2731 = vld [vmem:[%s374 + $0x118] sm:$0xf]
        %v2732 = vld [vmem:[%s374 + $0x11c] sm:$0xf]
        %v2733 = vld [vmem:[%s374 + $0x120] sm:$0xf]
        %v2734 = vld [vmem:[%s374 + $0x124] sm:$0xf]
        %v2735 = vld [vmem:[%s374 + $0x128] sm:$0xf]
        %v2736 = vld [vmem:[%s374 + $0x12c] sm:$0xf]
        %v2737 = vld [vmem:[%s374 + $0x130] sm:$0xf]
        %v2738 = vld [vmem:[%s374 + $0x134] sm:$0xf]
        %v2739 = vld [vmem:[%s374 + $0x138] sm:$0xf]
        %v2740 = vld [vmem:[%s374 + $0x13c] sm:$0xf]
        %v2741 = vld [vmem:[%s374 + $0x140] sm:$0xf]
        %v2742 = vld [vmem:[%s374 + $0x144] sm:$0xf]
        %v2743 = vld [vmem:[%s374 + $0x148] sm:$0xf]
        %v2744 = vld [vmem:[%s374 + $0x14c] sm:$0xf]
        %v2745 = vld [vmem:[%s374 + $0x150] sm:$0xf]
        %v2746 = vld [vmem:[%s374 + $0x154] sm:$0xf]
        %v2747 = vld [vmem:[%s374 + $0x158] sm:$0xf]
        %v2748 = vld [vmem:[%s374 + $0x15c] sm:$0xf]
        %v2749 = vld [vmem:[%s374 + $0x160] sm:$0xf]
        %v2750 = vld [vmem:[%s374 + $0x164] sm:$0xf]
        %v2751 = vld [vmem:[%s374 + $0x168] sm:$0xf]
        %v2752 = vld [vmem:[%s374 + $0x16c] sm:$0xf]
        %v2753 = vld [vmem:[%s374 + $0x170] sm:$0xf]
        %v2754 = vld [vmem:[%s374 + $0x174] sm:$0xf]
        %v2755 = vld [vmem:[%s374 + $0x178] sm:$0xf]
        %v2756 = vld [vmem:[%s374 + $0x17c] sm:$0xf]
        %v2757 = vld [vmem:[%s374 + $0x180] sm:$0xf]
        %v2758 = vld [vmem:[%s374 + $0x184] sm:$0xf]
        %v2759 = vld [vmem:[%s374 + $0x188] sm:$0xf]
        %v2760 = vld [vmem:[%s374 + $0x18c] sm:$0xf]
        %v2761 = vld [vmem:[%s374 + $0x190] sm:$0xf]
        %v2762 = vld [vmem:[%s374 + $0x194] sm:$0xf]
        %v2763 = vld [vmem:[%s374 + $0x198] sm:$0xf]
        %v2764 = vld [vmem:[%s374 + $0x19c] sm:$0xf]
        %v2765 = vld [vmem:[%s374 + $0x1a0] sm:$0xf]
        %v2766 = vld [vmem:[%s374 + $0x1a4] sm:$0xf]
        %v2767 = vld [vmem:[%s374 + $0x1a8] sm:$0xf]
        %v2768 = vld [vmem:[%s374 + $0x1ac] sm:$0xf]
        %v2769 = vld [vmem:[%s374 + $0x1b0] sm:$0xf]
        %v2770 = vld [vmem:[%s374 + $0x1b4] sm:$0xf]
        %v2771 = vld [vmem:[%s374 + $0x1b8] sm:$0xf]
        %v2772 = vld [vmem:[%s374 + $0x1bc] sm:$0xf]
        %v2773 = vld [vmem:[%s374 + $0x1c0] sm:$0xf]
        %v2774 = vld [vmem:[%s374 + $0x1c4] sm:$0xf]
        %v2775 = vld [vmem:[%s374 + $0x1c8] sm:$0xf]
        %v2776 = vld [vmem:[%s374 + $0x1cc] sm:$0xf]
        %v2777 = vld [vmem:[%s374 + $0x1d0] sm:$0xf]
        %v2778 = vld [vmem:[%s374 + $0x1d4] sm:$0xf]
        %v2779 = vld [vmem:[%s374 + $0x1d8] sm:$0xf]
        %v2780 = vld [vmem:[%s374 + $0x1dc] sm:$0xf]
        %v2781 = vld [vmem:[%s374 + $0x1e0] sm:$0xf]
        %v2782 = vld [vmem:[%s374 + $0x1e4] sm:$0xf]
        %v2783 = vld [vmem:[%s374 + $0x1e8] sm:$0xf]
        %v2784 = vld [vmem:[%s374 + $0x1ec] sm:$0xf]
        %v2785 = vld [vmem:[%s374 + $0x1f0] sm:$0xf]
        %v2786 = vld [vmem:[%s374 + $0x1f4] sm:$0xf]
        %v2787 = vld [vmem:[%s374 + $0x1f8] sm:$0xf]
        %v2788 = vld [vmem:[%s374 + $0x1fc] sm:$0xf]
        %v2789 = vld [vmem:[%s374 + $0x200] sm:$0xf]
        %v2790 = vld [vmem:[%s374 + $0x204] sm:$0xf]
        %v2791 = vld [vmem:[%s374 + $0x208] sm:$0xf]
        %v2792 = vld [vmem:[%s374 + $0x20c] sm:$0xf]
        %v2793 = vld [vmem:[%s374 + $0x210] sm:$0xf]
        %v2794 = vld [vmem:[%s374 + $0x214] sm:$0xf]
        %v2795 = vld [vmem:[%s374 + $0x218] sm:$0xf]
        %v2796 = vld [vmem:[%s374 + $0x21c] sm:$0xf]
        %v2797 = vld [vmem:[%s374 + $0x220] sm:$0xf]
        %v2798 = vld [vmem:[%s374 + $0x224] sm:$0xf]
        %v2799 = vld [vmem:[%s374 + $0x228] sm:$0xf]
        %v2800 = vld [vmem:[%s374 + $0x22c] sm:$0xf]
        %v2801 = vld [vmem:[%s374 + $0x230] sm:$0xf]
        %v2802 = vld [vmem:[%s374 + $0x234] sm:$0xf]
        %v2803 = vld [vmem:[%s374 + $0x238] sm:$0xf]
        %v2804 = vld [vmem:[%s374 + $0x23c] sm:$0xf]
        %v2805 = vld [vmem:[%s374 + $0x240] sm:$0xf]
        %v2806 = vld [vmem:[%s374 + $0x244] sm:$0xf]
        %v2807 = vld [vmem:[%s374 + $0x248] sm:$0xf]
        %v2808 = vld [vmem:[%s374 + $0x24c] sm:$0xf]
        %v2809 = vld [vmem:[%s374 + $0x250] sm:$0xf]
        %v2810 = vld [vmem:[%s374 + $0x254] sm:$0xf]
        %v2811 = vld [vmem:[%s374 + $0x258] sm:$0xf]
        %v2812 = vld [vmem:[%s374 + $0x25c] sm:$0xf]
        %v2813 = vld [vmem:[%s374 + $0x260] sm:$0xf]
        %v2814 = vld [vmem:[%s374 + $0x264] sm:$0xf]
        %v2815 = vld [vmem:[%s374 + $0x268] sm:$0xf]
        %v2816 = vld [vmem:[%s374 + $0x26c] sm:$0xf]
        %v2817 = vld [vmem:[%s374 + $0x270] sm:$0xf]
        %v2818 = vld [vmem:[%s374 + $0x274] sm:$0xf]
        %v2819 = vld [vmem:[%s374 + $0x278] sm:$0xf]
        %v2820 = vld [vmem:[%s374 + $0x27c] sm:$0xf]
        %v2821 = vld [vmem:[%s374 + $0x280] sm:$0xf]
        %v2822 = vld [vmem:[%s374 + $0x284] sm:$0xf]
        %v2823 = vld [vmem:[%s374 + $0x288] sm:$0xf]
        %v2824 = vld [vmem:[%s374 + $0x28c] sm:$0xf]
        %v2825 = vld [vmem:[%s374 + $0x290] sm:$0xf]
        %v2826 = vld [vmem:[%s374 + $0x294] sm:$0xf]
        %v2827 = vld [vmem:[%s374 + $0x298] sm:$0xf]
        %v2828 = vld [vmem:[%s374 + $0x29c] sm:$0xf]
        %v2829 = vld [vmem:[%s374 + $0x2a0] sm:$0xf]
        %v2830 = vld [vmem:[%s374 + $0x2a4] sm:$0xf]
        %v2831 = vld [vmem:[%s374 + $0x2a8] sm:$0xf]
        %v2832 = vld [vmem:[%s374 + $0x2ac] sm:$0xf]
        %v2833 = vld [vmem:[%s374 + $0x2b0] sm:$0xf]
        %v2834 = vld [vmem:[%s374 + $0x2b4] sm:$0xf]
        %v2835 = vld [vmem:[%s374 + $0x2b8] sm:$0xf]
        %v2836 = vld [vmem:[%s374 + $0x2bc] sm:$0xf]
        %v2837 = vld [vmem:[%s374 + $0x2c0] sm:$0xf]
        %v2838 = vld [vmem:[%s374 + $0x2c4] sm:$0xf]
        %v2839 = vld [vmem:[%s374 + $0x2c8] sm:$0xf]
        %v2840 = vld [vmem:[%s374 + $0x2cc] sm:$0xf]
        %v2841 = vld [vmem:[%s374 + $0x2d0] sm:$0xf]
        %v2842 = vld [vmem:[%s374 + $0x2d4] sm:$0xf]
        %v2843 = vld [vmem:[%s374 + $0x2d8] sm:$0xf]
        %v2844 = vld [vmem:[%s374 + $0x2dc] sm:$0xf]
        %v2845 = vld [vmem:[%s374 + $0x2e0] sm:$0xf]
        %v2846 = vld [vmem:[%s374 + $0x2e4] sm:$0xf]
        %v2847 = vld [vmem:[%s374 + $0x2e8] sm:$0xf]
        %v2848 = vld [vmem:[%s374 + $0x2ec] sm:$0xf]
        %v2849 = vld [vmem:[%s374 + $0x2f0] sm:$0xf]
        %v2850 = vld [vmem:[%s374 + $0x2f4] sm:$0xf]
        %v2851 = vld [vmem:[%s374 + $0x2f8] sm:$0xf]
        %v2852 = vld [vmem:[%s374 + $0x2fc] sm:$0xf]
        %v2853 = vld [vmem:[%s374 + $0x300] sm:$0xf]
        %v2854 = vld [vmem:[%s374 + $0x304] sm:$0xf]
        %v2855 = vld [vmem:[%s374 + $0x308] sm:$0xf]
        %v2856 = vld [vmem:[%s374 + $0x30c] sm:$0xf]
        %v2857 = vld [vmem:[%s374 + $0x310] sm:$0xf]
        %v2858 = vld [vmem:[%s374 + $0x314] sm:$0xf]
        %v2859 = vld [vmem:[%s374 + $0x318] sm:$0xf]
        %v2860 = vld [vmem:[%s374 + $0x31c] sm:$0xf]
        %v2861 = vld [vmem:[%s374 + $0x320] sm:$0xf]
        %v2862 = vld [vmem:[%s374 + $0x324] sm:$0xf]
        %v2863 = vld [vmem:[%s374 + $0x328] sm:$0xf]
        %v2864 = vld [vmem:[%s374 + $0x32c] sm:$0xf]
        %v2865 = vld [vmem:[%s374 + $0x330] sm:$0xf]
        %v2866 = vld [vmem:[%s374 + $0x334] sm:$0xf]
        %v2867 = vld [vmem:[%s374 + $0x338] sm:$0xf]
        %v2868 = vld [vmem:[%s374 + $0x33c] sm:$0xf]
        %v2869 = vld [vmem:[%s374 + $0x340] sm:$0xf]
        %v2870 = vld [vmem:[%s374 + $0x344] sm:$0xf]
        %v2871 = vld [vmem:[%s374 + $0x348] sm:$0xf]
        %v2872 = vld [vmem:[%s374 + $0x34c] sm:$0xf]
        %v2873 = vld [vmem:[%s374 + $0x350] sm:$0xf]
        %v2874 = vld [vmem:[%s374 + $0x354] sm:$0xf]
        %v2875 = vld [vmem:[%s374 + $0x358] sm:$0xf]
        %v2876 = vld [vmem:[%s374 + $0x35c] sm:$0xf]
        %v2877 = vld [vmem:[%s374 + $0x360] sm:$0xf]
        %v2878 = vld [vmem:[%s374 + $0x364] sm:$0xf]
        %v2879 = vld [vmem:[%s374 + $0x368] sm:$0xf]
        %v2880 = vld [vmem:[%s374 + $0x36c] sm:$0xf]
        %v2881 = vld [vmem:[%s374 + $0x370] sm:$0xf]
        %v2882 = vld [vmem:[%s374 + $0x374] sm:$0xf]
        %v2883 = vld [vmem:[%s374 + $0x378] sm:$0xf]
        %v2884 = vld [vmem:[%s374 + $0x37c] sm:$0xf]
        %v2885 = vld [vmem:[%s374 + $0x380] sm:$0xf]
        %v2886 = vld [vmem:[%s374 + $0x384] sm:$0xf]
        %v2887 = vld [vmem:[%s374 + $0x388] sm:$0xf]
        %v2888 = vld [vmem:[%s374 + $0x38c] sm:$0xf]
        %v2889 = vld [vmem:[%s374 + $0x390] sm:$0xf]
        %v2890 = vld [vmem:[%s374 + $0x394] sm:$0xf]
        %v2891 = vld [vmem:[%s374 + $0x398] sm:$0xf]
        %v2892 = vld [vmem:[%s374 + $0x39c] sm:$0xf]
        %v2893 = vld [vmem:[%s374 + $0x3a0] sm:$0xf]
        %v2894 = vld [vmem:[%s374 + $0x3a4] sm:$0xf]
        %v2895 = vld [vmem:[%s374 + $0x3a8] sm:$0xf]
        %v2896 = vld [vmem:[%s374 + $0x3ac] sm:$0xf]
        %v2897 = vld [vmem:[%s374 + $0x3b0] sm:$0xf]
        %v2898 = vld [vmem:[%s374 + $0x3b4] sm:$0xf]
        %v2899 = vld [vmem:[%s374 + $0x3b8] sm:$0xf]
        %v2900 = vld [vmem:[%s374 + $0x3bc] sm:$0xf]
        %v2901 = vld [vmem:[%s374 + $0x3c0] sm:$0xf]
        %v2902 = vld [vmem:[%s374 + $0x3c4] sm:$0xf]
        %v2903 = vld [vmem:[%s374 + $0x3c8] sm:$0xf]
        %v2904 = vld [vmem:[%s374 + $0x3cc] sm:$0xf]
        %v2905 = vld [vmem:[%s374 + $0x3d0] sm:$0xf]
        %v2906 = vld [vmem:[%s374 + $0x3d4] sm:$0xf]
        %v2907 = vld [vmem:[%s374 + $0x3d8] sm:$0xf]
        %v2908 = vld [vmem:[%s374 + $0x3dc] sm:$0xf]
        %v2909 = vld [vmem:[%s374 + $0x3e0] sm:$0xf]
        %v2910 = vld [vmem:[%s374 + $0x3e4] sm:$0xf]
        %v2911 = vld [vmem:[%s374 + $0x3e8] sm:$0xf]
        %v2912 = vld [vmem:[%s374 + $0x3ec] sm:$0xf]
        %v2913 = vld [vmem:[%s374 + $0x3f0] sm:$0xf]
        %v2914 = vld [vmem:[%s374 + $0x3f4] sm:$0xf]
        %v2915 = vld [vmem:[%s374 + $0x3f8] sm:$0xf]
        %v2916 = vld [vmem:[%s374 + $0x3fc] sm:$0xf]
        %v3173 = vunpack.c.l.b16 %v2661
        %v3174 = vunpack.c.l.b16 %v2662
        %v3175 = vunpack.c.l.b16 %v2663
        %v3176 = vunpack.c.l.b16 %v2664
        %v3177 = vunpack.c.l.b16 %v2665
        %v3178 = vunpack.c.l.b16 %v2666
        %v3179 = vunpack.c.l.b16 %v2667
        %v3180 = vunpack.c.l.b16 %v2668
        %v3181 = vunpack.c.l.b16 %v2669
        %v3182 = vunpack.c.l.b16 %v2670
        %v3183 = vunpack.c.l.b16 %v2671
        %v3184 = vunpack.c.l.b16 %v2672
        %v3185 = vunpack.c.l.b16 %v2673
        %v3186 = vunpack.c.l.b16 %v2674
        %v3187 = vunpack.c.l.b16 %v2675
        %v3188 = vunpack.c.l.b16 %v2676
        %v3189 = vunpack.c.l.b16 %v2677
        %v3190 = vunpack.c.l.b16 %v2678
        %v3191 = vunpack.c.l.b16 %v2679
        %v3192 = vunpack.c.l.b16 %v2680
        %v3193 = vunpack.c.l.b16 %v2681
        %v3194 = vunpack.c.l.b16 %v2682
        %v3195 = vunpack.c.l.b16 %v2683
        %v3196 = vunpack.c.l.b16 %v2684
        %v3197 = vunpack.c.l.b16 %v2685
        %v3198 = vunpack.c.l.b16 %v2686
        %v3199 = vunpack.c.l.b16 %v2687
        %v3200 = vunpack.c.l.b16 %v2688
        %v3201 = vunpack.c.l.b16 %v2689
        %v3202 = vunpack.c.l.b16 %v2690
        %v3203 = vunpack.c.l.b16 %v2691
        %v3204 = vunpack.c.l.b16 %v2692
        %v3205 = vunpack.c.l.b16 %v2693
        %v3206 = vunpack.c.l.b16 %v2694
        %v3207 = vunpack.c.l.b16 %v2695
        %v3208 = vunpack.c.l.b16 %v2696
        %v3209 = vunpack.c.l.b16 %v2697
        %v3210 = vunpack.c.l.b16 %v2698
        %v3211 = vunpack.c.l.b16 %v2699
        %v3212 = vunpack.c.l.b16 %v2700
        %v3213 = vunpack.c.l.b16 %v2701
        %v3214 = vunpack.c.l.b16 %v2702
        %v3215 = vunpack.c.l.b16 %v2703
        %v3216 = vunpack.c.l.b16 %v2704
        %v3217 = vunpack.c.l.b16 %v2705
        %v3218 = vunpack.c.l.b16 %v2706
        %v3219 = vunpack.c.l.b16 %v2707
        %v3220 = vunpack.c.l.b16 %v2708
        %v3221 = vunpack.c.l.b16 %v2709
        %v3222 = vunpack.c.l.b16 %v2710
        %v3223 = vunpack.c.l.b16 %v2711
        %v3224 = vunpack.c.l.b16 %v2712
        %v3225 = vunpack.c.l.b16 %v2713
        %v3226 = vunpack.c.l.b16 %v2714
        %v3227 = vunpack.c.l.b16 %v2715
        %v3228 = vunpack.c.l.b16 %v2716
        %v3229 = vunpack.c.l.b16 %v2717
        %v3230 = vunpack.c.l.b16 %v2718
        %v3231 = vunpack.c.l.b16 %v2719
        %v3232 = vunpack.c.l.b16 %v2720
        %v3233 = vunpack.c.l.b16 %v2721
        %v3234 = vunpack.c.l.b16 %v2722
        %v3235 = vunpack.c.l.b16 %v2723
        %v3236 = vunpack.c.l.b16 %v2724
        %v3237 = vunpack.c.l.b16 %v2725
        %v3238 = vunpack.c.l.b16 %v2726
        %v3239 = vunpack.c.l.b16 %v2727
        %v3240 = vunpack.c.l.b16 %v2728
        %v3241 = vunpack.c.l.b16 %v2729
        %v3242 = vunpack.c.l.b16 %v2730
        %v3243 = vunpack.c.l.b16 %v2731
        %v3244 = vunpack.c.l.b16 %v2732
        %v3245 = vunpack.c.l.b16 %v2733
        %v3246 = vunpack.c.l.b16 %v2734
        %v3247 = vunpack.c.l.b16 %v2735
        %v3248 = vunpack.c.l.b16 %v2736
        %v3249 = vunpack.c.l.b16 %v2737
        %v3250 = vunpack.c.l.b16 %v2738
        %v3251 = vunpack.c.l.b16 %v2739
        %v3252 = vunpack.c.l.b16 %v2740
        %v3253 = vunpack.c.l.b16 %v2741
        %v3254 = vunpack.c.l.b16 %v2742
        %v3255 = vunpack.c.l.b16 %v2743
        %v3256 = vunpack.c.l.b16 %v2744
        %v3257 = vunpack.c.l.b16 %v2745
        %v3258 = vunpack.c.l.b16 %v2746
        %v3259 = vunpack.c.l.b16 %v2747
        %v3260 = vunpack.c.l.b16 %v2748
        %v3261 = vunpack.c.l.b16 %v2749
        %v3262 = vunpack.c.l.b16 %v2750
        %v3263 = vunpack.c.l.b16 %v2751
        %v3264 = vunpack.c.l.b16 %v2752
        %v3265 = vunpack.c.l.b16 %v2753
        %v3266 = vunpack.c.l.b16 %v2754
        %v3267 = vunpack.c.l.b16 %v2755
        %v3268 = vunpack.c.l.b16 %v2756
        %v3269 = vunpack.c.l.b16 %v2757
        %v3270 = vunpack.c.l.b16 %v2758
        %v3271 = vunpack.c.l.b16 %v2759
        %v3272 = vunpack.c.l.b16 %v2760
        %v3273 = vunpack.c.l.b16 %v2761
        %v3274 = vunpack.c.l.b16 %v2762
        %v3275 = vunpack.c.l.b16 %v2763
        %v3276 = vunpack.c.l.b16 %v2764
        %v3277 = vunpack.c.l.b16 %v2765
        %v3278 = vunpack.c.l.b16 %v2766
        %v3279 = vunpack.c.l.b16 %v2767
        %v3280 = vunpack.c.l.b16 %v2768
        %v3281 = vunpack.c.l.b16 %v2769
        %v3282 = vunpack.c.l.b16 %v2770
        %v3283 = vunpack.c.l.b16 %v2771
        %v3284 = vunpack.c.l.b16 %v2772
        %v3285 = vunpack.c.l.b16 %v2773
        %v3286 = vunpack.c.l.b16 %v2774
        %v3287 = vunpack.c.l.b16 %v2775
        %v3288 = vunpack.c.l.b16 %v2776
        %v3289 = vunpack.c.l.b16 %v2777
        %v3290 = vunpack.c.l.b16 %v2778
        %v3291 = vunpack.c.l.b16 %v2779
        %v3292 = vunpack.c.l.b16 %v2780
        %v3293 = vunpack.c.l.b16 %v2781
        %v3294 = vunpack.c.l.b16 %v2782
        %v3295 = vunpack.c.l.b16 %v2783
        %v3296 = vunpack.c.l.b16 %v2784
        %v3297 = vunpack.c.l.b16 %v2785
        %v3298 = vunpack.c.l.b16 %v2786
        %v3299 = vunpack.c.l.b16 %v2787
        %v3300 = vunpack.c.l.b16 %v2788
        %v3301 = vunpack.c.l.b16 %v2789
        %v3302 = vunpack.c.l.b16 %v2790
        %v3303 = vunpack.c.l.b16 %v2791
        %v3304 = vunpack.c.l.b16 %v2792
        %v3305 = vunpack.c.l.b16 %v2793
        %v3306 = vunpack.c.l.b16 %v2794
        %v3307 = vunpack.c.l.b16 %v2795
        %v3308 = vunpack.c.l.b16 %v2796
        %v3309 = vunpack.c.l.b16 %v2797
        %v3310 = vunpack.c.l.b16 %v2798
        %v3311 = vunpack.c.l.b16 %v2799
        %v3312 = vunpack.c.l.b16 %v2800
        %v3313 = vunpack.c.l.b16 %v2801
        %v3314 = vunpack.c.l.b16 %v2802
        %v3315 = vunpack.c.l.b16 %v2803
        %v3316 = vunpack.c.l.b16 %v2804
        %v3317 = vunpack.c.l.b16 %v2805
        %v3318 = vunpack.c.l.b16 %v2806
        %v3319 = vunpack.c.l.b16 %v2807
        %v3320 = vunpack.c.l.b16 %v2808
        %v3321 = vunpack.c.l.b16 %v2809
        %v3322 = vunpack.c.l.b16 %v2810
        %v3323 = vunpack.c.l.b16 %v2811
        %v3324 = vunpack.c.l.b16 %v2812
        %v3325 = vunpack.c.l.b16 %v2813
        %v3326 = vunpack.c.l.b16 %v2814
        %v3327 = vunpack.c.l.b16 %v2815
        %v3328 = vunpack.c.l.b16 %v2816
        %v3329 = vunpack.c.l.b16 %v2817
        %v3330 = vunpack.c.l.b16 %v2818
        %v3331 = vunpack.c.l.b16 %v2819
        %v3332 = vunpack.c.l.b16 %v2820
        %v3333 = vunpack.c.l.b16 %v2821
        %v3334 = vunpack.c.l.b16 %v2822
        %v3335 = vunpack.c.l.b16 %v2823
        %v3336 = vunpack.c.l.b16 %v2824
        %v3337 = vunpack.c.l.b16 %v2825
        %v3338 = vunpack.c.l.b16 %v2826
        %v3339 = vunpack.c.l.b16 %v2827
        %v3340 = vunpack.c.l.b16 %v2828
        %v3341 = vunpack.c.l.b16 %v2829
        %v3342 = vunpack.c.l.b16 %v2830
        %v3343 = vunpack.c.l.b16 %v2831
        %v3344 = vunpack.c.l.b16 %v2832
        %v3345 = vunpack.c.l.b16 %v2833
        %v3346 = vunpack.c.l.b16 %v2834
        %v3347 = vunpack.c.l.b16 %v2835
        %v3348 = vunpack.c.l.b16 %v2836
        %v3349 = vunpack.c.l.b16 %v2837
        %v3350 = vunpack.c.l.b16 %v2838
        %v3351 = vunpack.c.l.b16 %v2839
        %v3352 = vunpack.c.l.b16 %v2840
        %v3353 = vunpack.c.l.b16 %v2841
        %v3354 = vunpack.c.l.b16 %v2842
        %v3355 = vunpack.c.l.b16 %v2843
        %v3356 = vunpack.c.l.b16 %v2844
        %v3357 = vunpack.c.l.b16 %v2845
        %v3358 = vunpack.c.l.b16 %v2846
        %v3359 = vunpack.c.l.b16 %v2847
        %v3360 = vunpack.c.l.b16 %v2848
        %v3361 = vunpack.c.l.b16 %v2849
        %v3362 = vunpack.c.l.b16 %v2850
        %v3363 = vunpack.c.l.b16 %v2851
        %v3364 = vunpack.c.l.b16 %v2852
        %v3365 = vunpack.c.l.b16 %v2853
        %v3366 = vunpack.c.l.b16 %v2854
        %v3367 = vunpack.c.l.b16 %v2855
        %v3368 = vunpack.c.l.b16 %v2856
        %v3369 = vunpack.c.l.b16 %v2857
        %v3370 = vunpack.c.l.b16 %v2858
        %v3371 = vunpack.c.l.b16 %v2859
        %v3372 = vunpack.c.l.b16 %v2860
        %v3373 = vunpack.c.l.b16 %v2861
        %v3374 = vunpack.c.l.b16 %v2862
        %v3375 = vunpack.c.l.b16 %v2863
        %v3376 = vunpack.c.l.b16 %v2864
        %v3377 = vunpack.c.l.b16 %v2865
        %v3378 = vunpack.c.l.b16 %v2866
        %v3379 = vunpack.c.l.b16 %v2867
        %v3380 = vunpack.c.l.b16 %v2868
        %v3381 = vunpack.c.l.b16 %v2869
        %v3382 = vunpack.c.l.b16 %v2870
        %v3383 = vunpack.c.l.b16 %v2871
        %v3384 = vunpack.c.l.b16 %v2872
        %v3385 = vunpack.c.l.b16 %v2873
        %v3386 = vunpack.c.l.b16 %v2874
        %v3387 = vunpack.c.l.b16 %v2875
        %v3388 = vunpack.c.l.b16 %v2876
        %v3389 = vunpack.c.l.b16 %v2877
        %v3390 = vunpack.c.l.b16 %v2878
        %v3391 = vunpack.c.l.b16 %v2879
        %v3392 = vunpack.c.l.b16 %v2880
        %v3393 = vunpack.c.l.b16 %v2881
        %v3394 = vunpack.c.l.b16 %v2882
        %v3395 = vunpack.c.l.b16 %v2883
        %v3396 = vunpack.c.l.b16 %v2884
        %v3397 = vunpack.c.l.b16 %v2885
        %v3398 = vunpack.c.l.b16 %v2886
        %v3399 = vunpack.c.l.b16 %v2887
        %v3400 = vunpack.c.l.b16 %v2888
        %v3401 = vunpack.c.l.b16 %v2889
        %v3402 = vunpack.c.l.b16 %v2890
        %v3403 = vunpack.c.l.b16 %v2891
        %v3404 = vunpack.c.l.b16 %v2892
        %v3405 = vunpack.c.l.b16 %v2893
        %v3406 = vunpack.c.l.b16 %v2894
        %v3407 = vunpack.c.l.b16 %v2895
        %v3408 = vunpack.c.l.b16 %v2896
        %v3409 = vunpack.c.l.b16 %v2897
        %v3410 = vunpack.c.l.b16 %v2898
        %v3411 = vunpack.c.l.b16 %v2899
        %v3412 = vunpack.c.l.b16 %v2900
        %v3413 = vunpack.c.l.b16 %v2901
        %v3414 = vunpack.c.l.b16 %v2902
        %v3415 = vunpack.c.l.b16 %v2903
        %v3416 = vunpack.c.l.b16 %v2904
        %v3417 = vunpack.c.l.b16 %v2905
        %v3418 = vunpack.c.l.b16 %v2906
        %v3419 = vunpack.c.l.b16 %v2907
        %v3420 = vunpack.c.l.b16 %v2908
        %v3421 = vunpack.c.l.b16 %v2909
        %v3422 = vunpack.c.l.b16 %v2910
        %v3423 = vunpack.c.l.b16 %v2911
        %v3424 = vunpack.c.l.b16 %v2912
        %v3425 = vunpack.c.l.b16 %v2913
        %v3426 = vunpack.c.l.b16 %v2914
        %v3427 = vunpack.c.l.b16 %v2915
        %v3428 = vunpack.c.l.b16 %v2916
        %v3429 = vpack.c.b16 %v3174, %v3173
        %v3430 = vpack.c.b16 %v3176, %v3175
        %v3431 = vpack.c.b16 %v3178, %v3177
        %v3432 = vpack.c.b16 %v3180, %v3179
        %v3433 = vpack.c.b16 %v3182, %v3181
        %v3434 = vpack.c.b16 %v3184, %v3183
        %v3435 = vpack.c.b16 %v3186, %v3185
        %v3436 = vpack.c.b16 %v3188, %v3187
        %v3437 = vpack.c.b16 %v3190, %v3189
        %v3438 = vpack.c.b16 %v3192, %v3191
        %v3439 = vpack.c.b16 %v3194, %v3193
        %v3440 = vpack.c.b16 %v3196, %v3195
        %v3441 = vpack.c.b16 %v3198, %v3197
        %v3442 = vpack.c.b16 %v3200, %v3199
        %v3443 = vpack.c.b16 %v3202, %v3201
        %v3444 = vpack.c.b16 %v3204, %v3203
        %v3445 = vpack.c.b16 %v3206, %v3205
        %v3446 = vpack.c.b16 %v3208, %v3207
        %v3447 = vpack.c.b16 %v3210, %v3209
        %v3448 = vpack.c.b16 %v3212, %v3211
        %v3449 = vpack.c.b16 %v3214, %v3213
        %v3450 = vpack.c.b16 %v3216, %v3215
        %v3451 = vpack.c.b16 %v3218, %v3217
        %v3452 = vpack.c.b16 %v3220, %v3219
        %v3453 = vpack.c.b16 %v3222, %v3221
        %v3454 = vpack.c.b16 %v3224, %v3223
        %v3455 = vpack.c.b16 %v3226, %v3225
        %v3456 = vpack.c.b16 %v3228, %v3227
        %v3457 = vpack.c.b16 %v3230, %v3229
        %v3458 = vpack.c.b16 %v3232, %v3231
        %v3459 = vpack.c.b16 %v3234, %v3233
        %v3460 = vpack.c.b16 %v3236, %v3235
        %v3461 = vpack.c.b16 %v3238, %v3237
        %v3462 = vpack.c.b16 %v3240, %v3239
        %v3463 = vpack.c.b16 %v3242, %v3241
        %v3464 = vpack.c.b16 %v3244, %v3243
        %v3465 = vpack.c.b16 %v3246, %v3245
        %v3466 = vpack.c.b16 %v3248, %v3247
        %v3467 = vpack.c.b16 %v3250, %v3249
        %v3468 = vpack.c.b16 %v3252, %v3251
        %v3469 = vpack.c.b16 %v3254, %v3253
        %v3470 = vpack.c.b16 %v3256, %v3255
        %v3471 = vpack.c.b16 %v3258, %v3257
        %v3472 = vpack.c.b16 %v3260, %v3259
        %v3473 = vpack.c.b16 %v3262, %v3261
        %v3474 = vpack.c.b16 %v3264, %v3263
        %v3475 = vpack.c.b16 %v3266, %v3265
        %v3476 = vpack.c.b16 %v3268, %v3267
        %v3477 = vpack.c.b16 %v3270, %v3269
        %v3478 = vpack.c.b16 %v3272, %v3271
        %v3479 = vpack.c.b16 %v3274, %v3273
        %v3480 = vpack.c.b16 %v3276, %v3275
        %v3481 = vpack.c.b16 %v3278, %v3277
        %v3482 = vpack.c.b16 %v3280, %v3279
        %v3483 = vpack.c.b16 %v3282, %v3281
        %v3484 = vpack.c.b16 %v3284, %v3283
        %v3485 = vpack.c.b16 %v3286, %v3285
        %v3486 = vpack.c.b16 %v3288, %v3287
        %v3487 = vpack.c.b16 %v3290, %v3289
        %v3488 = vpack.c.b16 %v3292, %v3291
        %v3489 = vpack.c.b16 %v3294, %v3293
        %v3490 = vpack.c.b16 %v3296, %v3295
        %v3491 = vpack.c.b16 %v3298, %v3297
        %v3492 = vpack.c.b16 %v3300, %v3299
        %v3493 = vpack.c.b16 %v3302, %v3301
        %v3494 = vpack.c.b16 %v3304, %v3303
        %v3495 = vpack.c.b16 %v3306, %v3305
        %v3496 = vpack.c.b16 %v3308, %v3307
        %v3497 = vpack.c.b16 %v3310, %v3309
        %v3498 = vpack.c.b16 %v3312, %v3311
        %v3499 = vpack.c.b16 %v3314, %v3313
        %v3500 = vpack.c.b16 %v3316, %v3315
        %v3501 = vpack.c.b16 %v3318, %v3317
        %v3502 = vpack.c.b16 %v3320, %v3319
        %v3503 = vpack.c.b16 %v3322, %v3321
        %v3504 = vpack.c.b16 %v3324, %v3323
        %v3505 = vpack.c.b16 %v3326, %v3325
        %v3506 = vpack.c.b16 %v3328, %v3327
        %v3507 = vpack.c.b16 %v3330, %v3329
        %v3508 = vpack.c.b16 %v3332, %v3331
        %v3509 = vpack.c.b16 %v3334, %v3333
        %v3510 = vpack.c.b16 %v3336, %v3335
        %v3511 = vpack.c.b16 %v3338, %v3337
        %v3512 = vpack.c.b16 %v3340, %v3339
        %v3513 = vpack.c.b16 %v3342, %v3341
        %v3514 = vpack.c.b16 %v3344, %v3343
        %v3515 = vpack.c.b16 %v3346, %v3345
        %v3516 = vpack.c.b16 %v3348, %v3347
        %v3517 = vpack.c.b16 %v3350, %v3349
        %v3518 = vpack.c.b16 %v3352, %v3351
        %v3519 = vpack.c.b16 %v3354, %v3353
        %v3520 = vpack.c.b16 %v3356, %v3355
        %v3521 = vpack.c.b16 %v3358, %v3357
        %v3522 = vpack.c.b16 %v3360, %v3359
        %v3523 = vpack.c.b16 %v3362, %v3361
        %v3524 = vpack.c.b16 %v3364, %v3363
        %v3525 = vpack.c.b16 %v3366, %v3365
        %v3526 = vpack.c.b16 %v3368, %v3367
        %v3527 = vpack.c.b16 %v3370, %v3369
        %v3528 = vpack.c.b16 %v3372, %v3371
        %v3529 = vpack.c.b16 %v3374, %v3373
        %v3530 = vpack.c.b16 %v3376, %v3375
        %v3531 = vpack.c.b16 %v3378, %v3377
        %v3532 = vpack.c.b16 %v3380, %v3379
        %v3533 = vpack.c.b16 %v3382, %v3381
        %v3534 = vpack.c.b16 %v3384, %v3383
        %v3535 = vpack.c.b16 %v3386, %v3385
        %v3536 = vpack.c.b16 %v3388, %v3387
        %v3537 = vpack.c.b16 %v3390, %v3389
        %v3538 = vpack.c.b16 %v3392, %v3391
        %v3539 = vpack.c.b16 %v3394, %v3393
        %v3540 = vpack.c.b16 %v3396, %v3395
        %v3541 = vpack.c.b16 %v3398, %v3397
        %v3542 = vpack.c.b16 %v3400, %v3399
        %v3543 = vpack.c.b16 %v3402, %v3401
        %v3544 = vpack.c.b16 %v3404, %v3403
        %v3545 = vpack.c.b16 %v3406, %v3405
        %v3546 = vpack.c.b16 %v3408, %v3407
        %v3547 = vpack.c.b16 %v3410, %v3409
        %v3548 = vpack.c.b16 %v3412, %v3411
        %v3549 = vpack.c.b16 %v3414, %v3413
        %v3550 = vpack.c.b16 %v3416, %v3415
        %v3551 = vpack.c.b16 %v3418, %v3417
        %v3552 = vpack.c.b16 %v3420, %v3419
        %v3553 = vpack.c.b16 %v3422, %v3421
        %v3554 = vpack.c.b16 %v3424, %v3423
        %v3555 = vpack.c.b16 %v3426, %v3425
        %v3556 = vpack.c.b16 %v3428, %v3427
        %3685 = vmatprep.subr.bf16.mxu0 0
        %3686 = vmatpush1.bf16.msra.mxu0 %v3429
        %3687 = vmatprep.subr.bf16.mxu0 0
        %3688 = vmatpush1.bf16.msra.mxu0 %v3430
        %3689 = vmatprep.subr.bf16.mxu0 0
        %3690 = vmatpush1.bf16.msra.mxu0 %v3431
        %3691 = vmatprep.subr.bf16.mxu0 0
        %3692 = vmatpush1.bf16.msra.mxu0 %v3432
        %3693 = vmatprep.subr.bf16.mxu0 0
        %3694 = vmatpush1.bf16.msra.mxu0 %v3433
        %3695 = vmatprep.subr.bf16.mxu0 0
        %3696 = vmatpush1.bf16.msra.mxu0 %v3434
        %3697 = vmatprep.subr.bf16.mxu0 0
        %3698 = vmatpush1.bf16.msra.mxu0 %v3435
        %3699 = vmatprep.subr.bf16.mxu0 0
        %3700 = vmatpush1.bf16.msra.mxu0 %v3436
        %3701 = vmatprep.subr.bf16.mxu0 0
        %3702 = vmatpush1.bf16.msra.mxu0 %v3437
        %3703 = vmatprep.subr.bf16.mxu0 0
        %3704 = vmatpush1.bf16.msra.mxu0 %v3438
        %3705 = vmatprep.subr.bf16.mxu0 0
        %3706 = vmatpush1.bf16.msra.mxu0 %v3439
        %3707 = vmatprep.subr.bf16.mxu0 0
        %3708 = vmatpush1.bf16.msra.mxu0 %v3440
        %3709 = vmatprep.subr.bf16.mxu0 0
        %3710 = vmatpush1.bf16.msra.mxu0 %v3441
        %3711 = vmatprep.subr.bf16.mxu0 0
        %3712 = vmatpush1.bf16.msra.mxu0 %v3442
        %3713 = vmatprep.subr.bf16.mxu0 0
        %3714 = vmatpush1.bf16.msra.mxu0 %v3443
        %3715 = vmatprep.subr.bf16.mxu0 0
        %3716 = vmatpush1.bf16.msra.mxu0 %v3444
        %3717 = vmatprep.mubr.bf16.mxu0 %v2646
        %3718 = vmatmul.mubr.bf16.gmra.mrb[0].mxu0 %v2645
        %v3719 = vpop.f32.mrb[0].mxu0
        %v3720 = vadd.f32 0.0, %v3719
        %v3721 = vpop.f32.mrb[0].mxu0
        %v3722 = vpop.f32.mrb[0].mxu0
        %v3723 = vpop.f32.mrb[0].mxu0
        %3724 = vdwg.mxu0
        %3725 = vmatprep.subr.bf16.mxu0 0
        %3726 = vmatpush1.bf16.msra.mxu0 %v3445
        %3727 = vmatprep.subr.bf16.mxu0 0
        %3728 = vmatpush1.bf16.msra.mxu0 %v3446
        %3729 = vmatprep.subr.bf16.mxu0 0
        %3730 = vmatpush1.bf16.msra.mxu0 %v3447
        %3731 = vmatprep.subr.bf16.mxu0 0
        %3732 = vmatpush1.bf16.msra.mxu0 %v3448
        %3733 = vmatprep.subr.bf16.mxu0 0
        %3734 = vmatpush1.bf16.msra.mxu0 %v3449
        %3735 = vmatprep.subr.bf16.mxu0 0
        %3736 = vmatpush1.bf16.msra.mxu0 %v3450
        %3737 = vmatprep.subr.bf16.mxu0 0
        %3738 = vmatpush1.bf16.msra.mxu0 %v3451
        %3739 = vmatprep.subr.bf16.mxu0 0
        %3740 = vmatpush1.bf16.msra.mxu0 %v3452
        %3741 = vmatprep.subr.bf16.mxu0 0
        %3742 = vmatpush1.bf16.msra.mxu0 %v3453
        %3743 = vmatprep.subr.bf16.mxu0 0
        %3744 = vmatpush1.bf16.msra.mxu0 %v3454
        %3745 = vmatprep.subr.bf16.mxu0 0
        %3746 = vmatpush1.bf16.msra.mxu0 %v3455
        %3747 = vmatprep.subr.bf16.mxu0 0
        %3748 = vmatpush1.bf16.msra.mxu0 %v3456
        %3749 = vmatprep.subr.bf16.mxu0 0
        %3750 = vmatpush1.bf16.msra.mxu0 %v3457
        %3751 = vmatprep.subr.bf16.mxu0 0
        %3752 = vmatpush1.bf16.msra.mxu0 %v3458
        %3753 = vmatprep.subr.bf16.mxu0 0
        %3754 = vmatpush1.bf16.msra.mxu0 %v3459
        %3755 = vmatprep.subr.bf16.mxu0 0
        %3756 = vmatpush1.bf16.msra.mxu0 %v3460
        %3757 = vmatprep.mubr.bf16.mxu0 %v2648
        %3758 = vmatmul.mubr.bf16.gmra.mrb[0].mxu0 %v2647
        %v3759 = vpop.f32.mrb[0].mxu0
        %v3760 = vadd.f32 %v3720, %v3759
        %v3761 = vpop.f32.mrb[0].mxu0
        %v3762 = vpop.f32.mrb[0].mxu0
        %v3763 = vpop.f32.mrb[0].mxu0
        %3764 = vdwg.mxu0
        %3765 = vmatprep.subr.bf16.mxu0 0
        %3766 = vmatpush1.bf16.msra.mxu0 %v3461
        %3767 = vmatprep.subr.bf16.mxu0 0
        %3768 = vmatpush1.bf16.msra.mxu0 %v3462
        %3769 = vmatprep.subr.bf16.mxu0 0
        %3770 = vmatpush1.bf16.msra.mxu0 %v3463
        %3771 = vmatprep.subr.bf16.mxu0 0
        %3772 = vmatpush1.bf16.msra.mxu0 %v3464
        %3773 = vmatprep.subr.bf16.mxu0 0
        %3774 = vmatpush1.bf16.msra.mxu0 %v3465
        %3775 = vmatprep.subr.bf16.mxu0 0
        %3776 = vmatpush1.bf16.msra.mxu0 %v3466
        %3777 = vmatprep.subr.bf16.mxu0 0
        %3778 = vmatpush1.bf16.msra.mxu0 %v3467
        %3779 = vmatprep.subr.bf16.mxu0 0
        %3780 = vmatpush1.bf16.msra.mxu0 %v3468
        %3781 = vmatprep.subr.bf16.mxu0 0
        %3782 = vmatpush1.bf16.msra.mxu0 %v3469
        %3783 = vmatprep.subr.bf16.mxu0 0
        %3784 = vmatpush1.bf16.msra.mxu0 %v3470
        %3785 = vmatprep.subr.bf16.mxu0 0
        %3786 = vmatpush1.bf16.msra.mxu0 %v3471
        %3787 = vmatprep.subr.bf16.mxu0 0
        %3788 = vmatpush1.bf16.msra.mxu0 %v3472
        %3789 = vmatprep.subr.bf16.mxu0 0
        %3790 = vmatpush1.bf16.msra.mxu0 %v3473
        %3791 = vmatprep.subr.bf16.mxu0 0
        %3792 = vmatpush1.bf16.msra.mxu0 %v3474
        %3793 = vmatprep.subr.bf16.mxu0 0
        %3794 = vmatpush1.bf16.msra.mxu0 %v3475
        %3795 = vmatprep.subr.bf16.mxu0 0
        %3796 = vmatpush1.bf16.msra.mxu0 %v3476
        %3797 = vmatprep.mubr.bf16.mxu0 %v2650
        %3798 = vmatmul.mubr.bf16.gmra.mrb[0].mxu0 %v2649
        %v3799 = vpop.f32.mrb[0].mxu0
        %v3800 = vadd.f32 %v3760, %v3799
        %v3801 = vpop.f32.mrb[0].mxu0
        %v3802 = vpop.f32.mrb[0].mxu0
        %v3803 = vpop.f32.mrb[0].mxu0
        %3804 = vdwg.mxu0
        %3805 = vmatprep.subr.bf16.mxu0 0
        %3806 = vmatpush1.bf16.msra.mxu0 %v3477
        %3807 = vmatprep.subr.bf16.mxu0 0
        %3808 = vmatpush1.bf16.msra.mxu0 %v3478
        %3809 = vmatprep.subr.bf16.mxu0 0
        %3810 = vmatpush1.bf16.msra.mxu0 %v3479
        %3811 = vmatprep.subr.bf16.mxu0 0
        %3812 = vmatpush1.bf16.msra.mxu0 %v3480
        %3813 = vmatprep.subr.bf16.mxu0 0
        %3814 = vmatpush1.bf16.msra.mxu0 %v3481
        %3815 = vmatprep.subr.bf16.mxu0 0
        %3816 = vmatpush1.bf16.msra.mxu0 %v3482
        %3817 = vmatprep.subr.bf16.mxu0 0
        %3818 = vmatpush1.bf16.msra.mxu0 %v3483
        %3819 = vmatprep.subr.bf16.mxu0 0
        %3820 = vmatpush1.bf16.msra.mxu0 %v3484
        %3821 = vmatprep.subr.bf16.mxu0 0
        %3822 = vmatpush1.bf16.msra.mxu0 %v3485
        %3823 = vmatprep.subr.bf16.mxu0 0
        %3824 = vmatpush1.bf16.msra.mxu0 %v3486
        %3825 = vmatprep.subr.bf16.mxu0 0
        %3826 = vmatpush1.bf16.msra.mxu0 %v3487
        %3827 = vmatprep.subr.bf16.mxu0 0
        %3828 = vmatpush1.bf16.msra.mxu0 %v3488
        %3829 = vmatprep.subr.bf16.mxu0 0
        %3830 = vmatpush1.bf16.msra.mxu0 %v3489
        %3831 = vmatprep.subr.bf16.mxu0 0
        %3832 = vmatpush1.bf16.msra.mxu0 %v3490
        %3833 = vmatprep.subr.bf16.mxu0 0
        %3834 = vmatpush1.bf16.msra.mxu0 %v3491
        %3835 = vmatprep.subr.bf16.mxu0 0
        %3836 = vmatpush1.bf16.msra.mxu0 %v3492
        %3837 = vmatprep.mubr.bf16.mxu0 %v2652
        %3838 = vmatmul.mubr.bf16.gmra.mrb[0].mxu0 %v2651
        %v3839 = vpop.f32.mrb[0].mxu0
        %v3840 = vadd.f32 %v3800, %v3839
        %v3841 = vpop.f32.mrb[0].mxu0
        %v3842 = vpop.f32.mrb[0].mxu0
        %v3843 = vpop.f32.mrb[0].mxu0
        %3844 = vdwg.mxu0
        %3845 = vmatprep.subr.bf16.mxu0 0
        %3846 = vmatpush1.bf16.msra.mxu0 %v3493
        %3847 = vmatprep.subr.bf16.mxu0 0
        %3848 = vmatpush1.bf16.msra.mxu0 %v3494
        %3849 = vmatprep.subr.bf16.mxu0 0
        %3850 = vmatpush1.bf16.msra.mxu0 %v3495
        %3851 = vmatprep.subr.bf16.mxu0 0
        %3852 = vmatpush1.bf16.msra.mxu0 %v3496
        %3853 = vmatprep.subr.bf16.mxu0 0
        %3854 = vmatpush1.bf16.msra.mxu0 %v3497
        %3855 = vmatprep.subr.bf16.mxu0 0
        %3856 = vmatpush1.bf16.msra.mxu0 %v3498
        %3857 = vmatprep.subr.bf16.mxu0 0
        %3858 = vmatpush1.bf16.msra.mxu0 %v3499
        %3859 = vmatprep.subr.bf16.mxu0 0
        %3860 = vmatpush1.bf16.msra.mxu0 %v3500
        %3861 = vmatprep.subr.bf16.mxu0 0
        %3862 = vmatpush1.bf16.msra.mxu0 %v3501
        %3863 = vmatprep.subr.bf16.mxu0 0
        %3864 = vmatpush1.bf16.msra.mxu0 %v3502
        %3865 = vmatprep.subr.bf16.mxu0 0
        %3866 = vmatpush1.bf16.msra.mxu0 %v3503
        %3867 = vmatprep.subr.bf16.mxu0 0
        %3868 = vmatpush1.bf16.msra.mxu0 %v3504
        %3869 = vmatprep.subr.bf16.mxu0 0
        %3870 = vmatpush1.bf16.msra.mxu0 %v3505
        %3871 = vmatprep.subr.bf16.mxu0 0
        %3872 = vmatpush1.bf16.msra.mxu0 %v3506
        %3873 = vmatprep.subr.bf16.mxu0 0
        %3874 = vmatpush1.bf16.msra.mxu0 %v3507
        %3875 = vmatprep.subr.bf16.mxu0 0
        %3876 = vmatpush1.bf16.msra.mxu0 %v3508
        %3877 = vmatprep.mubr.bf16.mxu0 %v2654
        %3878 = vmatmul.mubr.bf16.gmra.mrb[0].mxu0 %v2653
        %v3879 = vpop.f32.mrb[0].mxu0
        %v3880 = vadd.f32 %v3840, %v3879
        %v3881 = vpop.f32.mrb[0].mxu0
        %v3882 = vpop.f32.mrb[0].mxu0
        %v3883 = vpop.f32.mrb[0].mxu0
        %3884 = vdwg.mxu0
        %3885 = vmatprep.subr.bf16.mxu0 0
        %3886 = vmatpush1.bf16.msra.mxu0 %v3509
        %3887 = vmatprep.subr.bf16.mxu0 0
        %3888 = vmatpush1.bf16.msra.mxu0 %v3510
        %3889 = vmatprep.subr.bf16.mxu0 0
        %3890 = vmatpush1.bf16.msra.mxu0 %v3511
        %3891 = vmatprep.subr.bf16.mxu0 0
        %3892 = vmatpush1.bf16.msra.mxu0 %v3512
        %3893 = vmatprep.subr.bf16.mxu0 0
        %3894 = vmatpush1.bf16.msra.mxu0 %v3513
        %3895 = vmatprep.subr.bf16.mxu0 0
        %3896 = vmatpush1.bf16.msra.mxu0 %v3514
        %3897 = vmatprep.subr.bf16.mxu0 0
        %3898 = vmatpush1.bf16.msra.mxu0 %v3515
        %3899 = vmatprep.subr.bf16.mxu0 0
        %3900 = vmatpush1.bf16.msra.mxu0 %v3516
        %3901 = vmatprep.subr.bf16.mxu0 0
        %3902 = vmatpush1.bf16.msra.mxu0 %v3517
        %3903 = vmatprep.subr.bf16.mxu0 0
        %3904 = vmatpush1.bf16.msra.mxu0 %v3518
        %3905 = vmatprep.subr.bf16.mxu0 0
        %3906 = vmatpush1.bf16.msra.mxu0 %v3519
        %3907 = vmatprep.subr.bf16.mxu0 0
        %3908 = vmatpush1.bf16.msra.mxu0 %v3520
        %3909 = vmatprep.subr.bf16.mxu0 0
        %3910 = vmatpush1.bf16.msra.mxu0 %v3521
        %3911 = vmatprep.subr.bf16.mxu0 0
        %3912 = vmatpush1.bf16.msra.mxu0 %v3522
        %3913 = vmatprep.subr.bf16.mxu0 0
        %3914 = vmatpush1.bf16.msra.mxu0 %v3523
        %3915 = vmatprep.subr.bf16.mxu0 0
        %3916 = vmatpush1.bf16.msra.mxu0 %v3524
        %3917 = vmatprep.mubr.bf16.mxu0 %v2656
        %3918 = vmatmul.mubr.bf16.gmra.mrb[0].mxu0 %v2655
        %v3919 = vpop.f32.mrb[0].mxu0
        %v3920 = vadd.f32 %v3880, %v3919
        %v3921 = vpop.f32.mrb[0].mxu0
        %v3922 = vpop.f32.mrb[0].mxu0
        %v3923 = vpop.f32.mrb[0].mxu0
        %3924 = vdwg.mxu0
        %3925 = vmatprep.subr.bf16.mxu0 0
        %3926 = vmatpush1.bf16.msra.mxu0 %v3525
        %3927 = vmatprep.subr.bf16.mxu0 0
        %3928 = vmatpush1.bf16.msra.mxu0 %v3526
        %3929 = vmatprep.subr.bf16.mxu0 0
        %3930 = vmatpush1.bf16.msra.mxu0 %v3527
        %3931 = vmatprep.subr.bf16.mxu0 0
        %3932 = vmatpush1.bf16.msra.mxu0 %v3528
        %3933 = vmatprep.subr.bf16.mxu0 0
        %3934 = vmatpush1.bf16.msra.mxu0 %v3529
        %3935 = vmatprep.subr.bf16.mxu0 0
        %3936 = vmatpush1.bf16.msra.mxu0 %v3530
        %3937 = vmatprep.subr.bf16.mxu0 0
        %3938 = vmatpush1.bf16.msra.mxu0 %v3531
        %3939 = vmatprep.subr.bf16.mxu0 0
        %3940 = vmatpush1.bf16.msra.mxu0 %v3532
        %3941 = vmatprep.subr.bf16.mxu0 0
        %3942 = vmatpush1.bf16.msra.mxu0 %v3533
        %3943 = vmatprep.subr.bf16.mxu0 0
        %3944 = vmatpush1.bf16.msra.mxu0 %v3534
        %3945 = vmatprep.subr.bf16.mxu0 0
        %3946 = vmatpush1.bf16.msra.mxu0 %v3535
        %3947 = vmatprep.subr.bf16.mxu0 0
        %3948 = vmatpush1.bf16.msra.mxu0 %v3536
        %3949 = vmatprep.subr.bf16.mxu0 0
        %3950 = vmatpush1.bf16.msra.mxu0 %v3537
        %3951 = vmatprep.subr.bf16.mxu0 0
        %3952 = vmatpush1.bf16.msra.mxu0 %v3538
        %3953 = vmatprep.subr.bf16.mxu0 0
        %3954 = vmatpush1.bf16.msra.mxu0 %v3539
        %3955 = vmatprep.subr.bf16.mxu0 0
        %3956 = vmatpush1.bf16.msra.mxu0 %v3540
        %3957 = vmatprep.mubr.bf16.mxu0 %v2658
        %3958 = vmatmul.mubr.bf16.gmra.mrb[0].mxu0 %v2657
        %v3959 = vpop.f32.mrb[0].mxu0
        %v3960 = vadd.f32 %v3920, %v3959
        %v3961 = vpop.f32.mrb[0].mxu0
        %v3962 = vpop.f32.mrb[0].mxu0
        %v3963 = vpop.f32.mrb[0].mxu0
        %3964 = vdwg.mxu0
        %3965 = vmatprep.subr.bf16.mxu0 0
        %3966 = vmatpush1.bf16.msra.mxu0 %v3541
        %3967 = vmatprep.subr.bf16.mxu0 0
        %3968 = vmatpush1.bf16.msra.mxu0 %v3542
        %3969 = vmatprep.subr.bf16.mxu0 0
        %3970 = vmatpush1.bf16.msra.mxu0 %v3543
        %3971 = vmatprep.subr.bf16.mxu0 0
        %3972 = vmatpush1.bf16.msra.mxu0 %v3544
        %3973 = vmatprep.subr.bf16.mxu0 0
        %3974 = vmatpush1.bf16.msra.mxu0 %v3545
        %3975 = vmatprep.subr.bf16.mxu0 0
        %3976 = vmatpush1.bf16.msra.mxu0 %v3546
        %3977 = vmatprep.subr.bf16.mxu0 0
        %3978 = vmatpush1.bf16.msra.mxu0 %v3547
        %3979 = vmatprep.subr.bf16.mxu0 0
        %3980 = vmatpush1.bf16.msra.mxu0 %v3548
        %3981 = vmatprep.subr.bf16.mxu0 0
        %3982 = vmatpush1.bf16.msra.mxu0 %v3549
        %3983 = vmatprep.subr.bf16.mxu0 0
        %3984 = vmatpush1.bf16.msra.mxu0 %v3550
        %3985 = vmatprep.subr.bf16.mxu0 0
        %3986 = vmatpush1.bf16.msra.mxu0 %v3551
        %3987 = vmatprep.subr.bf16.mxu0 0
        %3988 = vmatpush1.bf16.msra.mxu0 %v3552
        %3989 = vmatprep.subr.bf16.mxu0 0
        %3990 = vmatpush1.bf16.msra.mxu0 %v3553
        %3991 = vmatprep.subr.bf16.mxu0 0
        %3992 = vmatpush1.bf16.msra.mxu0 %v3554
        %3993 = vmatprep.subr.bf16.mxu0 0
        %3994 = vmatpush1.bf16.msra.mxu0 %v3555
        %3995 = vmatprep.subr.bf16.mxu0 0
        %3996 = vmatpush1.bf16.msra.mxu0 %v3556
        %3997 = vmatprep.mubr.bf16.mxu0 %v2660
        %3998 = vmatmul.mubr.bf16.gmra.mrb[0].mxu0 %v2659
        %v3999 = vpop.f32.mrb[0].mxu0
        %v4000 = vadd.f32 %v3960, %v3999
        %v4001 = vpop.f32.mrb[0].mxu0
        %v4002 = vpop.f32.mrb[0].mxu0
        %v4003 = vpop.f32.mrb[0].mxu0
        %4004 = vdwg.mxu0
        %v4005 = vadd.f32 %v2644, %v4000
        %4006 = vst.msk [vmem:[#allocation3] sm:$0xff] %vm2296, %v4005
        // Predicated region
        $region57: #{tpu_custom_call.1} parent=51 // pred_check
          %p4007 = pneg %p377
        $region58: #{tpu_custom_call.1} parent=51 // pred_check_branch
          %4009 = sbr.rel (%p4007) target = $region60
        $region59: #{tpu_custom_call.1} parent=51 // pred_region
          %v4010 = vld [vmem:[#allocation3] sm:$0xff]
          %v4011 = vsel %vm2296, %v4010, 0.0
          %4012 = vadd.xlane.f32.xlu0 %v4011
          %v4013 = vpop.xlane.xlu0 %4012
          %v4014 = vrcp.pop 32.0
          %v4015 = vmul.f32 %v4013, %v4014
          %v4016 = vsub.f32 %v4010, %v4015
          %v4017 = vmul.f32 %v4016, %v4016
          %v4018 = vsel %vm2296, %v4017, 0.0
          %4019 = vadd.xlane.f32.xlu0 %v4018
          %v4020 = vpop.xlane.xlu0 %4019
          %v4021 = vmul.f32 %v4020, %v4014
          %v4022 = vadd.f32 %v4021, 1e-05
          %v4023 = vrsqrt.pop %v4022
          %v4024 = vmul.f32 %v4016, %v4023
          %v4025 = vld [vmem:[%s4 + $0x2] sm:$0x1]
          %v4026 = vlaneseq
          %v4027 = vshrl.u32 %v4026, 7
          %v4028 = vsub.s32 0, %v4027
          %v4029 = vrot.slane %v4025, %v4028
          %v4030 = vmul.f32 %v4024, %v4029
          %v4031 = vld [vmem:[%s4 + $0x3] sm:$0x1]
          %v4032 = vlaneseq
          %v4033 = vshrl.u32 %v4032, 7
          %v4034 = vsub.s32 0, %v4033
          %v4035 = vrot.slane %v4031, %v4034
          %v4036 = vadd.f32 %v4030, %v4035
          %4037 = vst.msk [vmem:[%s354] sm:$0xff] %vm2296, %v4036
        $region60: #{tpu_custom_call.1} parent=51 // pred_fallthru
          _
        %s4038 = sand.u32 %s230, 1
        %s4039 = scalar_lea.sflag [#allocation5], %s4038
        %s4040 = sand.u32 %s230, 1
        %s4041 = smul.addr %s4040, 8
        %s4042 = scalar_lea.vmem [#allocation4], %s4041
        // Predicated region
        $region61: #{tpu_custom_call.1} parent=51 // pred_check
          %p4043 = pneg %p240
        $region62: #{tpu_custom_call.1} parent=51 // pred_check_branch
          %4045 = sbr.rel (%p4043) target = $region64
        $region63: #{tpu_custom_call.1} parent=51 // pred_region
          %s4047 = ssub.s32 128, 128
          %4048 = vsyncadd %s4039, %s4047
          %s4049 = smul.addr %s26, 128
          %s4050 = scalar_lea.hbm %s8, %s4049
          %s4052 = sshll.u32 %s4042, 4
          %s4053 = int_to_ptr.vmem [resolvable:$true] %s4052
          %4055 = dma.vmem_to_hbm [thread:$0]  %s4053, 128, %s4050, %s4039
        $region64: #{tpu_custom_call.1} parent=51 // pred_fallthru
          _
      $region52: #{tpu_custom_call.1} parent=5 // pred_fallthru
        _
      %p4056 = scmp.le.s32.totalorder 2, %s17
      // Predicated region
      $region65: #{tpu_custom_call.1} parent=5 // pred_check
        %p4057 = pneg %p4056
      $region66: #{tpu_custom_call.1} parent=5 // pred_check_branch
        %4059 = sbr.rel (%p4057) target = $region68
      $region67: #{tpu_custom_call.1} parent=5 // pred_region
        %s4060 = ssub.s32 %s17, 2
        // Predicated region
        $region69: #{tpu_custom_call.1} parent=67 // pred_check
          %p4061 = pneg %p246
        $region70: #{tpu_custom_call.1} parent=67 // pred_check_branch
          %4063 = sbr.rel (%p4061) target = $region72
        $region71: #{tpu_custom_call.1} parent=67 // pred_region
          %s4064 = sand.u32 %s231, 1
          %s4065 = scalar_lea.sflag [#allocation5], %s4064
          %s4066 = sand.u32 %s231, 1
          %s4067 = smul.addr %s4066, 8
          %s4068 = scalar_lea.vmem [#allocation4], %s4067
          %4069 = dma.done %s4065, 128
        $region72: #{tpu_custom_call.1} parent=67 // pred_fallthru
          _
      $region68: #{tpu_custom_call.1} parent=5 // pred_fallthru
        _
    $region6: #{tpu_custom_call.1} parent=1 // loop_footer
      %s21 = sadd.s32 1, %s17
    $region7: #{tpu_custom_call.1} parent=1 // loop_footer_branch
      %16 = sbr.rel target = $region3
    $region8: #{tpu_custom_call.1} parent=1 // loop_exit
      _
    %4070 = vsyncpa [#allocation5], 1
    %s4071 = scalar_lea.sflag [#allocation5], 1
    %4072 = vsyncpa %s4071, 1

</llo_original>
